<compile_context>
chip_gen: v6e
topology: v6e:2x2x1
jax: 0.10.0
libtpu: 0.0.40
codegen_flags: <defaults>
</compile_context>

<pallas_src>
import jax
import jax.numpy as jnp
from jax import lax
from jax.experimental import pallas as pl
from jax.experimental.pallas import tpu as pltpu


def _attention_kernel(enc_ref, mask_ref, hdec_ref, w2_ref, v_ref, out_ref):
    # enc_ref : (TS, B, 2H) bf16 (or f32 -> cast) seq-first encoder tile (streamed)
    # mask_ref: (B, TS) int32, 1 = masked  (batch-major == mask.T, lane axis = seq)
    # hdec_ref: (B, H)  f32   = decoder_hidden @ W_dec^T + b_W  (hoisted, resident)
    # w2_ref  : (2H, H) bf16  encoder-side columns of W, transposed (resident)
    # v_ref   : (1, H)  f32   v weight row (resident)
    # out_ref : (B, TS) f32   softmax over the batch axis (dim 0), per the original module

    enc = enc_ref[...]
    if enc.dtype != jnp.bfloat16:          # no-op when enc already streams as bf16
        enc = enc.astype(jnp.bfloat16)

    # W(cat(dec_rep, enc)) == dec @ W1^T + enc @ W2^T + bW; the dec part (+bW) is hoisted.
    h_enc = lax.dot_general(enc, w2_ref[...], (((2,), (0,)), ((), ())),
                            preferred_element_type=jnp.float32)          # (TS, B, H) f32

    h = jnp.tanh(h_enc + hdec_ref[...][None, :, :])                      # (TS, B, H) f32

    # v-projection: output width 1 -> VPU multiply + lane reduction (keeps MXU free).
    # (v bias dropped: softmax is invariant to a constant shift.)
    scores_sb = jnp.sum(h * v_ref[...][None, :, :], axis=-1)             # (TS, B) f32

    # Lane-dense relayout (TS, B) -> (B, TS): NT matmul against I_B on the MXU — the same
    # dimension-number pattern as q @ k^T in flash attention, so it lowers cleanly and its
    # cost (M=K=B) is negligible / hidden under the enc DMA.
    b = scores_sb.shape[1]
    rows = lax.broadcasted_iota(jnp.int32, (b, b), 0)
    cols = lax.broadcasted_iota(jnp.int32, (b, b), 1)
    eye_b = (rows == cols).astype(jnp.float32)
    scores_bt = lax.dot_general(eye_b, scores_sb, (((1,), (1,)), ((), ())),
                                preferred_element_type=jnp.float32)      # (B, TS) f32

    # masked_fill(mask.T, -inf); mask is already batch-major so orientation matches.
    masked = jnp.where(mask_ref[...] != 0, -jnp.inf, scores_bt)          # (B, TS)

    # softmax over dim=0 of the (B, S) scores == the batch (sublane) axis, per the module.
    # (A fully-masked column yields NaN, same as the PyTorch reference.)
    m = jnp.max(masked, axis=0, keepdims=True)                           # (1, TS)
    e = jnp.exp(masked - m)                                              # (B, TS), lane-dense
    denom = jnp.sum(e, axis=0, keepdims=True)                            # (1, TS)
    out_ref[...] = e / denom                      # exact normalization (rows sum to 1)


def _pick_seq_tile(S, row_bytes):
    """Sequence tile so each enc tile is ~4 MiB (double-buffered << 32 MiB v7x scoped VMEM),
    ts is a multiple of 128 lanes (or == S), and the grid keeps >= 2 steps when possible so
    both v7x TensorCores get tiles under dimension_semantics=('parallel',)."""
    target_bytes = 4 * 1024 * 1024
    ts = (target_bytes // max(row_bytes, 1)) // 128 * 128
    ts = max(128, min(ts, 4096))
    if ts >= S:
        if S >= 256:
            # Whole sequence fits one target-sized tile; split in two 128-multiple tiles
            # so the second TensorCore (v7x megacore) is not starved.
            ts = (((S + 1) // 2) + 127) // 128 * 128
        else:
            ts = S   # tiny sequence: one full-extent block (any size allowed)
    return ts


@jax.jit
def attention_forward(decoder_hidden, encoder_outputs, mask, params):
    """decoder_hidden (B,H), encoder_outputs (S,B,2H) seq-first, mask (S,B) bool or None."""
    W, bW, v, bv = params            # W: (H, 3H), bW: (H,), v: (1, H), bv: (1,)
    del bv                           # softmax-invariant constant shift
    B, H = decoder_hidden.shape
    S = encoder_outputs.shape[0]

    # Hoist the S-independent decoder projection (+ W bias): tiny (B,H) @ (H,H).
    w_dec_t = jnp.transpose(W[:, :H]).astype(jnp.float32)                    # (H, H)
    hdec = (decoder_hidden.astype(jnp.float32) @ w_dec_t
            + bW.reshape(1, H).astype(jnp.float32))                          # (B, H) f32

    w2t = jnp.transpose(W[:, H:]).astype(jnp.bfloat16)                       # (2H, H) bf16
    v_row = v.astype(jnp.float32)                                            # (1, H)

    # mask.T matches the module's masked_fill(mask.T, -inf) and hands the kernel the
    # batch-major layout it needs; this transpose is ~1% of enc traffic (tiny).
    if mask is None:
        mask_bt = jnp.zeros((B, S), dtype=jnp.int32)
    else:
        mask_bt = jnp.transpose(mask).astype(jnp.int32)                      # (B, S)

    # encoder_outputs streams in its native (S, B, 2H) layout AND dtype (produce it in
    # bf16 upstream: the kernel is HBM-bound and enc dominates the traffic). No standalone
    # wrapper convert here — that would add an extra HBM round trip.
    enc = encoder_outputs

    row_bytes = B * 2 * H * enc.dtype.itemsize
    ts = _pick_seq_tile(S, row_bytes)
    grid = (pl.cdiv(S, ts),)

    flops = 2 * S * B * (2 * H) * H + 2 * S * B * B + 6 * S * B * H
    transcendentals = S * B * (H + 1)
    bytes_accessed = (enc.size * enc.dtype.itemsize     # enc stream (dominant term)
                      + 4 * S * B + 4 * S * B           # mask in, probs out
                      + 4 * B * H + 2 * 2 * H * H + 4 * H)

    out = pl.pallas_call(
        _attention_kernel,
        out_shape=jax.ShapeDtypeStruct((B, S), jnp.float32),
        grid_spec=pltpu.PrefetchScalarGridSpec(
            num_scalar_prefetch=0,
            grid=grid,
            in_specs=[
                pl.BlockSpec((ts, B, 2 * H), lambda i: (i, 0, 0)),   # enc tile (pipelined)
                pl.BlockSpec((B, ts), lambda i: (0, i)),             # mask tile (lane-dense)
                pl.BlockSpec((B, H), lambda i: (0, 0)),              # hdec (resident)
                pl.BlockSpec((2 * H, H), lambda i: (0, 0)),          # W enc-part (resident)
                pl.BlockSpec((1, H), lambda i: (0, 0)),              # v row (resident)
            ],
            out_specs=pl.BlockSpec((B, ts), lambda i: (0, i)),       # lane-dense output
        ),
        # vmem_limit_bytes intentionally NOT set: footprint is a few MiB, well under the
        # default scoped budgets on v5e/v6e/v7x (requesting 64 MiB would be v7x-unsafe).
        compiler_params=pltpu.CompilerParams(
            dimension_semantics=("parallel",),        # S tiles are independent (megacore)
        ),
        cost_estimate=pl.CostEstimate(
            flops=flops,
            transcendentals=transcendentals,
            bytes_accessed=bytes_accessed,
        ),
    )(enc, mask_bt, hdec, w2t, v_row)

    return out    # already (B, S): no wrapper-side transpose needed anymore


def _reference(decoder_hidden, encoder_outputs, mask, params):
    """Pure-JAX mirror of the PyTorch forward (for correctness check)."""
    W, bW, v, bv = params
    B, H = decoder_hidden.shape
    S = encoder_outputs.shape[0]
    dec_rep = jnp.broadcast_to(decoder_hidden[:, None, :].astype(jnp.float32), (B, S, H))
    enc = jnp.transpose(encoder_outputs.astype(jnp.float32), (1, 0, 2))
    cat = jnp.concatenate([dec_rep, enc], axis=2)                      # (B, S, 3H)
    scores = jnp.tanh(jnp.einsum('bsi,oi->bso', cat, W) + bW)          # (B, S, H)
    scores = (jnp.einsum('bsh,oh->bso', scores, v) + bv)[..., 0]       # (B, S)
    if mask is not None:
        scores = jnp.where(mask.T, -jnp.inf, scores)
    return jax.nn.softmax(scores, axis=0)


if __name__ == "__main__":
    # Small but grid/lane-exercising shapes: 2 sequence tiles of 256, 2H = 128 lanes.
    B, S, H = 8, 512, 64   # batch, src seq len, hidden_size

    key = jax.random.PRNGKey(0)
    k_dec, k_enc, k_w, k_bw, k_v, k_bv, k_m = jax.random.split(key, 7)

    decoder_hidden = jax.random.normal(k_dec, (B, H), dtype=jnp.float32)
    # Upstream encoder output kept in bf16 so the HBM-bound kernel streams 2 bytes/elem.
    encoder_outputs = jax.random.normal(
        k_enc, (S, B, 2 * H), dtype=jnp.float32).astype(jnp.bfloat16)

    # Deterministic parameter init (PyTorch Linear-style uniform bounds).
    bW_bound = 1.0 / jnp.sqrt(3.0 * H)
    W = jax.random.uniform(k_w, (H, 3 * H), jnp.float32, -bW_bound, bW_bound)
    bW = jax.random.uniform(k_bw, (H,), jnp.float32, -bW_bound, bW_bound)
    v_bound = 1.0 / jnp.sqrt(1.0 * H)
    v = jax.random.uniform(k_v, (1, H), jnp.float32, -v_bound, v_bound)
    bv = jax.random.uniform(k_bv, (1,), jnp.float32, -v_bound, v_bound)
    params = (W, bW, v, bv)

    # Boolean padding mask (S, B); keep at least one unmasked batch entry per position
    # (softmax runs over dim=0 == batch, matching the original module verbatim).
    mask = jax.random.bernoulli(k_m, 0.25, (S, B))
    mask = mask.at[:, 0].set(False)

    out = attention_forward(decoder_hidden, encoder_outputs, mask, params)
    out = jax.block_until_ready(out)

    ref = _reference(decoder_hidden, encoder_outputs, mask, params)
    assert out.shape == (B, S)
    # Kernel runs the big matmul in bf16 (f32 accumulation); compare with a loose tolerance.
    assert jnp.allclose(out, ref, atol=2e-2, rtol=2e-2), "mismatch vs reference"

    print("KERNEL_OK")
</pallas_src>

<mosaic_0001>
module attributes {stable_mosaic.version = 11 : i64} {
  func.func @_attention_kernel(%arg0: i32, %arg1: memref<256x8x128xbf16, #tpu.memory_space<vmem>>, %arg2: memref<8x256xi32, #tpu.memory_space<vmem>>, %arg3: memref<8x64xf32, #tpu.memory_space<vmem>>, %arg4: memref<128x64xbf16, #tpu.memory_space<vmem>>, %arg5: memref<1x64xf32, #tpu.memory_space<vmem>>, %arg6: memref<8x256xf32, #tpu.memory_space<vmem>>) attributes {dimension_semantics = [#tpu.dimension_semantics<parallel>], iteration_bounds = array<i64: 2>, scalar_prefetch = 0 : i64, scratch_operands = 0 : i64, tpu.core_type = #tpu.core_type<tc>, window_params = [{transform_indices = @transform_0, window_bounds = array<i64: 256, 8, 128>}, {transform_indices = @transform_1, window_bounds = array<i64: 8, 256>}, {pipeline_mode = #tpu.pipeline_mode<synchronous>, transform_indices = @transform_2, window_bounds = array<i64: 8, 64>}, {pipeline_mode = #tpu.pipeline_mode<synchronous>, transform_indices = @transform_3, window_bounds = array<i64: 128, 64>}, {pipeline_mode = #tpu.pipeline_mode<synchronous>, transform_indices = @transform_4, window_bounds = array<i64: 1, 64>}, {transform_indices = @transform_5, window_bounds = array<i64: 8, 256>}]} {
    %c0 = arith.constant 0 : index
    %c0_0 = arith.constant 0 : index
    %c0_1 = arith.constant 0 : index
    %0 = vector.load %arg1[%c0, %c0_0, %c0_1] : memref<256x8x128xbf16, #tpu.memory_space<vmem>>, vector<256x8x128xbf16>
    %c0_2 = arith.constant 0 : index
    %c0_3 = arith.constant 0 : index
    %1 = vector.load %arg4[%c0_2, %c0_3] : memref<128x64xbf16, #tpu.memory_space<vmem>>, vector<128x64xbf16>
    %cst = arith.constant dense<0.000000e+00> : vector<256x8x64xf32>
    %2 = tpu.matmul %0, %1, %cst {dimension_numbers = #tpu.dot_dimension_numbers<[2], [0], [0, 1], [1], [0, 0, 0, 1, 1, 1], [], []>} : vector<256x8x128xbf16>, vector<128x64xbf16>, vector<256x8x64xf32> -> vector<256x8x64xf32>
    %c0_4 = arith.constant 0 : index
    %c0_5 = arith.constant 0 : index
    %3 = vector.load %arg3[%c0_4, %c0_5] : memref<8x64xf32, #tpu.memory_space<vmem>>, vector<8x64xf32>
    %4 = vector.shape_cast %3 : vector<8x64xf32> to vector<1x8x64xf32>
    %5 = vector.broadcast %4 : vector<1x8x64xf32> to vector<256x8x64xf32>
    %6 = arith.addf %2, %5 : vector<256x8x64xf32>
    %7 = math.tanh %6 : vector<256x8x64xf32>
    %c0_6 = arith.constant 0 : index
    %c0_7 = arith.constant 0 : index
    %8 = vector.load %arg5[%c0_6, %c0_7] : memref<1x64xf32, #tpu.memory_space<vmem>>, vector<1x64xf32>
    %9 = vector.shape_cast %8 : vector<1x64xf32> to vector<1x1x64xf32>
    %10 = vector.broadcast %9 : vector<1x1x64xf32> to vector<256x8x64xf32>
    %11 = arith.mulf %7, %10 : vector<256x8x64xf32>
    %cst_8 = arith.constant dense<0.000000e+00> : vector<256x8xf32>
    %12 = vector.multi_reduction <add>, %11, %cst_8 [2] : vector<256x8x64xf32> to vector<256x8xf32>
    %13 = tpu.iota {dimensions = array<i32: 0>} : vector<8x8xi32>
    %14 = tpu.iota {dimensions = array<i32: 1>} : vector<8x8xi32>
    %15 = arith.cmpi eq, %13, %14 : vector<8x8xi32>
    %16 = arith.extui %15 : vector<8x8xi1> to vector<8x8xi32>
    %17 = arith.sitofp %16 : vector<8x8xi32> to vector<8x8xf32>
    %cst_9 = arith.constant dense<0.000000e+00> : vector<8x256xf32>
    %18 = tpu.matmul %17, %12, %cst_9 {dimension_numbers = #tpu.dot_dimension_numbers<[1], [1], [0], [0], [0, 0, 1, 0], [], []>} : vector<8x8xf32>, vector<256x8xf32>, vector<8x256xf32> -> vector<8x256xf32>
    %c0_10 = arith.constant 0 : index
    %c0_11 = arith.constant 0 : index
    %19 = vector.load %arg2[%c0_10, %c0_11] : memref<8x256xi32, #tpu.memory_space<vmem>>, vector<8x256xi32>
    %c0_i32 = arith.constant 0 : i32
    %20 = vector.broadcast %c0_i32 : i32 to vector<8x256xi32>
    %21 = arith.cmpi ne, %19, %20 : vector<8x256xi32>
    %cst_12 = arith.constant 0xFF800000 : f32
    %22 = vector.broadcast %cst_12 : f32 to vector<8x256xf32>
    %23 = arith.select %21, %22, %18 : vector<8x256xi1>, vector<8x256xf32>
    %cst_13 = arith.constant dense<0xFF800000> : vector<256xf32>
    %24 = vector.multi_reduction <maximumf>, %23, %cst_13 [0] : vector<8x256xf32> to vector<256xf32>
    %25 = vector.shape_cast %24 : vector<256xf32> to vector<1x256xf32>
    %26 = vector.broadcast %25 : vector<1x256xf32> to vector<8x256xf32>
    %27 = arith.subf %23, %26 : vector<8x256xf32>
    %28 = math.exp %27 : vector<8x256xf32>
    %cst_14 = arith.constant dense<0.000000e+00> : vector<256xf32>
    %29 = vector.multi_reduction <add>, %28, %cst_14 [0] : vector<8x256xf32> to vector<256xf32>
    %30 = vector.shape_cast %29 : vector<256xf32> to vector<1x256xf32>
    %31 = vector.broadcast %30 : vector<1x256xf32> to vector<8x256xf32>
    %32 = arith.divf %28, %31 : vector<8x256xf32>
    %c0_15 = arith.constant 0 : index
    %c0_16 = arith.constant 0 : index
    %33 = vector.load %arg6[%c0_15, %c0_16] : memref<8x256xf32, #tpu.memory_space<vmem>>, vector<8x256xf32>
    tpu.vector_store %arg6[%c0_15, %c0_16], %32 {strides = array<i32>} : memref<8x256xf32, #tpu.memory_space<vmem>>, vector<8x256xf32>,
    return
  }
  func.func @transform_0(%arg0: i32) -> (i32, i32, i32) {
    %c0_i32 = arith.constant 0 : i32
    %c0_i32_0 = arith.constant 0 : i32
    %c0_i32_1 = arith.constant 0 : i32
    return %arg0, %c0_i32, %c0_i32_0 : i32, i32, i32
  }
  func.func @transform_1(%arg0: i32) -> (i32, i32) {
    %c0_i32 = arith.constant 0 : i32
    %c0_i32_0 = arith.constant 0 : i32
    return %c0_i32, %arg0 : i32, i32
  }
  func.func @transform_2(%arg0: i32) -> (i32, i32) {
    %c0_i32 = arith.constant 0 : i32
    %c0_i32_0 = arith.constant 0 : i32
    %c0_i32_1 = arith.constant 0 : i32
    return %c0_i32, %c0_i32_0 : i32, i32
  }
  func.func @transform_3(%arg0: i32) -> (i32, i32) {
    %c0_i32 = arith.constant 0 : i32
    %c0_i32_0 = arith.constant 0 : i32
    %c0_i32_1 = arith.constant 0 : i32
    return %c0_i32, %c0_i32_0 : i32, i32
  }
  func.func @transform_4(%arg0: i32) -> (i32, i32) {
    %c0_i32 = arith.constant 0 : i32
    %c0_i32_0 = arith.constant 0 : i32
    %c0_i32_1 = arith.constant 0 : i32
    return %c0_i32, %c0_i32_0 : i32, i32
  }
  func.func @transform_5(%arg0: i32) -> (i32, i32) {
    %c0_i32 = arith.constant 0 : i32
    %c0_i32_0 = arith.constant 0 : i32
    return %c0_i32, %arg0 : i32, i32
  }
}

</mosaic_0001>

<llo_original>
// kernel: attention_forward.1
$region0: #{attention_forward.1}
  #allocation0 [shape = 'u32[]', space=smem, size = 0x4, offset = 0x4, fixed_abs, tag = 'smem constant byte address 0x4 - core index']
  #allocation1 [shape = 'u32[144,128]{1,0:T(1,128)}', space=vmem, size = 0x12000, scoped, tag = 'internal scratch']
  %s0 = inlined_call_operand.hbm [shape: bf16[512,8,128], index: 0, kind: input, shape index: {}]
  %s1 = inlined_call_operand.vmem [shape: s32[8,512], index: 1, kind: input, shape index: {}]
  %s2 = inlined_call_operand.vmem [shape: f32[8,64], index: 2, kind: input, shape index: {}]
  %s3 = inlined_call_operand.vmem [shape: bf16[128,64], index: 3, kind: input, shape index: {}]
  %s4 = inlined_call_operand.vmem [shape: f32[1,64], index: 4, kind: input, shape index: {}]
  %s5 = inlined_call_operand.hbm [shape: f32[8,512], index: 5, kind: output, shape index: {}]
  %s6 = sld [smem:[#allocation0]]
  $region57: #{attention_forward.1} parent=0
    _
  %s8 = ssub.s32 1, %s6
  %s9 = scalar_select 0, %s8, %s6
  $region1: #{attention_forward.1} parent=0
    #allocation2 [shape = 'u8[1048576]{0}', space=vmem, size = 0x100000, scoped, tag = 'input window, operand 0']
    #allocation3 [shape = 's32[2]{0}', space=sflag, size = 0x8, scoped, tag = 'scoped memory for attention_forward.1']
    #allocation4 [shape = 's32[2]{0}', space=sflag, size = 0x8, scoped, tag = 'scoped memory for attention_forward.1']
    #allocation5 [shape = 'u8[16384]{0}', space=vmem, size = 0x4000, scoped, tag = 'output window, operand 0']
    %10 = vsyncpa [#allocation3], 0
    %s11 = scalar_lea.sflag [#allocation3], 1
    %12 = vsyncpa %s11, 0
    %13 = vsyncpa [#allocation4], 0
    %s14 = scalar_lea.sflag [#allocation4], 1
    %15 = vsyncpa %s14, 0
    loop: start=0, step=1, limit=4
    $region2: #{attention_forward.1} parent=1 // loop_pre_header
      _
    $region3: #{attention_forward.1} parent=1 // loop_header
      %s17 = sphi 0, %s21
      %p18 = scmp.ge.s32.totalorder %s17, 4
      %s27 = sphi 0, %s29
      %s30 = sphi 0, %s27
      %s31 = sphi 0, %s30
      %s47 = sphi 0, %s31
      %s53 = sphi 0, %s55
      %s56 = sphi 0, %s53
      %s57 = sphi 0, %s56
      %s73 = sphi 0, %s57
      %s77 = sphi 0, %s77
      %s79 = sphi 0, %s77
      %s80 = sphi 0, %s79
      %s94 = sphi 0, %s80
      %s98 = sphi 0, %s98
      %s100 = sphi 0, %s98
      %s101 = sphi 0, %s100
      %s115 = sphi 0, %s101
      %s119 = sphi 0, %s119
      %s121 = sphi 0, %s119
      %s122 = sphi 0, %s121
      %s136 = sphi 0, %s122
      %s142 = sphi 0, %s144
      %s145 = sphi 0, %s142
      %s146 = sphi 0, %s145
      %s162 = sphi 0, %s146
    $region4: #{attention_forward.1} parent=1 // loop_header_branch
      %20 = sbr.rel (%p18) target = $region8
    $region5: #{attention_forward.1} parent=1 // loop_body
      %s22 = ssub.s32 %s17, 1
      %s23 = ssub.s32 %s17, 2
      %s24 = sadd.s32 %s17, 1
      %s25 = ssub.s32 %s17, %s24
      %p26 = scmp.eq.s32.totalorder %s25, 0
      %s28 = sadd.s32 %s27, 1
      %s29 = scalar_select %p26, %s27, %s28
      %p32 = pneg %p26
      %p33 = scmp.eq.s32.totalorder %s17, 1
      %p34 = por %p32, %p33
      %p35 = scmp.ne.s32.totalorder %s27, %s30
      %p36 = scmp.eq.s32.totalorder %s17, 0
      %p37 = por %p35, %p36
      %p38 = scmp.ne.s32.totalorder %s27, %s30
      %p39 = scmp.eq.s32.totalorder %s22, 1
      %p40 = por %p38, %p39
      %p41 = scmp.ne.s32.totalorder %s30, %s31
      %p42 = scmp.eq.s32.totalorder %s22, 0
      %p43 = por %p41, %p42
      %p44 = scmp.ne.s32.totalorder %s30, %s31
      %p45 = scmp.eq.s32.totalorder %s23, 1
      %p46 = por %p44, %p45
      %p48 = scmp.ne.s32.totalorder %s31, %s47
      %p49 = scmp.eq.s32.totalorder %s23, 0
      %p50 = por %p48, %p49
      %s51 = ssub.s32 %s17, %s24
      %p52 = scmp.eq.s32.totalorder %s51, 0
      %s54 = sadd.s32 %s53, 1
      %s55 = scalar_select %p52, %s53, %s54
      %p58 = pneg %p52
      %p59 = scmp.eq.s32.totalorder %s17, 1
      %p60 = por %p58, %p59
      %p61 = scmp.ne.s32.totalorder %s53, %s56
      %p62 = scmp.eq.s32.totalorder %s17, 0
      %p63 = por %p61, %p62
      %p64 = scmp.ne.s32.totalorder %s53, %s56
      %p65 = scmp.eq.s32.totalorder %s22, 1
      %p66 = por %p64, %p65
      %p67 = scmp.ne.s32.totalorder %s56, %s57
      %p68 = scmp.eq.s32.totalorder %s22, 0
      %p69 = por %p67, %p68
      %p70 = scmp.ne.s32.totalorder %s56, %s57
      %p71 = scmp.eq.s32.totalorder %s23, 1
      %p72 = por %p70, %p71
      %p74 = scmp.ne.s32.totalorder %s57, %s73
      %p75 = scmp.eq.s32.totalorder %s23, 0
      %p76 = por %p74, %p75
      %s78 = sadd.s32 %s77, 1
      %p81 = scmp.eq.s32.totalorder %s17, 1
      %p82 = scmp.ne.s32.totalorder %s77, %s79
      %p83 = scmp.eq.s32.totalorder %s17, 0
      %p84 = por %p82, %p83
      %p85 = scmp.ne.s32.totalorder %s77, %s79
      %p86 = scmp.eq.s32.totalorder %s22, 1
      %p87 = por %p85, %p86
      %p88 = scmp.ne.s32.totalorder %s79, %s80
      %p89 = scmp.eq.s32.totalorder %s22, 0
      %p90 = por %p88, %p89
      %p91 = scmp.ne.s32.totalorder %s79, %s80
      %p92 = scmp.eq.s32.totalorder %s23, 1
      %p93 = por %p91, %p92
      %p95 = scmp.ne.s32.totalorder %s80, %s94
      %p96 = scmp.eq.s32.totalorder %s23, 0
      %p97 = por %p95, %p96
      %s99 = sadd.s32 %s98, 1
      %p102 = scmp.eq.s32.totalorder %s17, 1
      %p103 = scmp.ne.s32.totalorder %s98, %s100
      %p104 = scmp.eq.s32.totalorder %s17, 0
      %p105 = por %p103, %p104
      %p106 = scmp.ne.s32.totalorder %s98, %s100
      %p107 = scmp.eq.s32.totalorder %s22, 1
      %p108 = por %p106, %p107
      %p109 = scmp.ne.s32.totalorder %s100, %s101
      %p110 = scmp.eq.s32.totalorder %s22, 0
      %p111 = por %p109, %p110
      %p112 = scmp.ne.s32.totalorder %s100, %s101
      %p113 = scmp.eq.s32.totalorder %s23, 1
      %p114 = por %p112, %p113
      %p116 = scmp.ne.s32.totalorder %s101, %s115
      %p117 = scmp.eq.s32.totalorder %s23, 0
      %p118 = por %p116, %p117
      %s120 = sadd.s32 %s119, 1
      %p123 = scmp.eq.s32.totalorder %s17, 1
      %p124 = scmp.ne.s32.totalorder %s119, %s121
      %p125 = scmp.eq.s32.totalorder %s17, 0
      %p126 = por %p124, %p125
      %p127 = scmp.ne.s32.totalorder %s119, %s121
      %p128 = scmp.eq.s32.totalorder %s22, 1
      %p129 = por %p127, %p128
      %p130 = scmp.ne.s32.totalorder %s121, %s122
      %p131 = scmp.eq.s32.totalorder %s22, 0
      %p132 = por %p130, %p131
      %p133 = scmp.ne.s32.totalorder %s121, %s122
      %p134 = scmp.eq.s32.totalorder %s23, 1
      %p135 = por %p133, %p134
      %p137 = scmp.ne.s32.totalorder %s122, %s136
      %p138 = scmp.eq.s32.totalorder %s23, 0
      %p139 = por %p137, %p138
      %s140 = ssub.s32 %s17, %s24
      %p141 = scmp.eq.s32.totalorder %s140, 0
      %s143 = sadd.s32 %s142, 1
      %s144 = scalar_select %p141, %s142, %s143
      %p147 = pneg %p141
      %p148 = scmp.eq.s32.totalorder %s17, 1
      %p149 = por %p147, %p148
      %p150 = scmp.ne.s32.totalorder %s142, %s145
      %p151 = scmp.eq.s32.totalorder %s17, 0
      %p152 = por %p150, %p151
      %p153 = scmp.ne.s32.totalorder %s142, %s145
      %p154 = scmp.eq.s32.totalorder %s22, 1
      %p155 = por %p153, %p154
      %p156 = scmp.ne.s32.totalorder %s145, %s146
      %p157 = scmp.eq.s32.totalorder %s22, 0
      %p158 = por %p156, %p157
      %p159 = scmp.ne.s32.totalorder %s145, %s146
      %p160 = scmp.eq.s32.totalorder %s23, 1
      %p161 = por %p159, %p160
      %p163 = scmp.ne.s32.totalorder %s146, %s162
      %p164 = scmp.eq.s32.totalorder %s23, 0
      %p165 = por %p163, %p164
      %p166 = scmp.le.s32.totalorder 1, %s17
      %p167 = scmp.lt.s32.totalorder %s17, 3
      %p168 = pnand %p166, %p167
      %p169 = pneg %p168
      // Predicated region
      $region9: #{attention_forward.1} parent=5 // pred_check
        _
      $region10: #{attention_forward.1} parent=5 // pred_check_branch
        %171 = sbr.rel (%p168) target = $region12
      $region11: #{attention_forward.1} parent=5 // pred_region
        %s172 = ssub.s32 %s17, 1
        // Predicated region
        $region13: #{attention_forward.1} parent=11 // pred_check
          %p173 = pneg %p90
        $region14: #{attention_forward.1} parent=11 // pred_check_branch
          %175 = sbr.rel (%p173) target = $region16
        $region15: #{attention_forward.1} parent=11 // pred_region
          _
        $region16: #{attention_forward.1} parent=11 // pred_fallthru
          _
        // Predicated region
        $region17: #{attention_forward.1} parent=11 // pred_check
          %p176 = pneg %p111
        $region18: #{attention_forward.1} parent=11 // pred_check_branch
          %178 = sbr.rel (%p176) target = $region20
        $region19: #{attention_forward.1} parent=11 // pred_region
          _
        $region20: #{attention_forward.1} parent=11 // pred_fallthru
          _
        // Predicated region
        $region21: #{attention_forward.1} parent=11 // pred_check
          %p179 = pneg %p132
        $region22: #{attention_forward.1} parent=11 // pred_check_branch
          %181 = sbr.rel (%p179) target = $region24
        $region23: #{attention_forward.1} parent=11 // pred_region
          _
        $region24: #{attention_forward.1} parent=11 // pred_fallthru
          _
      $region12: #{attention_forward.1} parent=5 // pred_fallthru
        _
      %p182 = scmp.lt.s32.totalorder %s17, 2
      // Predicated region
      $region25: #{attention_forward.1} parent=5 // pred_check
        %p183 = pneg %p182
      $region26: #{attention_forward.1} parent=5 // pred_check_branch
        %185 = sbr.rel (%p183) target = $region28
      $region27: #{attention_forward.1} parent=5 // pred_region
        // Predicated region
        $region29: #{attention_forward.1} parent=27 // pred_check
          %p186 = pneg %p37
        $region30: #{attention_forward.1} parent=27 // pred_check_branch
          %188 = sbr.rel (%p186) target = $region32
        $region31: #{attention_forward.1} parent=27 // pred_region
          %s189 = sand.u32 %s27, 1
          %s190 = scalar_lea.sflag [#allocation3], %s189
          %s191 = sand.u32 %s27, 1
          %s192 = smul.addr %s191, 1024
          %s193 = scalar_lea.vmem [#allocation2], %s192
          %s194 = smul.u32 256, %s17
          %s196 = ssub.s32 16384, 16384
          %197 = vsyncadd %s190, %s196
          %s198 = smul.addr %s194, 64
          %s199 = scalar_lea.hbm %s0, %s198
          %s200 = sshll.u32 %s193, 4
          %s201 = int_to_ptr.vmem [resolvable:$true] %s200
          %206 = dma.hbm_to_vmem [thread:$0]  %s199, 16384, %s201, %s190, 64, 64, 4
        $region32: #{attention_forward.1} parent=27 // pred_fallthru
          _
        // Predicated region
        $region33: #{attention_forward.1} parent=27 // pred_check
          %p207 = pneg %p63
        $region34: #{attention_forward.1} parent=27 // pred_check_branch
          %209 = sbr.rel (%p207) target = $region36
        $region35: #{attention_forward.1} parent=27 // pred_region
          %s210 = smul.u32 2, %s17
          %p211 = scmp.lt.s32.totalorder %s210, 3
          %s212 = scalar_select %p211, %s210, 3
          %s213 = smul.addr %s212, 8
          %s214 = scalar_lea.vmem %s1, %s213
          %s215 = smul.u32 2, %s17
        $region36: #{attention_forward.1} parent=27 // pred_fallthru
          _
      $region28: #{attention_forward.1} parent=5 // pred_fallthru
        _
      %p216 = scmp.le.s32.totalorder 1, %s17
      %p217 = scmp.lt.s32.totalorder %s17, 3
      %p218 = pnand %p216, %p217
      %p219 = pneg %p218
      // Predicated region
      $region37: #{attention_forward.1} parent=5 // pred_check
        _
      $region38: #{attention_forward.1} parent=5 // pred_check_branch
        %221 = sbr.rel (%p218) target = $region40
      $region39: #{attention_forward.1} parent=5 // pred_region
        %s222 = ssub.s32 %s17, 1
        %s223 = sand.u32 %s30, 1
        %s224 = scalar_lea.sflag [#allocation3], %s223
        %s225 = sand.u32 %s30, 1
        %s226 = smul.addr %s225, 1024
        %s227 = scalar_lea.vmem [#allocation2], %s226
        // Predicated region
        $region41: #{attention_forward.1} parent=39 // pred_check
          %p228 = pneg %p43
        $region42: #{attention_forward.1} parent=39 // pred_check_branch
          %230 = sbr.rel (%p228) target = $region44
        $region43: #{attention_forward.1} parent=39 // pred_region
          %231 = dma.done %s224, 16384
        $region44: #{attention_forward.1} parent=39 // pred_fallthru
          _
        %s232 = sand.u32 %s30, 1
        %s233 = scalar_lea.sflag [#allocation3], %s232
        %s234 = sand.u32 %s30, 1
        %s235 = smul.addr %s234, 1024
        %s236 = scalar_lea.vmem [#allocation2], %s235
        %p237 = pneg %p43
        %p238 = pneg %p40
        %s239 = smul.u32 2, %s22
        %p240 = scmp.lt.s32.totalorder %s239, 3
        %s241 = scalar_select %p240, %s239, 3
        %s242 = smul.addr %s241, 8
        %s243 = scalar_lea.vmem %s1, %s242
        %p244 = pneg %p69
        %p245 = pneg %p66
        %p246 = pneg %p90
        %p247 = pneg %p87
        %p248 = pneg %p111
        %p249 = pneg %p108
        %p250 = pneg %p132
        %p251 = pneg %p129
        %p252 = pneg %p158
        %p253 = pneg %p155
        %s254 = sand.u32 %s145, 1
        %s255 = scalar_lea.sflag [#allocation4], %s254
        %s256 = sand.u32 %s145, 1
        %s257 = smul.addr %s256, 16
        %s258 = scalar_lea.vmem [#allocation5], %s257
        %s259 = smul.u32 256, %s22
        %s260 = smul.u32 2, %s22
        %p261 = scmp.lt.s32.totalorder %s260, 3
        %s262 = scalar_select %p261, %s260, 3
        %s263 = smul.addr %s262, 8
        %s264 = scalar_lea.vmem %s1, %s263
        %s265 = smul.u32 2, %s22
        %s266 = smul.u32 2, %s22
        %v268 = vld [vmem:[%s227] sm:$0xf]
        %v269 = vld [vmem:[%s227 + $0x4] sm:$0xf]
        %v270 = vld [vmem:[%s227 + $0x8] sm:$0xf]
        %v271 = vld [vmem:[%s227 + $0xc] sm:$0xf]
        %v272 = vld [vmem:[%s227 + $0x10] sm:$0xf]
        %v273 = vld [vmem:[%s227 + $0x14] sm:$0xf]
        %v274 = vld [vmem:[%s227 + $0x18] sm:$0xf]
        %v275 = vld [vmem:[%s227 + $0x1c] sm:$0xf]
        %v276 = vld [vmem:[%s227 + $0x20] sm:$0xf]
        %v277 = vld [vmem:[%s227 + $0x24] sm:$0xf]
        %v278 = vld [vmem:[%s227 + $0x28] sm:$0xf]
        %v279 = vld [vmem:[%s227 + $0x2c] sm:$0xf]
        %v280 = vld [vmem:[%s227 + $0x30] sm:$0xf]
        %v281 = vld [vmem:[%s227 + $0x34] sm:$0xf]
        %v282 = vld [vmem:[%s227 + $0x38] sm:$0xf]
        %v283 = vld [vmem:[%s227 + $0x3c] sm:$0xf]
        %v284 = vld [vmem:[%s227 + $0x40] sm:$0xf]
        %v285 = vld [vmem:[%s227 + $0x44] sm:$0xf]
        %v286 = vld [vmem:[%s227 + $0x48] sm:$0xf]
        %v287 = vld [vmem:[%s227 + $0x4c] sm:$0xf]
        %v288 = vld [vmem:[%s227 + $0x50] sm:$0xf]
        %v289 = vld [vmem:[%s227 + $0x54] sm:$0xf]
        %v290 = vld [vmem:[%s227 + $0x58] sm:$0xf]
        %v291 = vld [vmem:[%s227 + $0x5c] sm:$0xf]
        %v292 = vld [vmem:[%s227 + $0x60] sm:$0xf]
        %v293 = vld [vmem:[%s227 + $0x64] sm:$0xf]
        %v294 = vld [vmem:[%s227 + $0x68] sm:$0xf]
        %v295 = vld [vmem:[%s227 + $0x6c] sm:$0xf]
        %v296 = vld [vmem:[%s227 + $0x70] sm:$0xf]
        %v297 = vld [vmem:[%s227 + $0x74] sm:$0xf]
        %v298 = vld [vmem:[%s227 + $0x78] sm:$0xf]
        %v299 = vld [vmem:[%s227 + $0x7c] sm:$0xf]
        %v300 = vld [vmem:[%s227 + $0x80] sm:$0xf]
        %v301 = vld [vmem:[%s227 + $0x84] sm:$0xf]
        %v302 = vld [vmem:[%s227 + $0x88] sm:$0xf]
        %v303 = vld [vmem:[%s227 + $0x8c] sm:$0xf]
        %v304 = vld [vmem:[%s227 + $0x90] sm:$0xf]
        %v305 = vld [vmem:[%s227 + $0x94] sm:$0xf]
        %v306 = vld [vmem:[%s227 + $0x98] sm:$0xf]
        %v307 = vld [vmem:[%s227 + $0x9c] sm:$0xf]
        %v308 = vld [vmem:[%s227 + $0xa0] sm:$0xf]
        %v309 = vld [vmem:[%s227 + $0xa4] sm:$0xf]
        %v310 = vld [vmem:[%s227 + $0xa8] sm:$0xf]
        %v311 = vld [vmem:[%s227 + $0xac] sm:$0xf]
        %v312 = vld [vmem:[%s227 + $0xb0] sm:$0xf]
        %v313 = vld [vmem:[%s227 + $0xb4] sm:$0xf]
        %v314 = vld [vmem:[%s227 + $0xb8] sm:$0xf]
        %v315 = vld [vmem:[%s227 + $0xbc] sm:$0xf]
        %v316 = vld [vmem:[%s227 + $0xc0] sm:$0xf]
        %v317 = vld [vmem:[%s227 + $0xc4] sm:$0xf]
        %v318 = vld [vmem:[%s227 + $0xc8] sm:$0xf]
        %v319 = vld [vmem:[%s227 + $0xcc] sm:$0xf]
        %v320 = vld [vmem:[%s227 + $0xd0] sm:$0xf]
        %v321 = vld [vmem:[%s227 + $0xd4] sm:$0xf]
        %v322 = vld [vmem:[%s227 + $0xd8] sm:$0xf]
        %v323 = vld [vmem:[%s227 + $0xdc] sm:$0xf]
        %v324 = vld [vmem:[%s227 + $0xe0] sm:$0xf]
        %v325 = vld [vmem:[%s227 + $0xe4] sm:$0xf]
        %v326 = vld [vmem:[%s227 + $0xe8] sm:$0xf]
        %v327 = vld [vmem:[%s227 + $0xec] sm:$0xf]
        %v328 = vld [vmem:[%s227 + $0xf0] sm:$0xf]
        %v329 = vld [vmem:[%s227 + $0xf4] sm:$0xf]
        %v330 = vld [vmem:[%s227 + $0xf8] sm:$0xf]
        %v331 = vld [vmem:[%s227 + $0xfc] sm:$0xf]
        %v332 = vld [vmem:[%s227 + $0x100] sm:$0xf]
        %v333 = vld [vmem:[%s227 + $0x104] sm:$0xf]
        %v334 = vld [vmem:[%s227 + $0x108] sm:$0xf]
        %v335 = vld [vmem:[%s227 + $0x10c] sm:$0xf]
        %v336 = vld [vmem:[%s227 + $0x110] sm:$0xf]
        %v337 = vld [vmem:[%s227 + $0x114] sm:$0xf]
        %v338 = vld [vmem:[%s227 + $0x118] sm:$0xf]
        %v339 = vld [vmem:[%s227 + $0x11c] sm:$0xf]
        %v340 = vld [vmem:[%s227 + $0x120] sm:$0xf]
        %v341 = vld [vmem:[%s227 + $0x124] sm:$0xf]
        %v342 = vld [vmem:[%s227 + $0x128] sm:$0xf]
        %v343 = vld [vmem:[%s227 + $0x12c] sm:$0xf]
        %v344 = vld [vmem:[%s227 + $0x130] sm:$0xf]
        %v345 = vld [vmem:[%s227 + $0x134] sm:$0xf]
        %v346 = vld [vmem:[%s227 + $0x138] sm:$0xf]
        %v347 = vld [vmem:[%s227 + $0x13c] sm:$0xf]
        %v348 = vld [vmem:[%s227 + $0x140] sm:$0xf]
        %v349 = vld [vmem:[%s227 + $0x144] sm:$0xf]
        %v350 = vld [vmem:[%s227 + $0x148] sm:$0xf]
        %v351 = vld [vmem:[%s227 + $0x14c] sm:$0xf]
        %v352 = vld [vmem:[%s227 + $0x150] sm:$0xf]
        %v353 = vld [vmem:[%s227 + $0x154] sm:$0xf]
        %v354 = vld [vmem:[%s227 + $0x158] sm:$0xf]
        %v355 = vld [vmem:[%s227 + $0x15c] sm:$0xf]
        %v356 = vld [vmem:[%s227 + $0x160] sm:$0xf]
        %v357 = vld [vmem:[%s227 + $0x164] sm:$0xf]
        %v358 = vld [vmem:[%s227 + $0x168] sm:$0xf]
        %v359 = vld [vmem:[%s227 + $0x16c] sm:$0xf]
        %v360 = vld [vmem:[%s227 + $0x170] sm:$0xf]
        %v361 = vld [vmem:[%s227 + $0x174] sm:$0xf]
        %v362 = vld [vmem:[%s227 + $0x178] sm:$0xf]
        %v363 = vld [vmem:[%s227 + $0x17c] sm:$0xf]
        %v364 = vld [vmem:[%s227 + $0x180] sm:$0xf]
        %v365 = vld [vmem:[%s227 + $0x184] sm:$0xf]
        %v366 = vld [vmem:[%s227 + $0x188] sm:$0xf]
        %v367 = vld [vmem:[%s227 + $0x18c] sm:$0xf]
        %v368 = vld [vmem:[%s227 + $0x190] sm:$0xf]
        %v369 = vld [vmem:[%s227 + $0x194] sm:$0xf]
        %v370 = vld [vmem:[%s227 + $0x198] sm:$0xf]
        %v371 = vld [vmem:[%s227 + $0x19c] sm:$0xf]
        %v372 = vld [vmem:[%s227 + $0x1a0] sm:$0xf]
        %v373 = vld [vmem:[%s227 + $0x1a4] sm:$0xf]
        %v374 = vld [vmem:[%s227 + $0x1a8] sm:$0xf]
        %v375 = vld [vmem:[%s227 + $0x1ac] sm:$0xf]
        %v376 = vld [vmem:[%s227 + $0x1b0] sm:$0xf]
        %v377 = vld [vmem:[%s227 + $0x1b4] sm:$0xf]
        %v378 = vld [vmem:[%s227 + $0x1b8] sm:$0xf]
        %v379 = vld [vmem:[%s227 + $0x1bc] sm:$0xf]
        %v380 = vld [vmem:[%s227 + $0x1c0] sm:$0xf]
        %v381 = vld [vmem:[%s227 + $0x1c4] sm:$0xf]
        %v382 = vld [vmem:[%s227 + $0x1c8] sm:$0xf]
        %v383 = vld [vmem:[%s227 + $0x1cc] sm:$0xf]
        %v384 = vld [vmem:[%s227 + $0x1d0] sm:$0xf]
        %v385 = vld [vmem:[%s227 + $0x1d4] sm:$0xf]
        %v386 = vld [vmem:[%s227 + $0x1d8] sm:$0xf]
        %v387 = vld [vmem:[%s227 + $0x1dc] sm:$0xf]
        %v388 = vld [vmem:[%s227 + $0x1e0] sm:$0xf]
        %v389 = vld [vmem:[%s227 + $0x1e4] sm:$0xf]
        %v390 = vld [vmem:[%s227 + $0x1e8] sm:$0xf]
        %v391 = vld [vmem:[%s227 + $0x1ec] sm:$0xf]
        %v392 = vld [vmem:[%s227 + $0x1f0] sm:$0xf]
        %v393 = vld [vmem:[%s227 + $0x1f4] sm:$0xf]
        %v394 = vld [vmem:[%s227 + $0x1f8] sm:$0xf]
        %v395 = vld [vmem:[%s227 + $0x1fc] sm:$0xf]
        %v396 = vld [vmem:[%s227 + $0x200] sm:$0xf]
        %v397 = vld [vmem:[%s227 + $0x204] sm:$0xf]
        %v398 = vld [vmem:[%s227 + $0x208] sm:$0xf]
        %v399 = vld [vmem:[%s227 + $0x20c] sm:$0xf]
        %v400 = vld [vmem:[%s227 + $0x210] sm:$0xf]
        %v401 = vld [vmem:[%s227 + $0x214] sm:$0xf]
        %v402 = vld [vmem:[%s227 + $0x218] sm:$0xf]
        %v403 = vld [vmem:[%s227 + $0x21c] sm:$0xf]
        %v404 = vld [vmem:[%s227 + $0x220] sm:$0xf]
        %v405 = vld [vmem:[%s227 + $0x224] sm:$0xf]
        %v406 = vld [vmem:[%s227 + $0x228] sm:$0xf]
        %v407 = vld [vmem:[%s227 + $0x22c] sm:$0xf]
        %v408 = vld [vmem:[%s227 + $0x230] sm:$0xf]
        %v409 = vld [vmem:[%s227 + $0x234] sm:$0xf]
        %v410 = vld [vmem:[%s227 + $0x238] sm:$0xf]
        %v411 = vld [vmem:[%s227 + $0x23c] sm:$0xf]
        %v412 = vld [vmem:[%s227 + $0x240] sm:$0xf]
        %v413 = vld [vmem:[%s227 + $0x244] sm:$0xf]
        %v414 = vld [vmem:[%s227 + $0x248] sm:$0xf]
        %v415 = vld [vmem:[%s227 + $0x24c] sm:$0xf]
        %v416 = vld [vmem:[%s227 + $0x250] sm:$0xf]
        %v417 = vld [vmem:[%s227 + $0x254] sm:$0xf]
        %v418 = vld [vmem:[%s227 + $0x258] sm:$0xf]
        %v419 = vld [vmem:[%s227 + $0x25c] sm:$0xf]
        %v420 = vld [vmem:[%s227 + $0x260] sm:$0xf]
        %v421 = vld [vmem:[%s227 + $0x264] sm:$0xf]
        %v422 = vld [vmem:[%s227 + $0x268] sm:$0xf]
        %v423 = vld [vmem:[%s227 + $0x26c] sm:$0xf]
        %v424 = vld [vmem:[%s227 + $0x270] sm:$0xf]
        %v425 = vld [vmem:[%s227 + $0x274] sm:$0xf]
        %v426 = vld [vmem:[%s227 + $0x278] sm:$0xf]
        %v427 = vld [vmem:[%s227 + $0x27c] sm:$0xf]
        %v428 = vld [vmem:[%s227 + $0x280] sm:$0xf]
        %v429 = vld [vmem:[%s227 + $0x284] sm:$0xf]
        %v430 = vld [vmem:[%s227 + $0x288] sm:$0xf]
        %v431 = vld [vmem:[%s227 + $0x28c] sm:$0xf]
        %v432 = vld [vmem:[%s227 + $0x290] sm:$0xf]
        %v433 = vld [vmem:[%s227 + $0x294] sm:$0xf]
        %v434 = vld [vmem:[%s227 + $0x298] sm:$0xf]
        %v435 = vld [vmem:[%s227 + $0x29c] sm:$0xf]
        %v436 = vld [vmem:[%s227 + $0x2a0] sm:$0xf]
        %v437 = vld [vmem:[%s227 + $0x2a4] sm:$0xf]
        %v438 = vld [vmem:[%s227 + $0x2a8] sm:$0xf]
        %v439 = vld [vmem:[%s227 + $0x2ac] sm:$0xf]
        %v440 = vld [vmem:[%s227 + $0x2b0] sm:$0xf]
        %v441 = vld [vmem:[%s227 + $0x2b4] sm:$0xf]
        %v442 = vld [vmem:[%s227 + $0x2b8] sm:$0xf]
        %v443 = vld [vmem:[%s227 + $0x2bc] sm:$0xf]
        %v444 = vld [vmem:[%s227 + $0x2c0] sm:$0xf]
        %v445 = vld [vmem:[%s227 + $0x2c4] sm:$0xf]
        %v446 = vld [vmem:[%s227 + $0x2c8] sm:$0xf]
        %v447 = vld [vmem:[%s227 + $0x2cc] sm:$0xf]
        %v448 = vld [vmem:[%s227 + $0x2d0] sm:$0xf]
        %v449 = vld [vmem:[%s227 + $0x2d4] sm:$0xf]
        %v450 = vld [vmem:[%s227 + $0x2d8] sm:$0xf]
        %v451 = vld [vmem:[%s227 + $0x2dc] sm:$0xf]
        %v452 = vld [vmem:[%s227 + $0x2e0] sm:$0xf]
        %v453 = vld [vmem:[%s227 + $0x2e4] sm:$0xf]
        %v454 = vld [vmem:[%s227 + $0x2e8] sm:$0xf]
        %v455 = vld [vmem:[%s227 + $0x2ec] sm:$0xf]
        %v456 = vld [vmem:[%s227 + $0x2f0] sm:$0xf]
        %v457 = vld [vmem:[%s227 + $0x2f4] sm:$0xf]
        %v458 = vld [vmem:[%s227 + $0x2f8] sm:$0xf]
        %v459 = vld [vmem:[%s227 + $0x2fc] sm:$0xf]
        %v460 = vld [vmem:[%s227 + $0x300] sm:$0xf]
        %v461 = vld [vmem:[%s227 + $0x304] sm:$0xf]
        %v462 = vld [vmem:[%s227 + $0x308] sm:$0xf]
        %v463 = vld [vmem:[%s227 + $0x30c] sm:$0xf]
        %v464 = vld [vmem:[%s227 + $0x310] sm:$0xf]
        %v465 = vld [vmem:[%s227 + $0x314] sm:$0xf]
        %v466 = vld [vmem:[%s227 + $0x318] sm:$0xf]
        %v467 = vld [vmem:[%s227 + $0x31c] sm:$0xf]
        %v468 = vld [vmem:[%s227 + $0x320] sm:$0xf]
        %v469 = vld [vmem:[%s227 + $0x324] sm:$0xf]
        %v470 = vld [vmem:[%s227 + $0x328] sm:$0xf]
        %v471 = vld [vmem:[%s227 + $0x32c] sm:$0xf]
        %v472 = vld [vmem:[%s227 + $0x330] sm:$0xf]
        %v473 = vld [vmem:[%s227 + $0x334] sm:$0xf]
        %v474 = vld [vmem:[%s227 + $0x338] sm:$0xf]
        %v475 = vld [vmem:[%s227 + $0x33c] sm:$0xf]
        %v476 = vld [vmem:[%s227 + $0x340] sm:$0xf]
        %v477 = vld [vmem:[%s227 + $0x344] sm:$0xf]
        %v478 = vld [vmem:[%s227 + $0x348] sm:$0xf]
        %v479 = vld [vmem:[%s227 + $0x34c] sm:$0xf]
        %v480 = vld [vmem:[%s227 + $0x350] sm:$0xf]
        %v481 = vld [vmem:[%s227 + $0x354] sm:$0xf]
        %v482 = vld [vmem:[%s227 + $0x358] sm:$0xf]
        %v483 = vld [vmem:[%s227 + $0x35c] sm:$0xf]
        %v484 = vld [vmem:[%s227 + $0x360] sm:$0xf]
        %v485 = vld [vmem:[%s227 + $0x364] sm:$0xf]
        %v486 = vld [vmem:[%s227 + $0x368] sm:$0xf]
        %v487 = vld [vmem:[%s227 + $0x36c] sm:$0xf]
        %v488 = vld [vmem:[%s227 + $0x370] sm:$0xf]
        %v489 = vld [vmem:[%s227 + $0x374] sm:$0xf]
        %v490 = vld [vmem:[%s227 + $0x378] sm:$0xf]
        %v491 = vld [vmem:[%s227 + $0x37c] sm:$0xf]
        %v492 = vld [vmem:[%s227 + $0x380] sm:$0xf]
        %v493 = vld [vmem:[%s227 + $0x384] sm:$0xf]
        %v494 = vld [vmem:[%s227 + $0x388] sm:$0xf]
        %v495 = vld [vmem:[%s227 + $0x38c] sm:$0xf]
        %v496 = vld [vmem:[%s227 + $0x390] sm:$0xf]
        %v497 = vld [vmem:[%s227 + $0x394] sm:$0xf]
        %v498 = vld [vmem:[%s227 + $0x398] sm:$0xf]
        %v499 = vld [vmem:[%s227 + $0x39c] sm:$0xf]
        %v500 = vld [vmem:[%s227 + $0x3a0] sm:$0xf]
        %v501 = vld [vmem:[%s227 + $0x3a4] sm:$0xf]
        %v502 = vld [vmem:[%s227 + $0x3a8] sm:$0xf]
        %v503 = vld [vmem:[%s227 + $0x3ac] sm:$0xf]
        %v504 = vld [vmem:[%s227 + $0x3b0] sm:$0xf]
        %v505 = vld [vmem:[%s227 + $0x3b4] sm:$0xf]
        %v506 = vld [vmem:[%s227 + $0x3b8] sm:$0xf]
        %v507 = vld [vmem:[%s227 + $0x3bc] sm:$0xf]
        %v508 = vld [vmem:[%s227 + $0x3c0] sm:$0xf]
        %v509 = vld [vmem:[%s227 + $0x3c4] sm:$0xf]
        %v510 = vld [vmem:[%s227 + $0x3c8] sm:$0xf]
        %v511 = vld [vmem:[%s227 + $0x3cc] sm:$0xf]
        %v512 = vld [vmem:[%s227 + $0x3d0] sm:$0xf]
        %v513 = vld [vmem:[%s227 + $0x3d4] sm:$0xf]
        %v514 = vld [vmem:[%s227 + $0x3d8] sm:$0xf]
        %v515 = vld [vmem:[%s227 + $0x3dc] sm:$0xf]
        %v516 = vld [vmem:[%s227 + $0x3e0] sm:$0xf]
        %v517 = vld [vmem:[%s227 + $0x3e4] sm:$0xf]
        %v518 = vld [vmem:[%s227 + $0x3e8] sm:$0xf]
        %v519 = vld [vmem:[%s227 + $0x3ec] sm:$0xf]
        %v520 = vld [vmem:[%s227 + $0x3f0] sm:$0xf]
        %v521 = vld [vmem:[%s227 + $0x3f4] sm:$0xf]
        %v522 = vld [vmem:[%s227 + $0x3f8] sm:$0xf]
        %v523 = vld [vmem:[%s227 + $0x3fc] sm:$0xf]
        %v524 = vld [vmem:[%s3] sm:$0xf]
        %v525 = vld [vmem:[%s3 + $0x4] sm:$0xf]
        %v526 = vld [vmem:[%s3 + $0x8] sm:$0xf]
        %v527 = vld [vmem:[%s3 + $0xc] sm:$0xf]
        %v528 = vld [vmem:[%s3 + $0x10] sm:$0xf]
        %v529 = vld [vmem:[%s3 + $0x14] sm:$0xf]
        %v530 = vld [vmem:[%s3 + $0x18] sm:$0xf]
        %v531 = vld [vmem:[%s3 + $0x1c] sm:$0xf]
        %v532 = vld [vmem:[%s3 + $0x20] sm:$0xf]
        %v533 = vld [vmem:[%s3 + $0x24] sm:$0xf]
        %v534 = vld [vmem:[%s3 + $0x28] sm:$0xf]
        %v535 = vld [vmem:[%s3 + $0x2c] sm:$0xf]
        %v536 = vld [vmem:[%s3 + $0x30] sm:$0xf]
        %v537 = vld [vmem:[%s3 + $0x34] sm:$0xf]
        %v538 = vld [vmem:[%s3 + $0x38] sm:$0xf]
        %v539 = vld [vmem:[%s3 + $0x3c] sm:$0xf]
        %v540 = vld [vmem:[%s2] sm:$0xff]
        %v797 = vunpack.c.l.b16 %v268
        %v798 = vunpack.c.l.b16 %v269
        %v799 = vunpack.c.l.b16 %v270
        %v800 = vunpack.c.l.b16 %v271
        %v801 = vunpack.c.l.b16 %v272
        %v802 = vunpack.c.l.b16 %v273
        %v803 = vunpack.c.l.b16 %v274
        %v804 = vunpack.c.l.b16 %v275
        %v805 = vunpack.c.l.b16 %v276
        %v806 = vunpack.c.l.b16 %v277
        %v807 = vunpack.c.l.b16 %v278
        %v808 = vunpack.c.l.b16 %v279
        %v809 = vunpack.c.l.b16 %v280
        %v810 = vunpack.c.l.b16 %v281
        %v811 = vunpack.c.l.b16 %v282
        %v812 = vunpack.c.l.b16 %v283
        %v813 = vunpack.c.l.b16 %v284
        %v814 = vunpack.c.l.b16 %v285
        %v815 = vunpack.c.l.b16 %v286
        %v816 = vunpack.c.l.b16 %v287
        %v817 = vunpack.c.l.b16 %v288
        %v818 = vunpack.c.l.b16 %v289
        %v819 = vunpack.c.l.b16 %v290
        %v820 = vunpack.c.l.b16 %v291
        %v821 = vunpack.c.l.b16 %v292
        %v822 = vunpack.c.l.b16 %v293
        %v823 = vunpack.c.l.b16 %v294
        %v824 = vunpack.c.l.b16 %v295
        %v825 = vunpack.c.l.b16 %v296
        %v826 = vunpack.c.l.b16 %v297
        %v827 = vunpack.c.l.b16 %v298
        %v828 = vunpack.c.l.b16 %v299
        %v829 = vunpack.c.l.b16 %v300
        %v830 = vunpack.c.l.b16 %v301
        %v831 = vunpack.c.l.b16 %v302
        %v832 = vunpack.c.l.b16 %v303
        %v833 = vunpack.c.l.b16 %v304
        %v834 = vunpack.c.l.b16 %v305
        %v835 = vunpack.c.l.b16 %v306
        %v836 = vunpack.c.l.b16 %v307
        %v837 = vunpack.c.l.b16 %v308
        %v838 = vunpack.c.l.b16 %v309
        %v839 = vunpack.c.l.b16 %v310
        %v840 = vunpack.c.l.b16 %v311
        %v841 = vunpack.c.l.b16 %v312
        %v842 = vunpack.c.l.b16 %v313
        %v843 = vunpack.c.l.b16 %v314
        %v844 = vunpack.c.l.b16 %v315
        %v845 = vunpack.c.l.b16 %v316
        %v846 = vunpack.c.l.b16 %v317
        %v847 = vunpack.c.l.b16 %v318
        %v848 = vunpack.c.l.b16 %v319
        %v849 = vunpack.c.l.b16 %v320
        %v850 = vunpack.c.l.b16 %v321
        %v851 = vunpack.c.l.b16 %v322
        %v852 = vunpack.c.l.b16 %v323
        %v853 = vunpack.c.l.b16 %v324
        %v854 = vunpack.c.l.b16 %v325
        %v855 = vunpack.c.l.b16 %v326
        %v856 = vunpack.c.l.b16 %v327
        %v857 = vunpack.c.l.b16 %v328
        %v858 = vunpack.c.l.b16 %v329
        %v859 = vunpack.c.l.b16 %v330
        %v860 = vunpack.c.l.b16 %v331
        %v861 = vunpack.c.l.b16 %v332
        %v862 = vunpack.c.l.b16 %v333
        %v863 = vunpack.c.l.b16 %v334
        %v864 = vunpack.c.l.b16 %v335
        %v865 = vunpack.c.l.b16 %v336
        %v866 = vunpack.c.l.b16 %v337
        %v867 = vunpack.c.l.b16 %v338
        %v868 = vunpack.c.l.b16 %v339
        %v869 = vunpack.c.l.b16 %v340
        %v870 = vunpack.c.l.b16 %v341
        %v871 = vunpack.c.l.b16 %v342
        %v872 = vunpack.c.l.b16 %v343
        %v873 = vunpack.c.l.b16 %v344
        %v874 = vunpack.c.l.b16 %v345
        %v875 = vunpack.c.l.b16 %v346
        %v876 = vunpack.c.l.b16 %v347
        %v877 = vunpack.c.l.b16 %v348
        %v878 = vunpack.c.l.b16 %v349
        %v879 = vunpack.c.l.b16 %v350
        %v880 = vunpack.c.l.b16 %v351
        %v881 = vunpack.c.l.b16 %v352
        %v882 = vunpack.c.l.b16 %v353
        %v883 = vunpack.c.l.b16 %v354
        %v884 = vunpack.c.l.b16 %v355
        %v885 = vunpack.c.l.b16 %v356
        %v886 = vunpack.c.l.b16 %v357
        %v887 = vunpack.c.l.b16 %v358
        %v888 = vunpack.c.l.b16 %v359
        %v889 = vunpack.c.l.b16 %v360
        %v890 = vunpack.c.l.b16 %v361
        %v891 = vunpack.c.l.b16 %v362
        %v892 = vunpack.c.l.b16 %v363
        %v893 = vunpack.c.l.b16 %v364
        %v894 = vunpack.c.l.b16 %v365
        %v895 = vunpack.c.l.b16 %v366
        %v896 = vunpack.c.l.b16 %v367
        %v897 = vunpack.c.l.b16 %v368
        %v898 = vunpack.c.l.b16 %v369
        %v899 = vunpack.c.l.b16 %v370
        %v900 = vunpack.c.l.b16 %v371
        %v901 = vunpack.c.l.b16 %v372
        %v902 = vunpack.c.l.b16 %v373
        %v903 = vunpack.c.l.b16 %v374
        %v904 = vunpack.c.l.b16 %v375
        %v905 = vunpack.c.l.b16 %v376
        %v906 = vunpack.c.l.b16 %v377
        %v907 = vunpack.c.l.b16 %v378
        %v908 = vunpack.c.l.b16 %v379
        %v909 = vunpack.c.l.b16 %v380
        %v910 = vunpack.c.l.b16 %v381
        %v911 = vunpack.c.l.b16 %v382
        %v912 = vunpack.c.l.b16 %v383
        %v913 = vunpack.c.l.b16 %v384
        %v914 = vunpack.c.l.b16 %v385
        %v915 = vunpack.c.l.b16 %v386
        %v916 = vunpack.c.l.b16 %v387
        %v917 = vunpack.c.l.b16 %v388
        %v918 = vunpack.c.l.b16 %v389
        %v919 = vunpack.c.l.b16 %v390
        %v920 = vunpack.c.l.b16 %v391
        %v921 = vunpack.c.l.b16 %v392
        %v922 = vunpack.c.l.b16 %v393
        %v923 = vunpack.c.l.b16 %v394
        %v924 = vunpack.c.l.b16 %v395
        %v925 = vunpack.c.l.b16 %v396
        %v926 = vunpack.c.l.b16 %v397
        %v927 = vunpack.c.l.b16 %v398
        %v928 = vunpack.c.l.b16 %v399
        %v929 = vunpack.c.l.b16 %v400
        %v930 = vunpack.c.l.b16 %v401
        %v931 = vunpack.c.l.b16 %v402
        %v932 = vunpack.c.l.b16 %v403
        %v933 = vunpack.c.l.b16 %v404
        %v934 = vunpack.c.l.b16 %v405
        %v935 = vunpack.c.l.b16 %v406
        %v936 = vunpack.c.l.b16 %v407
        %v937 = vunpack.c.l.b16 %v408
        %v938 = vunpack.c.l.b16 %v409
        %v939 = vunpack.c.l.b16 %v410
        %v940 = vunpack.c.l.b16 %v411
        %v941 = vunpack.c.l.b16 %v412
        %v942 = vunpack.c.l.b16 %v413
        %v943 = vunpack.c.l.b16 %v414
        %v944 = vunpack.c.l.b16 %v415
        %v945 = vunpack.c.l.b16 %v416
        %v946 = vunpack.c.l.b16 %v417
        %v947 = vunpack.c.l.b16 %v418
        %v948 = vunpack.c.l.b16 %v419
        %v949 = vunpack.c.l.b16 %v420
        %v950 = vunpack.c.l.b16 %v421
        %v951 = vunpack.c.l.b16 %v422
        %v952 = vunpack.c.l.b16 %v423
        %v953 = vunpack.c.l.b16 %v424
        %v954 = vunpack.c.l.b16 %v425
        %v955 = vunpack.c.l.b16 %v426
        %v956 = vunpack.c.l.b16 %v427
        %v957 = vunpack.c.l.b16 %v428
        %v958 = vunpack.c.l.b16 %v429
        %v959 = vunpack.c.l.b16 %v430
        %v960 = vunpack.c.l.b16 %v431
        %v961 = vunpack.c.l.b16 %v432
        %v962 = vunpack.c.l.b16 %v433
        %v963 = vunpack.c.l.b16 %v434
        %v964 = vunpack.c.l.b16 %v435
        %v965 = vunpack.c.l.b16 %v436
        %v966 = vunpack.c.l.b16 %v437
        %v967 = vunpack.c.l.b16 %v438
        %v968 = vunpack.c.l.b16 %v439
        %v969 = vunpack.c.l.b16 %v440
        %v970 = vunpack.c.l.b16 %v441
        %v971 = vunpack.c.l.b16 %v442
        %v972 = vunpack.c.l.b16 %v443
        %v973 = vunpack.c.l.b16 %v444
        %v974 = vunpack.c.l.b16 %v445
        %v975 = vunpack.c.l.b16 %v446
        %v976 = vunpack.c.l.b16 %v447
        %v977 = vunpack.c.l.b16 %v448
        %v978 = vunpack.c.l.b16 %v449
        %v979 = vunpack.c.l.b16 %v450
        %v980 = vunpack.c.l.b16 %v451
        %v981 = vunpack.c.l.b16 %v452
        %v982 = vunpack.c.l.b16 %v453
        %v983 = vunpack.c.l.b16 %v454
        %v984 = vunpack.c.l.b16 %v455
        %v985 = vunpack.c.l.b16 %v456
        %v986 = vunpack.c.l.b16 %v457
        %v987 = vunpack.c.l.b16 %v458
        %v988 = vunpack.c.l.b16 %v459
        %v989 = vunpack.c.l.b16 %v460
        %v990 = vunpack.c.l.b16 %v461
        %v991 = vunpack.c.l.b16 %v462
        %v992 = vunpack.c.l.b16 %v463
        %v993 = vunpack.c.l.b16 %v464
        %v994 = vunpack.c.l.b16 %v465
        %v995 = vunpack.c.l.b16 %v466
        %v996 = vunpack.c.l.b16 %v467
        %v997 = vunpack.c.l.b16 %v468
        %v998 = vunpack.c.l.b16 %v469
        %v999 = vunpack.c.l.b16 %v470
        %v1000 = vunpack.c.l.b16 %v471
        %v1001 = vunpack.c.l.b16 %v472
        %v1002 = vunpack.c.l.b16 %v473
        %v1003 = vunpack.c.l.b16 %v474
        %v1004 = vunpack.c.l.b16 %v475
        %v1005 = vunpack.c.l.b16 %v476
        %v1006 = vunpack.c.l.b16 %v477
        %v1007 = vunpack.c.l.b16 %v478
        %v1008 = vunpack.c.l.b16 %v479
        %v1009 = vunpack.c.l.b16 %v480
        %v1010 = vunpack.c.l.b16 %v481
        %v1011 = vunpack.c.l.b16 %v482
        %v1012 = vunpack.c.l.b16 %v483
        %v1013 = vunpack.c.l.b16 %v484
        %v1014 = vunpack.c.l.b16 %v485
        %v1015 = vunpack.c.l.b16 %v486
        %v1016 = vunpack.c.l.b16 %v487
        %v1017 = vunpack.c.l.b16 %v488
        %v1018 = vunpack.c.l.b16 %v489
        %v1019 = vunpack.c.l.b16 %v490
        %v1020 = vunpack.c.l.b16 %v491
        %v1021 = vunpack.c.l.b16 %v492
        %v1022 = vunpack.c.l.b16 %v493
        %v1023 = vunpack.c.l.b16 %v494
        %v1024 = vunpack.c.l.b16 %v495
        %v1025 = vunpack.c.l.b16 %v496
        %v1026 = vunpack.c.l.b16 %v497
        %v1027 = vunpack.c.l.b16 %v498
        %v1028 = vunpack.c.l.b16 %v499
        %v1029 = vunpack.c.l.b16 %v500
        %v1030 = vunpack.c.l.b16 %v501
        %v1031 = vunpack.c.l.b16 %v502
        %v1032 = vunpack.c.l.b16 %v503
        %v1033 = vunpack.c.l.b16 %v504
        %v1034 = vunpack.c.l.b16 %v505
        %v1035 = vunpack.c.l.b16 %v506
        %v1036 = vunpack.c.l.b16 %v507
        %v1037 = vunpack.c.l.b16 %v508
        %v1038 = vunpack.c.l.b16 %v509
        %v1039 = vunpack.c.l.b16 %v510
        %v1040 = vunpack.c.l.b16 %v511
        %v1041 = vunpack.c.l.b16 %v512
        %v1042 = vunpack.c.l.b16 %v513
        %v1043 = vunpack.c.l.b16 %v514
        %v1044 = vunpack.c.l.b16 %v515
        %v1045 = vunpack.c.l.b16 %v516
        %v1046 = vunpack.c.l.b16 %v517
        %v1047 = vunpack.c.l.b16 %v518
        %v1048 = vunpack.c.l.b16 %v519
        %v1049 = vunpack.c.l.b16 %v520
        %v1050 = vunpack.c.l.b16 %v521
        %v1051 = vunpack.c.l.b16 %v522
        %v1052 = vunpack.c.l.b16 %v523
        %v1053 = vpack.c.b16 %v798, %v797
        %v1054 = vpack.c.b16 %v800, %v799
        %v1055 = vpack.c.b16 %v802, %v801
        %v1056 = vpack.c.b16 %v804, %v803
        %v1057 = vpack.c.b16 %v806, %v805
        %v1058 = vpack.c.b16 %v808, %v807
        %v1059 = vpack.c.b16 %v810, %v809
        %v1060 = vpack.c.b16 %v812, %v811
        %v1061 = vpack.c.b16 %v814, %v813
        %v1062 = vpack.c.b16 %v816, %v815
        %v1063 = vpack.c.b16 %v818, %v817
        %v1064 = vpack.c.b16 %v820, %v819
        %v1065 = vpack.c.b16 %v822, %v821
        %v1066 = vpack.c.b16 %v824, %v823
        %v1067 = vpack.c.b16 %v826, %v825
        %v1068 = vpack.c.b16 %v828, %v827
        %v1069 = vpack.c.b16 %v830, %v829
        %v1070 = vpack.c.b16 %v832, %v831
        %v1071 = vpack.c.b16 %v834, %v833
        %v1072 = vpack.c.b16 %v836, %v835
        %v1073 = vpack.c.b16 %v838, %v837
        %v1074 = vpack.c.b16 %v840, %v839
        %v1075 = vpack.c.b16 %v842, %v841
        %v1076 = vpack.c.b16 %v844, %v843
        %v1077 = vpack.c.b16 %v846, %v845
        %v1078 = vpack.c.b16 %v848, %v847
        %v1079 = vpack.c.b16 %v850, %v849
        %v1080 = vpack.c.b16 %v852, %v851
        %v1081 = vpack.c.b16 %v854, %v853
        %v1082 = vpack.c.b16 %v856, %v855
        %v1083 = vpack.c.b16 %v858, %v857
        %v1084 = vpack.c.b16 %v860, %v859
        %v1085 = vpack.c.b16 %v862, %v861
        %v1086 = vpack.c.b16 %v864, %v863
        %v1087 = vpack.c.b16 %v866, %v865
        %v1088 = vpack.c.b16 %v868, %v867
        %v1089 = vpack.c.b16 %v870, %v869
        %v1090 = vpack.c.b16 %v872, %v871
        %v1091 = vpack.c.b16 %v874, %v873
        %v1092 = vpack.c.b16 %v876, %v875
        %v1093 = vpack.c.b16 %v878, %v877
        %v1094 = vpack.c.b16 %v880, %v879
        %v1095 = vpack.c.b16 %v882, %v881
        %v1096 = vpack.c.b16 %v884, %v883
        %v1097 = vpack.c.b16 %v886, %v885
        %v1098 = vpack.c.b16 %v888, %v887
        %v1099 = vpack.c.b16 %v890, %v889
        %v1100 = vpack.c.b16 %v892, %v891
        %v1101 = vpack.c.b16 %v894, %v893
        %v1102 = vpack.c.b16 %v896, %v895
        %v1103 = vpack.c.b16 %v898, %v897
        %v1104 = vpack.c.b16 %v900, %v899
        %v1105 = vpack.c.b16 %v902, %v901
        %v1106 = vpack.c.b16 %v904, %v903
        %v1107 = vpack.c.b16 %v906, %v905
        %v1108 = vpack.c.b16 %v908, %v907
        %v1109 = vpack.c.b16 %v910, %v909
        %v1110 = vpack.c.b16 %v912, %v911
        %v1111 = vpack.c.b16 %v914, %v913
        %v1112 = vpack.c.b16 %v916, %v915
        %v1113 = vpack.c.b16 %v918, %v917
        %v1114 = vpack.c.b16 %v920, %v919
        %v1115 = vpack.c.b16 %v922, %v921
        %v1116 = vpack.c.b16 %v924, %v923
        %v1117 = vpack.c.b16 %v926, %v925
        %v1118 = vpack.c.b16 %v928, %v927
        %v1119 = vpack.c.b16 %v930, %v929
        %v1120 = vpack.c.b16 %v932, %v931
        %v1121 = vpack.c.b16 %v934, %v933
        %v1122 = vpack.c.b16 %v936, %v935
        %v1123 = vpack.c.b16 %v938, %v937
        %v1124 = vpack.c.b16 %v940, %v939
        %v1125 = vpack.c.b16 %v942, %v941
        %v1126 = vpack.c.b16 %v944, %v943
        %v1127 = vpack.c.b16 %v946, %v945
        %v1128 = vpack.c.b16 %v948, %v947
        %v1129 = vpack.c.b16 %v950, %v949
        %v1130 = vpack.c.b16 %v952, %v951
        %v1131 = vpack.c.b16 %v954, %v953
        %v1132 = vpack.c.b16 %v956, %v955
        %v1133 = vpack.c.b16 %v958, %v957
        %v1134 = vpack.c.b16 %v960, %v959
        %v1135 = vpack.c.b16 %v962, %v961
        %v1136 = vpack.c.b16 %v964, %v963
        %v1137 = vpack.c.b16 %v966, %v965
        %v1138 = vpack.c.b16 %v968, %v967
        %v1139 = vpack.c.b16 %v970, %v969
        %v1140 = vpack.c.b16 %v972, %v971
        %v1141 = vpack.c.b16 %v974, %v973
        %v1142 = vpack.c.b16 %v976, %v975
        %v1143 = vpack.c.b16 %v978, %v977
        %v1144 = vpack.c.b16 %v980, %v979
        %v1145 = vpack.c.b16 %v982, %v981
        %v1146 = vpack.c.b16 %v984, %v983
        %v1147 = vpack.c.b16 %v986, %v985
        %v1148 = vpack.c.b16 %v988, %v987
        %v1149 = vpack.c.b16 %v990, %v989
        %v1150 = vpack.c.b16 %v992, %v991
        %v1151 = vpack.c.b16 %v994, %v993
        %v1152 = vpack.c.b16 %v996, %v995
        %v1153 = vpack.c.b16 %v998, %v997
        %v1154 = vpack.c.b16 %v1000, %v999
        %v1155 = vpack.c.b16 %v1002, %v1001
        %v1156 = vpack.c.b16 %v1004, %v1003
        %v1157 = vpack.c.b16 %v1006, %v1005
        %v1158 = vpack.c.b16 %v1008, %v1007
        %v1159 = vpack.c.b16 %v1010, %v1009
        %v1160 = vpack.c.b16 %v1012, %v1011
        %v1161 = vpack.c.b16 %v1014, %v1013
        %v1162 = vpack.c.b16 %v1016, %v1015
        %v1163 = vpack.c.b16 %v1018, %v1017
        %v1164 = vpack.c.b16 %v1020, %v1019
        %v1165 = vpack.c.b16 %v1022, %v1021
        %v1166 = vpack.c.b16 %v1024, %v1023
        %v1167 = vpack.c.b16 %v1026, %v1025
        %v1168 = vpack.c.b16 %v1028, %v1027
        %v1169 = vpack.c.b16 %v1030, %v1029
        %v1170 = vpack.c.b16 %v1032, %v1031
        %v1171 = vpack.c.b16 %v1034, %v1033
        %v1172 = vpack.c.b16 %v1036, %v1035
        %v1173 = vpack.c.b16 %v1038, %v1037
        %v1174 = vpack.c.b16 %v1040, %v1039
        %v1175 = vpack.c.b16 %v1042, %v1041
        %v1176 = vpack.c.b16 %v1044, %v1043
        %v1177 = vpack.c.b16 %v1046, %v1045
        %v1178 = vpack.c.b16 %v1048, %v1047
        %v1179 = vpack.c.b16 %v1050, %v1049
        %v1180 = vpack.c.b16 %v1052, %v1051
        %v1325 = vunpack.c.l.b16 %v524
        %v1326 = vunpack.c.l.b16 %v525
        %v1327 = vunpack.c.l.b16 %v526
        %v1328 = vunpack.c.l.b16 %v527
        %v1329 = vunpack.c.l.b16 %v528
        %v1330 = vunpack.c.l.b16 %v529
        %v1331 = vunpack.c.l.b16 %v530
        %v1332 = vunpack.c.l.b16 %v531
        %v1333 = vunpack.c.l.b16 %v532
        %v1334 = vunpack.c.l.b16 %v533
        %v1335 = vunpack.c.l.b16 %v534
        %v1336 = vunpack.c.l.b16 %v535
        %v1337 = vunpack.c.l.b16 %v536
        %v1338 = vunpack.c.l.b16 %v537
        %v1339 = vunpack.c.l.b16 %v538
        %v1340 = vunpack.c.l.b16 %v539
        %v1341 = vpack.c.b16 %v1326, %v1325
        %v1342 = vpack.c.b16 %v1328, %v1327
        %v1343 = vpack.c.b16 %v1330, %v1329
        %v1344 = vpack.c.b16 %v1332, %v1331
        %v1345 = vpack.c.b16 %v1334, %v1333
        %v1346 = vpack.c.b16 %v1336, %v1335
        %v1347 = vpack.c.b16 %v1338, %v1337
        %v1348 = vpack.c.b16 %v1340, %v1339
        %1357 = vmatprep.subr.bf16.mxu0 0
        %1358 = vmatpush1.bf16.msra.mxu0 %v1348
        %1359 = vmatprep.subr.bf16.mxu0 0
        %1360 = vmatpush1.bf16.msra.mxu0 %v1347
        %1361 = vmatprep.subr.bf16.mxu0 0
        %1362 = vmatpush1.bf16.msra.mxu0 %v1346
        %1363 = vmatprep.subr.bf16.mxu0 0
        %1364 = vmatpush1.bf16.msra.mxu0 %v1345
        %1365 = vmatprep.subr.bf16.mxu0 0
        %1366 = vmatpush1.bf16.msra.mxu0 %v1344
        %1367 = vmatprep.subr.bf16.mxu0 0
        %1368 = vmatpush1.bf16.msra.mxu0 %v1343
        %1369 = vmatprep.subr.bf16.mxu0 0
        %1370 = vmatpush1.bf16.msra.mxu0 %v1342
        %1371 = vmatprep.subr.bf16.mxu0 0
        %1372 = vmatpush1.bf16.msra.mxu0 %v1341
        %1373 = vmatprep.subr.bf16.mxu0 0
        %1374 = vmatpush2.bf16.msra.mxu0 0
        %1375 = vmatprep.subr.bf16.mxu0 0
        %1376 = vmatpush2.bf16.msra.mxu0 0
        %1377 = vmatprep.subr.bf16.mxu0 0
        %1378 = vmatpush2.bf16.msra.mxu0 0
        %1379 = vmatprep.subr.bf16.mxu0 0
        %1380 = vmatpush2.bf16.msra.mxu0 0
        %1381 = vmatprep.subr.bf16.mxu0 0
        %1382 = vmatpush2.bf16.msra.mxu0 0
        %1383 = vmatprep.subr.bf16.mxu0 0
        %1384 = vmatpush2.bf16.msra.mxu0 0
        %1385 = vmatprep.subr.bf16.mxu0 0
        %1386 = vmatpush2.bf16.msra.mxu0 0
        %1387 = vmatprep.subr.bf16.mxu0 0
        %1388 = vmatpush2.bf16.msra.mxu0 0
        %1389 = vmatprep.mubr.bf16.mxu0 0
        %1390 = vmatmul.mubr.bf16.gmra.mxu0 %v1053
        %v1391 = vpop.f32.mrf.mxu0
        %v1392 = vadd.f32 %v540, %v1391
        %v1393 = vpop.f32.mrf.mxu0
        %v1394 = vpop.f32.mrf.mxu0
        %v1395 = vadd.f32 %v540, %v1394
        %v1396 = vpop.f32.mrf.mxu0
        %1397 = vmatprep.mubr.bf16.mxu0 0
        %1398 = vmatmul.mubr.bf16.gmra.mxu0 %v1054
        %v1399 = vpop.f32.mrf.mxu0
        %v1400 = vadd.f32 %v540, %v1399
        %v1401 = vpop.f32.mrf.mxu0
        %v1402 = vpop.f32.mrf.mxu0
        %v1403 = vadd.f32 %v540, %v1402
        %v1404 = vpop.f32.mrf.mxu0
        %1405 = vmatprep.mubr.bf16.mxu0 0
        %1406 = vmatmul.mubr.bf16.gmra.mxu0 %v1055
        %v1407 = vpop.f32.mrf.mxu0
        %v1408 = vadd.f32 %v540, %v1407
        %v1409 = vpop.f32.mrf.mxu0
        %v1410 = vpop.f32.mrf.mxu0
        %v1411 = vadd.f32 %v540, %v1410
        %v1412 = vpop.f32.mrf.mxu0
        %1413 = vmatprep.mubr.bf16.mxu0 0
        %1414 = vmatmul.mubr.bf16.gmra.mxu0 %v1056
        %v1415 = vpop.f32.mrf.mxu0
        %v1416 = vadd.f32 %v540, %v1415
        %v1417 = vpop.f32.mrf.mxu0
        %v1418 = vpop.f32.mrf.mxu0
        %v1419 = vadd.f32 %v540, %v1418
        %v1420 = vpop.f32.mrf.mxu0
        %1421 = vmatprep.mubr.bf16.mxu0 0
        %1422 = vmatmul.mubr.bf16.gmra.mxu0 %v1057
        %v1423 = vpop.f32.mrf.mxu0
        %v1424 = vadd.f32 %v540, %v1423
        %v1425 = vpop.f32.mrf.mxu0
        %v1426 = vpop.f32.mrf.mxu0
        %v1427 = vadd.f32 %v540, %v1426
        %v1428 = vpop.f32.mrf.mxu0
        %1429 = vmatprep.mubr.bf16.mxu0 0
        %1430 = vmatmul.mubr.bf16.gmra.mxu0 %v1058
        %v1431 = vpop.f32.mrf.mxu0
        %v1432 = vadd.f32 %v540, %v1431
        %v1433 = vpop.f32.mrf.mxu0
        %v1434 = vpop.f32.mrf.mxu0
        %v1435 = vadd.f32 %v540, %v1434
        %v1436 = vpop.f32.mrf.mxu0
        %1437 = vmatprep.mubr.bf16.mxu0 0
        %1438 = vmatmul.mubr.bf16.gmra.mxu0 %v1059
        %v1439 = vpop.f32.mrf.mxu0
        %v1440 = vadd.f32 %v540, %v1439
        %v1441 = vpop.f32.mrf.mxu0
        %v1442 = vpop.f32.mrf.mxu0
        %v1443 = vadd.f32 %v540, %v1442
        %v1444 = vpop.f32.mrf.mxu0
        %1445 = vmatprep.mubr.bf16.mxu0 0
        %1446 = vmatmul.mubr.bf16.gmra.mxu0 %v1060
        %v1447 = vpop.f32.mrf.mxu0
        %v1448 = vadd.f32 %v540, %v1447
        %v1449 = vpop.f32.mrf.mxu0
        %v1450 = vpop.f32.mrf.mxu0
        %v1451 = vadd.f32 %v540, %v1450
        %v1452 = vpop.f32.mrf.mxu0
        %1453 = vmatprep.mubr.bf16.mxu0 0
        %1454 = vmatmul.mubr.bf16.gmra.mxu0 %v1061
        %v1455 = vpop.f32.mrf.mxu0
        %v1456 = vadd.f32 %v540, %v1455
        %v1457 = vpop.f32.mrf.mxu0
        %v1458 = vpop.f32.mrf.mxu0
        %v1459 = vadd.f32 %v540, %v1458
        %v1460 = vpop.f32.mrf.mxu0
        %1461 = vmatprep.mubr.bf16.mxu0 0
        %1462 = vmatmul.mubr.bf16.gmra.mxu0 %v1062
        %v1463 = vpop.f32.mrf.mxu0
        %v1464 = vadd.f32 %v540, %v1463
        %v1465 = vpop.f32.mrf.mxu0
        %v1466 = vpop.f32.mrf.mxu0
        %v1467 = vadd.f32 %v540, %v1466
        %v1468 = vpop.f32.mrf.mxu0
        %1469 = vmatprep.mubr.bf16.mxu0 0
        %1470 = vmatmul.mubr.bf16.gmra.mxu0 %v1063
        %v1471 = vpop.f32.mrf.mxu0
        %v1472 = vadd.f32 %v540, %v1471
        %v1473 = vpop.f32.mrf.mxu0
        %v1474 = vpop.f32.mrf.mxu0
        %v1475 = vadd.f32 %v540, %v1474
        %v1476 = vpop.f32.mrf.mxu0
        %1477 = vmatprep.mubr.bf16.mxu0 0
        %1478 = vmatmul.mubr.bf16.gmra.mxu0 %v1064
        %v1479 = vpop.f32.mrf.mxu0
        %v1480 = vadd.f32 %v540, %v1479
        %v1481 = vpop.f32.mrf.mxu0
        %v1482 = vpop.f32.mrf.mxu0
        %v1483 = vadd.f32 %v540, %v1482
        %v1484 = vpop.f32.mrf.mxu0
        %1485 = vmatprep.mubr.bf16.mxu0 0
        %1486 = vmatmul.mubr.bf16.gmra.mxu0 %v1065
        %v1487 = vpop.f32.mrf.mxu0
        %v1488 = vadd.f32 %v540, %v1487
        %v1489 = vpop.f32.mrf.mxu0
        %v1490 = vpop.f32.mrf.mxu0
        %v1491 = vadd.f32 %v540, %v1490
        %v1492 = vpop.f32.mrf.mxu0
        %1493 = vmatprep.mubr.bf16.mxu0 0
        %1494 = vmatmul.mubr.bf16.gmra.mxu0 %v1066
        %v1495 = vpop.f32.mrf.mxu0
        %v1496 = vadd.f32 %v540, %v1495
        %v1497 = vpop.f32.mrf.mxu0
        %v1498 = vpop.f32.mrf.mxu0
        %v1499 = vadd.f32 %v540, %v1498
        %v1500 = vpop.f32.mrf.mxu0
        %1501 = vmatprep.mubr.bf16.mxu0 0
        %1502 = vmatmul.mubr.bf16.gmra.mxu0 %v1067
        %v1503 = vpop.f32.mrf.mxu0
        %v1504 = vadd.f32 %v540, %v1503
        %v1505 = vpop.f32.mrf.mxu0
        %v1506 = vpop.f32.mrf.mxu0
        %v1507 = vadd.f32 %v540, %v1506
        %v1508 = vpop.f32.mrf.mxu0
        %1509 = vmatprep.mubr.bf16.mxu0 0
        %1510 = vmatmul.mubr.bf16.gmra.mxu0 %v1068
        %v1511 = vpop.f32.mrf.mxu0
        %v1512 = vadd.f32 %v540, %v1511
        %v1513 = vpop.f32.mrf.mxu0
        %v1514 = vpop.f32.mrf.mxu0
        %v1515 = vadd.f32 %v540, %v1514
        %v1516 = vpop.f32.mrf.mxu0
        %1517 = vmatprep.mubr.bf16.mxu0 0
        %1518 = vmatmul.mubr.bf16.gmra.mxu0 %v1069
        %v1519 = vpop.f32.mrf.mxu0
        %v1520 = vadd.f32 %v540, %v1519
        %v1521 = vpop.f32.mrf.mxu0
        %v1522 = vpop.f32.mrf.mxu0
        %v1523 = vadd.f32 %v540, %v1522
        %v1524 = vpop.f32.mrf.mxu0
        %1525 = vmatprep.mubr.bf16.mxu0 0
        %1526 = vmatmul.mubr.bf16.gmra.mxu0 %v1070
        %v1527 = vpop.f32.mrf.mxu0
        %v1528 = vadd.f32 %v540, %v1527
        %v1529 = vpop.f32.mrf.mxu0
        %v1530 = vpop.f32.mrf.mxu0
        %v1531 = vadd.f32 %v540, %v1530
        %v1532 = vpop.f32.mrf.mxu0
        %1533 = vmatprep.mubr.bf16.mxu0 0
        %1534 = vmatmul.mubr.bf16.gmra.mxu0 %v1071
        %v1535 = vpop.f32.mrf.mxu0
        %v1536 = vadd.f32 %v540, %v1535
        %v1537 = vpop.f32.mrf.mxu0
        %v1538 = vpop.f32.mrf.mxu0
        %v1539 = vadd.f32 %v540, %v1538
        %v1540 = vpop.f32.mrf.mxu0
        %1541 = vmatprep.mubr.bf16.mxu0 0
        %1542 = vmatmul.mubr.bf16.gmra.mxu0 %v1072
        %v1543 = vpop.f32.mrf.mxu0
        %v1544 = vadd.f32 %v540, %v1543
        %v1545 = vpop.f32.mrf.mxu0
        %v1546 = vpop.f32.mrf.mxu0
        %v1547 = vadd.f32 %v540, %v1546
        %v1548 = vpop.f32.mrf.mxu0
        %1549 = vmatprep.mubr.bf16.mxu0 0
        %1550 = vmatmul.mubr.bf16.gmra.mxu0 %v1073
        %v1551 = vpop.f32.mrf.mxu0
        %v1552 = vadd.f32 %v540, %v1551
        %v1553 = vpop.f32.mrf.mxu0
        %v1554 = vpop.f32.mrf.mxu0
        %v1555 = vadd.f32 %v540, %v1554
        %v1556 = vpop.f32.mrf.mxu0
        %1557 = vmatprep.mubr.bf16.mxu0 0
        %1558 = vmatmul.mubr.bf16.gmra.mxu0 %v1074
        %v1559 = vpop.f32.mrf.mxu0
        %v1560 = vadd.f32 %v540, %v1559
        %v1561 = vpop.f32.mrf.mxu0
        %v1562 = vpop.f32.mrf.mxu0
        %v1563 = vadd.f32 %v540, %v1562
        %v1564 = vpop.f32.mrf.mxu0
        %1565 = vmatprep.mubr.bf16.mxu0 0
        %1566 = vmatmul.mubr.bf16.gmra.mxu0 %v1075
        %v1567 = vpop.f32.mrf.mxu0
        %v1568 = vadd.f32 %v540, %v1567
        %v1569 = vpop.f32.mrf.mxu0
        %v1570 = vpop.f32.mrf.mxu0
        %v1571 = vadd.f32 %v540, %v1570
        %v1572 = vpop.f32.mrf.mxu0
        %1573 = vmatprep.mubr.bf16.mxu0 0
        %1574 = vmatmul.mubr.bf16.gmra.mxu0 %v1076
        %v1575 = vpop.f32.mrf.mxu0
        %v1576 = vadd.f32 %v540, %v1575
        %v1577 = vpop.f32.mrf.mxu0
        %v1578 = vpop.f32.mrf.mxu0
        %v1579 = vadd.f32 %v540, %v1578
        %v1580 = vpop.f32.mrf.mxu0
        %1581 = vmatprep.mubr.bf16.mxu0 0
        %1582 = vmatmul.mubr.bf16.gmra.mxu0 %v1077
        %v1583 = vpop.f32.mrf.mxu0
        %v1584 = vadd.f32 %v540, %v1583
        %v1585 = vpop.f32.mrf.mxu0
        %v1586 = vpop.f32.mrf.mxu0
        %v1587 = vadd.f32 %v540, %v1586
        %v1588 = vpop.f32.mrf.mxu0
        %1589 = vmatprep.mubr.bf16.mxu0 0
        %1590 = vmatmul.mubr.bf16.gmra.mxu0 %v1078
        %v1591 = vpop.f32.mrf.mxu0
        %v1592 = vadd.f32 %v540, %v1591
        %v1593 = vpop.f32.mrf.mxu0
        %v1594 = vpop.f32.mrf.mxu0
        %v1595 = vadd.f32 %v540, %v1594
        %v1596 = vpop.f32.mrf.mxu0
        %1597 = vmatprep.mubr.bf16.mxu0 0
        %1598 = vmatmul.mubr.bf16.gmra.mxu0 %v1079
        %v1599 = vpop.f32.mrf.mxu0
        %v1600 = vadd.f32 %v540, %v1599
        %v1601 = vpop.f32.mrf.mxu0
        %v1602 = vpop.f32.mrf.mxu0
        %v1603 = vadd.f32 %v540, %v1602
        %v1604 = vpop.f32.mrf.mxu0
        %1605 = vmatprep.mubr.bf16.mxu0 0
        %1606 = vmatmul.mubr.bf16.gmra.mxu0 %v1080
        %v1607 = vpop.f32.mrf.mxu0
        %v1608 = vadd.f32 %v540, %v1607
        %v1609 = vpop.f32.mrf.mxu0
        %v1610 = vpop.f32.mrf.mxu0
        %v1611 = vadd.f32 %v540, %v1610
        %v1612 = vpop.f32.mrf.mxu0
        %1613 = vmatprep.mubr.bf16.mxu0 0
        %1614 = vmatmul.mubr.bf16.gmra.mxu0 %v1081
        %v1615 = vpop.f32.mrf.mxu0
        %v1616 = vadd.f32 %v540, %v1615
        %v1617 = vpop.f32.mrf.mxu0
        %v1618 = vpop.f32.mrf.mxu0
        %v1619 = vadd.f32 %v540, %v1618
        %v1620 = vpop.f32.mrf.mxu0
        %1621 = vmatprep.mubr.bf16.mxu0 0
        %1622 = vmatmul.mubr.bf16.gmra.mxu0 %v1082
        %v1623 = vpop.f32.mrf.mxu0
        %v1624 = vadd.f32 %v540, %v1623
        %v1625 = vpop.f32.mrf.mxu0
        %v1626 = vpop.f32.mrf.mxu0
        %v1627 = vadd.f32 %v540, %v1626
        %v1628 = vpop.f32.mrf.mxu0
        %1629 = vmatprep.mubr.bf16.mxu0 0
        %1630 = vmatmul.mubr.bf16.gmra.mxu0 %v1083
        %v1631 = vpop.f32.mrf.mxu0
        %v1632 = vadd.f32 %v540, %v1631
        %v1633 = vpop.f32.mrf.mxu0
        %v1634 = vpop.f32.mrf.mxu0
        %v1635 = vadd.f32 %v540, %v1634
        %v1636 = vpop.f32.mrf.mxu0
        %1637 = vmatprep.mubr.bf16.mxu0 0
        %1638 = vmatmul.mubr.bf16.gmra.mxu0 %v1084
        %v1639 = vpop.f32.mrf.mxu0
        %v1640 = vadd.f32 %v540, %v1639
        %v1641 = vpop.f32.mrf.mxu0
        %v1642 = vpop.f32.mrf.mxu0
        %v1643 = vadd.f32 %v540, %v1642
        %v1644 = vpop.f32.mrf.mxu0
        %1645 = vmatprep.mubr.bf16.mxu0 0
        %1646 = vmatmul.mubr.bf16.gmra.mxu0 %v1085
        %v1647 = vpop.f32.mrf.mxu0
        %v1648 = vadd.f32 %v540, %v1647
        %v1649 = vpop.f32.mrf.mxu0
        %v1650 = vpop.f32.mrf.mxu0
        %v1651 = vadd.f32 %v540, %v1650
        %v1652 = vpop.f32.mrf.mxu0
        %1653 = vmatprep.mubr.bf16.mxu0 0
        %1654 = vmatmul.mubr.bf16.gmra.mxu0 %v1086
        %v1655 = vpop.f32.mrf.mxu0
        %v1656 = vadd.f32 %v540, %v1655
        %v1657 = vpop.f32.mrf.mxu0
        %v1658 = vpop.f32.mrf.mxu0
        %v1659 = vadd.f32 %v540, %v1658
        %v1660 = vpop.f32.mrf.mxu0
        %1661 = vmatprep.mubr.bf16.mxu0 0
        %1662 = vmatmul.mubr.bf16.gmra.mxu0 %v1087
        %v1663 = vpop.f32.mrf.mxu0
        %v1664 = vadd.f32 %v540, %v1663
        %v1665 = vpop.f32.mrf.mxu0
        %v1666 = vpop.f32.mrf.mxu0
        %v1667 = vadd.f32 %v540, %v1666
        %v1668 = vpop.f32.mrf.mxu0
        %1669 = vmatprep.mubr.bf16.mxu0 0
        %1670 = vmatmul.mubr.bf16.gmra.mxu0 %v1088
        %v1671 = vpop.f32.mrf.mxu0
        %v1672 = vadd.f32 %v540, %v1671
        %v1673 = vpop.f32.mrf.mxu0
        %v1674 = vpop.f32.mrf.mxu0
        %v1675 = vadd.f32 %v540, %v1674
        %v1676 = vpop.f32.mrf.mxu0
        %1677 = vmatprep.mubr.bf16.mxu0 0
        %1678 = vmatmul.mubr.bf16.gmra.mxu0 %v1089
        %v1679 = vpop.f32.mrf.mxu0
        %v1680 = vadd.f32 %v540, %v1679
        %v1681 = vpop.f32.mrf.mxu0
        %v1682 = vpop.f32.mrf.mxu0
        %v1683 = vadd.f32 %v540, %v1682
        %v1684 = vpop.f32.mrf.mxu0
        %1685 = vmatprep.mubr.bf16.mxu0 0
        %1686 = vmatmul.mubr.bf16.gmra.mxu0 %v1090
        %v1687 = vpop.f32.mrf.mxu0
        %v1688 = vadd.f32 %v540, %v1687
        %v1689 = vpop.f32.mrf.mxu0
        %v1690 = vpop.f32.mrf.mxu0
        %v1691 = vadd.f32 %v540, %v1690
        %v1692 = vpop.f32.mrf.mxu0
        %1693 = vmatprep.mubr.bf16.mxu0 0
        %1694 = vmatmul.mubr.bf16.gmra.mxu0 %v1091
        %v1695 = vpop.f32.mrf.mxu0
        %v1696 = vadd.f32 %v540, %v1695
        %v1697 = vpop.f32.mrf.mxu0
        %v1698 = vpop.f32.mrf.mxu0
        %v1699 = vadd.f32 %v540, %v1698
        %v1700 = vpop.f32.mrf.mxu0
        %1701 = vmatprep.mubr.bf16.mxu0 0
        %1702 = vmatmul.mubr.bf16.gmra.mxu0 %v1092
        %v1703 = vpop.f32.mrf.mxu0
        %v1704 = vadd.f32 %v540, %v1703
        %v1705 = vpop.f32.mrf.mxu0
        %v1706 = vpop.f32.mrf.mxu0
        %v1707 = vadd.f32 %v540, %v1706
        %v1708 = vpop.f32.mrf.mxu0
        %1709 = vmatprep.mubr.bf16.mxu0 0
        %1710 = vmatmul.mubr.bf16.gmra.mxu0 %v1093
        %v1711 = vpop.f32.mrf.mxu0
        %v1712 = vadd.f32 %v540, %v1711
        %v1713 = vpop.f32.mrf.mxu0
        %v1714 = vpop.f32.mrf.mxu0
        %v1715 = vadd.f32 %v540, %v1714
        %v1716 = vpop.f32.mrf.mxu0
        %1717 = vmatprep.mubr.bf16.mxu0 0
        %1718 = vmatmul.mubr.bf16.gmra.mxu0 %v1094
        %v1719 = vpop.f32.mrf.mxu0
        %v1720 = vadd.f32 %v540, %v1719
        %v1721 = vpop.f32.mrf.mxu0
        %v1722 = vpop.f32.mrf.mxu0
        %v1723 = vadd.f32 %v540, %v1722
        %v1724 = vpop.f32.mrf.mxu0
        %1725 = vmatprep.mubr.bf16.mxu0 0
        %1726 = vmatmul.mubr.bf16.gmra.mxu0 %v1095
        %v1727 = vpop.f32.mrf.mxu0
        %v1728 = vadd.f32 %v540, %v1727
        %v1729 = vpop.f32.mrf.mxu0
        %v1730 = vpop.f32.mrf.mxu0
        %v1731 = vadd.f32 %v540, %v1730
        %v1732 = vpop.f32.mrf.mxu0
        %1733 = vmatprep.mubr.bf16.mxu0 0
        %1734 = vmatmul.mubr.bf16.gmra.mxu0 %v1096
        %v1735 = vpop.f32.mrf.mxu0
        %v1736 = vadd.f32 %v540, %v1735
        %v1737 = vpop.f32.mrf.mxu0
        %v1738 = vpop.f32.mrf.mxu0
        %v1739 = vadd.f32 %v540, %v1738
        %v1740 = vpop.f32.mrf.mxu0
        %1741 = vmatprep.mubr.bf16.mxu0 0
        %1742 = vmatmul.mubr.bf16.gmra.mxu0 %v1097
        %v1743 = vpop.f32.mrf.mxu0
        %v1744 = vadd.f32 %v540, %v1743
        %v1745 = vpop.f32.mrf.mxu0
        %v1746 = vpop.f32.mrf.mxu0
        %v1747 = vadd.f32 %v540, %v1746
        %v1748 = vpop.f32.mrf.mxu0
        %1749 = vmatprep.mubr.bf16.mxu0 0
        %1750 = vmatmul.mubr.bf16.gmra.mxu0 %v1098
        %v1751 = vpop.f32.mrf.mxu0
        %v1752 = vadd.f32 %v540, %v1751
        %v1753 = vpop.f32.mrf.mxu0
        %v1754 = vpop.f32.mrf.mxu0
        %v1755 = vadd.f32 %v540, %v1754
        %v1756 = vpop.f32.mrf.mxu0
        %1757 = vmatprep.mubr.bf16.mxu0 0
        %1758 = vmatmul.mubr.bf16.gmra.mxu0 %v1099
        %v1759 = vpop.f32.mrf.mxu0
        %v1760 = vadd.f32 %v540, %v1759
        %v1761 = vpop.f32.mrf.mxu0
        %v1762 = vpop.f32.mrf.mxu0
        %v1763 = vadd.f32 %v540, %v1762
        %v1764 = vpop.f32.mrf.mxu0
        %1765 = vmatprep.mubr.bf16.mxu0 0
        %1766 = vmatmul.mubr.bf16.gmra.mxu0 %v1100
        %v1767 = vpop.f32.mrf.mxu0
        %v1768 = vadd.f32 %v540, %v1767
        %v1769 = vpop.f32.mrf.mxu0
        %v1770 = vpop.f32.mrf.mxu0
        %v1771 = vadd.f32 %v540, %v1770
        %v1772 = vpop.f32.mrf.mxu0
        %1773 = vmatprep.mubr.bf16.mxu0 0
        %1774 = vmatmul.mubr.bf16.gmra.mxu0 %v1101
        %v1775 = vpop.f32.mrf.mxu0
        %v1776 = vadd.f32 %v540, %v1775
        %v1777 = vpop.f32.mrf.mxu0
        %v1778 = vpop.f32.mrf.mxu0
        %v1779 = vadd.f32 %v540, %v1778
        %v1780 = vpop.f32.mrf.mxu0
        %1781 = vmatprep.mubr.bf16.mxu0 0
        %1782 = vmatmul.mubr.bf16.gmra.mxu0 %v1102
        %v1783 = vpop.f32.mrf.mxu0
        %v1784 = vadd.f32 %v540, %v1783
        %v1785 = vpop.f32.mrf.mxu0
        %v1786 = vpop.f32.mrf.mxu0
        %v1787 = vadd.f32 %v540, %v1786
        %v1788 = vpop.f32.mrf.mxu0
        %1789 = vmatprep.mubr.bf16.mxu0 0
        %1790 = vmatmul.mubr.bf16.gmra.mxu0 %v1103
        %v1791 = vpop.f32.mrf.mxu0
        %v1792 = vadd.f32 %v540, %v1791
        %v1793 = vpop.f32.mrf.mxu0
        %v1794 = vpop.f32.mrf.mxu0
        %v1795 = vadd.f32 %v540, %v1794
        %v1796 = vpop.f32.mrf.mxu0
        %1797 = vmatprep.mubr.bf16.mxu0 0
        %1798 = vmatmul.mubr.bf16.gmra.mxu0 %v1104
        %v1799 = vpop.f32.mrf.mxu0
        %v1800 = vadd.f32 %v540, %v1799
        %v1801 = vpop.f32.mrf.mxu0
        %v1802 = vpop.f32.mrf.mxu0
        %v1803 = vadd.f32 %v540, %v1802
        %v1804 = vpop.f32.mrf.mxu0
        %1805 = vmatprep.mubr.bf16.mxu0 0
        %1806 = vmatmul.mubr.bf16.gmra.mxu0 %v1105
        %v1807 = vpop.f32.mrf.mxu0
        %v1808 = vadd.f32 %v540, %v1807
        %v1809 = vpop.f32.mrf.mxu0
        %v1810 = vpop.f32.mrf.mxu0
        %v1811 = vadd.f32 %v540, %v1810
        %v1812 = vpop.f32.mrf.mxu0
        %1813 = vmatprep.mubr.bf16.mxu0 0
        %1814 = vmatmul.mubr.bf16.gmra.mxu0 %v1106
        %v1815 = vpop.f32.mrf.mxu0
        %v1816 = vadd.f32 %v540, %v1815
        %v1817 = vpop.f32.mrf.mxu0
        %v1818 = vpop.f32.mrf.mxu0
        %v1819 = vadd.f32 %v540, %v1818
        %v1820 = vpop.f32.mrf.mxu0
        %1821 = vmatprep.mubr.bf16.mxu0 0
        %1822 = vmatmul.mubr.bf16.gmra.mxu0 %v1107
        %v1823 = vpop.f32.mrf.mxu0
        %v1824 = vadd.f32 %v540, %v1823
        %v1825 = vpop.f32.mrf.mxu0
        %v1826 = vpop.f32.mrf.mxu0
        %v1827 = vadd.f32 %v540, %v1826
        %v1828 = vpop.f32.mrf.mxu0
        %1829 = vmatprep.mubr.bf16.mxu0 0
        %1830 = vmatmul.mubr.bf16.gmra.mxu0 %v1108
        %v1831 = vpop.f32.mrf.mxu0
        %v1832 = vadd.f32 %v540, %v1831
        %v1833 = vpop.f32.mrf.mxu0
        %v1834 = vpop.f32.mrf.mxu0
        %v1835 = vadd.f32 %v540, %v1834
        %v1836 = vpop.f32.mrf.mxu0
        %1837 = vmatprep.mubr.bf16.mxu0 0
        %1838 = vmatmul.mubr.bf16.gmra.mxu0 %v1109
        %v1839 = vpop.f32.mrf.mxu0
        %v1840 = vadd.f32 %v540, %v1839
        %v1841 = vpop.f32.mrf.mxu0
        %v1842 = vpop.f32.mrf.mxu0
        %v1843 = vadd.f32 %v540, %v1842
        %v1844 = vpop.f32.mrf.mxu0
        %1845 = vmatprep.mubr.bf16.mxu0 0
        %1846 = vmatmul.mubr.bf16.gmra.mxu0 %v1110
        %v1847 = vpop.f32.mrf.mxu0
        %v1848 = vadd.f32 %v540, %v1847
        %v1849 = vpop.f32.mrf.mxu0
        %v1850 = vpop.f32.mrf.mxu0
        %v1851 = vadd.f32 %v540, %v1850
        %v1852 = vpop.f32.mrf.mxu0
        %1853 = vmatprep.mubr.bf16.mxu0 0
        %1854 = vmatmul.mubr.bf16.gmra.mxu0 %v1111
        %v1855 = vpop.f32.mrf.mxu0
        %v1856 = vadd.f32 %v540, %v1855
        %v1857 = vpop.f32.mrf.mxu0
        %v1858 = vpop.f32.mrf.mxu0
        %v1859 = vadd.f32 %v540, %v1858
        %v1860 = vpop.f32.mrf.mxu0
        %1861 = vmatprep.mubr.bf16.mxu0 0
        %1862 = vmatmul.mubr.bf16.gmra.mxu0 %v1112
        %v1863 = vpop.f32.mrf.mxu0
        %v1864 = vadd.f32 %v540, %v1863
        %v1865 = vpop.f32.mrf.mxu0
        %v1866 = vpop.f32.mrf.mxu0
        %v1867 = vadd.f32 %v540, %v1866
        %v1868 = vpop.f32.mrf.mxu0
        %1869 = vmatprep.mubr.bf16.mxu0 0
        %1870 = vmatmul.mubr.bf16.gmra.mxu0 %v1113
        %v1871 = vpop.f32.mrf.mxu0
        %v1872 = vadd.f32 %v540, %v1871
        %v1873 = vpop.f32.mrf.mxu0
        %v1874 = vpop.f32.mrf.mxu0
        %v1875 = vadd.f32 %v540, %v1874
        %v1876 = vpop.f32.mrf.mxu0
        %1877 = vmatprep.mubr.bf16.mxu0 0
        %1878 = vmatmul.mubr.bf16.gmra.mxu0 %v1114
        %v1879 = vpop.f32.mrf.mxu0
        %v1880 = vadd.f32 %v540, %v1879
        %v1881 = vpop.f32.mrf.mxu0
        %v1882 = vpop.f32.mrf.mxu0
        %v1883 = vadd.f32 %v540, %v1882
        %v1884 = vpop.f32.mrf.mxu0
        %1885 = vmatprep.mubr.bf16.mxu0 0
        %1886 = vmatmul.mubr.bf16.gmra.mxu0 %v1115
        %v1887 = vpop.f32.mrf.mxu0
        %v1888 = vadd.f32 %v540, %v1887
        %v1889 = vpop.f32.mrf.mxu0
        %v1890 = vpop.f32.mrf.mxu0
        %v1891 = vadd.f32 %v540, %v1890
        %v1892 = vpop.f32.mrf.mxu0
        %1893 = vmatprep.mubr.bf16.mxu0 0
        %1894 = vmatmul.mubr.bf16.gmra.mxu0 %v1116
        %v1895 = vpop.f32.mrf.mxu0
        %v1896 = vadd.f32 %v540, %v1895
        %v1897 = vpop.f32.mrf.mxu0
        %v1898 = vpop.f32.mrf.mxu0
        %v1899 = vadd.f32 %v540, %v1898
        %v1900 = vpop.f32.mrf.mxu0
        %1901 = vmatprep.mubr.bf16.mxu0 0
        %1902 = vmatmul.mubr.bf16.gmra.mxu0 %v1117
        %v1903 = vpop.f32.mrf.mxu0
        %v1904 = vadd.f32 %v540, %v1903
        %v1905 = vpop.f32.mrf.mxu0
        %v1906 = vpop.f32.mrf.mxu0
        %v1907 = vadd.f32 %v540, %v1906
        %v1908 = vpop.f32.mrf.mxu0
        %1909 = vmatprep.mubr.bf16.mxu0 0
        %1910 = vmatmul.mubr.bf16.gmra.mxu0 %v1118
        %v1911 = vpop.f32.mrf.mxu0
        %v1912 = vadd.f32 %v540, %v1911
        %v1913 = vpop.f32.mrf.mxu0
        %v1914 = vpop.f32.mrf.mxu0
        %v1915 = vadd.f32 %v540, %v1914
        %v1916 = vpop.f32.mrf.mxu0
        %1917 = vmatprep.mubr.bf16.mxu0 0
        %1918 = vmatmul.mubr.bf16.gmra.mxu0 %v1119
        %v1919 = vpop.f32.mrf.mxu0
        %v1920 = vadd.f32 %v540, %v1919
        %v1921 = vpop.f32.mrf.mxu0
        %v1922 = vpop.f32.mrf.mxu0
        %v1923 = vadd.f32 %v540, %v1922
        %v1924 = vpop.f32.mrf.mxu0
        %1925 = vmatprep.mubr.bf16.mxu0 0
        %1926 = vmatmul.mubr.bf16.gmra.mxu0 %v1120
        %v1927 = vpop.f32.mrf.mxu0
        %v1928 = vadd.f32 %v540, %v1927
        %v1929 = vpop.f32.mrf.mxu0
        %v1930 = vpop.f32.mrf.mxu0
        %v1931 = vadd.f32 %v540, %v1930
        %v1932 = vpop.f32.mrf.mxu0
        %1933 = vmatprep.mubr.bf16.mxu0 0
        %1934 = vmatmul.mubr.bf16.gmra.mxu0 %v1121
        %v1935 = vpop.f32.mrf.mxu0
        %v1936 = vadd.f32 %v540, %v1935
        %v1937 = vpop.f32.mrf.mxu0
        %v1938 = vpop.f32.mrf.mxu0
        %v1939 = vadd.f32 %v540, %v1938
        %v1940 = vpop.f32.mrf.mxu0
        %1941 = vmatprep.mubr.bf16.mxu0 0
        %1942 = vmatmul.mubr.bf16.gmra.mxu0 %v1122
        %v1943 = vpop.f32.mrf.mxu0
        %v1944 = vadd.f32 %v540, %v1943
        %v1945 = vpop.f32.mrf.mxu0
        %v1946 = vpop.f32.mrf.mxu0
        %v1947 = vadd.f32 %v540, %v1946
        %v1948 = vpop.f32.mrf.mxu0
        %1949 = vmatprep.mubr.bf16.mxu0 0
        %1950 = vmatmul.mubr.bf16.gmra.mxu0 %v1123
        %v1951 = vpop.f32.mrf.mxu0
        %v1952 = vadd.f32 %v540, %v1951
        %v1953 = vpop.f32.mrf.mxu0
        %v1954 = vpop.f32.mrf.mxu0
        %v1955 = vadd.f32 %v540, %v1954
        %v1956 = vpop.f32.mrf.mxu0
        %1957 = vmatprep.mubr.bf16.mxu0 0
        %1958 = vmatmul.mubr.bf16.gmra.mxu0 %v1124
        %v1959 = vpop.f32.mrf.mxu0
        %v1960 = vadd.f32 %v540, %v1959
        %v1961 = vpop.f32.mrf.mxu0
        %v1962 = vpop.f32.mrf.mxu0
        %v1963 = vadd.f32 %v540, %v1962
        %v1964 = vpop.f32.mrf.mxu0
        %1965 = vmatprep.mubr.bf16.mxu0 0
        %1966 = vmatmul.mubr.bf16.gmra.mxu0 %v1125
        %v1967 = vpop.f32.mrf.mxu0
        %v1968 = vadd.f32 %v540, %v1967
        %v1969 = vpop.f32.mrf.mxu0
        %v1970 = vpop.f32.mrf.mxu0
        %v1971 = vadd.f32 %v540, %v1970
        %v1972 = vpop.f32.mrf.mxu0
        %1973 = vmatprep.mubr.bf16.mxu0 0
        %1974 = vmatmul.mubr.bf16.gmra.mxu0 %v1126
        %v1975 = vpop.f32.mrf.mxu0
        %v1976 = vadd.f32 %v540, %v1975
        %v1977 = vpop.f32.mrf.mxu0
        %v1978 = vpop.f32.mrf.mxu0
        %v1979 = vadd.f32 %v540, %v1978
        %v1980 = vpop.f32.mrf.mxu0
        %1981 = vmatprep.mubr.bf16.mxu0 0
        %1982 = vmatmul.mubr.bf16.gmra.mxu0 %v1127
        %v1983 = vpop.f32.mrf.mxu0
        %v1984 = vadd.f32 %v540, %v1983
        %v1985 = vpop.f32.mrf.mxu0
        %v1986 = vpop.f32.mrf.mxu0
        %v1987 = vadd.f32 %v540, %v1986
        %v1988 = vpop.f32.mrf.mxu0
        %1989 = vmatprep.mubr.bf16.mxu0 0
        %1990 = vmatmul.mubr.bf16.gmra.mxu0 %v1128
        %v1991 = vpop.f32.mrf.mxu0
        %v1992 = vadd.f32 %v540, %v1991
        %v1993 = vpop.f32.mrf.mxu0
        %v1994 = vpop.f32.mrf.mxu0
        %v1995 = vadd.f32 %v540, %v1994
        %v1996 = vpop.f32.mrf.mxu0
        %1997 = vmatprep.mubr.bf16.mxu0 0
        %1998 = vmatmul.mubr.bf16.gmra.mxu0 %v1129
        %v1999 = vpop.f32.mrf.mxu0
        %v2000 = vadd.f32 %v540, %v1999
        %v2001 = vpop.f32.mrf.mxu0
        %v2002 = vpop.f32.mrf.mxu0
        %v2003 = vadd.f32 %v540, %v2002
        %v2004 = vpop.f32.mrf.mxu0
        %2005 = vmatprep.mubr.bf16.mxu0 0
        %2006 = vmatmul.mubr.bf16.gmra.mxu0 %v1130
        %v2007 = vpop.f32.mrf.mxu0
        %v2008 = vadd.f32 %v540, %v2007
        %v2009 = vpop.f32.mrf.mxu0
        %v2010 = vpop.f32.mrf.mxu0
        %v2011 = vadd.f32 %v540, %v2010
        %v2012 = vpop.f32.mrf.mxu0
        %2013 = vmatprep.mubr.bf16.mxu0 0
        %2014 = vmatmul.mubr.bf16.gmra.mxu0 %v1131
        %v2015 = vpop.f32.mrf.mxu0
        %v2016 = vadd.f32 %v540, %v2015
        %v2017 = vpop.f32.mrf.mxu0
        %v2018 = vpop.f32.mrf.mxu0
        %v2019 = vadd.f32 %v540, %v2018
        %v2020 = vpop.f32.mrf.mxu0
        %2021 = vmatprep.mubr.bf16.mxu0 0
        %2022 = vmatmul.mubr.bf16.gmra.mxu0 %v1132
        %v2023 = vpop.f32.mrf.mxu0
        %v2024 = vadd.f32 %v540, %v2023
        %v2025 = vpop.f32.mrf.mxu0
        %v2026 = vpop.f32.mrf.mxu0
        %v2027 = vadd.f32 %v540, %v2026
        %v2028 = vpop.f32.mrf.mxu0
        %2029 = vmatprep.mubr.bf16.mxu0 0
        %2030 = vmatmul.mubr.bf16.gmra.mxu0 %v1133
        %v2031 = vpop.f32.mrf.mxu0
        %v2032 = vadd.f32 %v540, %v2031
        %v2033 = vpop.f32.mrf.mxu0
        %v2034 = vpop.f32.mrf.mxu0
        %v2035 = vadd.f32 %v540, %v2034
        %v2036 = vpop.f32.mrf.mxu0
        %2037 = vmatprep.mubr.bf16.mxu0 0
        %2038 = vmatmul.mubr.bf16.gmra.mxu0 %v1134
        %v2039 = vpop.f32.mrf.mxu0
        %v2040 = vadd.f32 %v540, %v2039
        %v2041 = vpop.f32.mrf.mxu0
        %v2042 = vpop.f32.mrf.mxu0
        %v2043 = vadd.f32 %v540, %v2042
        %v2044 = vpop.f32.mrf.mxu0
        %2045 = vmatprep.mubr.bf16.mxu0 0
        %2046 = vmatmul.mubr.bf16.gmra.mxu0 %v1135
        %v2047 = vpop.f32.mrf.mxu0
        %v2048 = vadd.f32 %v540, %v2047
        %v2049 = vpop.f32.mrf.mxu0
        %v2050 = vpop.f32.mrf.mxu0
        %v2051 = vadd.f32 %v540, %v2050
        %v2052 = vpop.f32.mrf.mxu0
        %2053 = vmatprep.mubr.bf16.mxu0 0
        %2054 = vmatmul.mubr.bf16.gmra.mxu0 %v1136
        %v2055 = vpop.f32.mrf.mxu0
        %v2056 = vadd.f32 %v540, %v2055
        %v2057 = vpop.f32.mrf.mxu0
        %v2058 = vpop.f32.mrf.mxu0
        %v2059 = vadd.f32 %v540, %v2058
        %v2060 = vpop.f32.mrf.mxu0
        %2061 = vmatprep.mubr.bf16.mxu0 0
        %2062 = vmatmul.mubr.bf16.gmra.mxu0 %v1137
        %v2063 = vpop.f32.mrf.mxu0
        %v2064 = vadd.f32 %v540, %v2063
        %v2065 = vpop.f32.mrf.mxu0
        %v2066 = vpop.f32.mrf.mxu0
        %v2067 = vadd.f32 %v540, %v2066
        %v2068 = vpop.f32.mrf.mxu0
        %2069 = vmatprep.mubr.bf16.mxu0 0
        %2070 = vmatmul.mubr.bf16.gmra.mxu0 %v1138
        %v2071 = vpop.f32.mrf.mxu0
        %v2072 = vadd.f32 %v540, %v2071
        %v2073 = vpop.f32.mrf.mxu0
        %v2074 = vpop.f32.mrf.mxu0
        %v2075 = vadd.f32 %v540, %v2074
        %v2076 = vpop.f32.mrf.mxu0
        %2077 = vmatprep.mubr.bf16.mxu0 0
        %2078 = vmatmul.mubr.bf16.gmra.mxu0 %v1139
        %v2079 = vpop.f32.mrf.mxu0
        %v2080 = vadd.f32 %v540, %v2079
        %v2081 = vpop.f32.mrf.mxu0
        %v2082 = vpop.f32.mrf.mxu0
        %v2083 = vadd.f32 %v540, %v2082
        %v2084 = vpop.f32.mrf.mxu0
        %2085 = vmatprep.mubr.bf16.mxu0 0
        %2086 = vmatmul.mubr.bf16.gmra.mxu0 %v1140
        %v2087 = vpop.f32.mrf.mxu0
        %v2088 = vadd.f32 %v540, %v2087
        %v2089 = vpop.f32.mrf.mxu0
        %v2090 = vpop.f32.mrf.mxu0
        %v2091 = vadd.f32 %v540, %v2090
        %v2092 = vpop.f32.mrf.mxu0
        %2093 = vmatprep.mubr.bf16.mxu0 0
        %2094 = vmatmul.mubr.bf16.gmra.mxu0 %v1141
        %v2095 = vpop.f32.mrf.mxu0
        %v2096 = vadd.f32 %v540, %v2095
        %v2097 = vpop.f32.mrf.mxu0
        %v2098 = vpop.f32.mrf.mxu0
        %v2099 = vadd.f32 %v540, %v2098
        %v2100 = vpop.f32.mrf.mxu0
        %2101 = vmatprep.mubr.bf16.mxu0 0
        %2102 = vmatmul.mubr.bf16.gmra.mxu0 %v1142
        %v2103 = vpop.f32.mrf.mxu0
        %v2104 = vadd.f32 %v540, %v2103
        %v2105 = vpop.f32.mrf.mxu0
        %v2106 = vpop.f32.mrf.mxu0
        %v2107 = vadd.f32 %v540, %v2106
        %v2108 = vpop.f32.mrf.mxu0
        %2109 = vmatprep.mubr.bf16.mxu0 0
        %2110 = vmatmul.mubr.bf16.gmra.mxu0 %v1143
        %v2111 = vpop.f32.mrf.mxu0
        %v2112 = vadd.f32 %v540, %v2111
        %v2113 = vpop.f32.mrf.mxu0
        %v2114 = vpop.f32.mrf.mxu0
        %v2115 = vadd.f32 %v540, %v2114
        %v2116 = vpop.f32.mrf.mxu0
        %2117 = vmatprep.mubr.bf16.mxu0 0
        %2118 = vmatmul.mubr.bf16.gmra.mxu0 %v1144
        %v2119 = vpop.f32.mrf.mxu0
        %v2120 = vadd.f32 %v540, %v2119
        %v2121 = vpop.f32.mrf.mxu0
        %v2122 = vpop.f32.mrf.mxu0
        %v2123 = vadd.f32 %v540, %v2122
        %v2124 = vpop.f32.mrf.mxu0
        %2125 = vmatprep.mubr.bf16.mxu0 0
        %2126 = vmatmul.mubr.bf16.gmra.mxu0 %v1145
        %v2127 = vpop.f32.mrf.mxu0
        %v2128 = vadd.f32 %v540, %v2127
        %v2129 = vpop.f32.mrf.mxu0
        %v2130 = vpop.f32.mrf.mxu0
        %v2131 = vadd.f32 %v540, %v2130
        %v2132 = vpop.f32.mrf.mxu0
        %2133 = vmatprep.mubr.bf16.mxu0 0
        %2134 = vmatmul.mubr.bf16.gmra.mxu0 %v1146
        %v2135 = vpop.f32.mrf.mxu0
        %v2136 = vadd.f32 %v540, %v2135
        %v2137 = vpop.f32.mrf.mxu0
        %v2138 = vpop.f32.mrf.mxu0
        %v2139 = vadd.f32 %v540, %v2138
        %v2140 = vpop.f32.mrf.mxu0
        %2141 = vmatprep.mubr.bf16.mxu0 0
        %2142 = vmatmul.mubr.bf16.gmra.mxu0 %v1147
        %v2143 = vpop.f32.mrf.mxu0
        %v2144 = vadd.f32 %v540, %v2143
        %v2145 = vpop.f32.mrf.mxu0
        %v2146 = vpop.f32.mrf.mxu0
        %v2147 = vadd.f32 %v540, %v2146
        %v2148 = vpop.f32.mrf.mxu0
        %2149 = vmatprep.mubr.bf16.mxu0 0
        %2150 = vmatmul.mubr.bf16.gmra.mxu0 %v1148
        %v2151 = vpop.f32.mrf.mxu0
        %v2152 = vadd.f32 %v540, %v2151
        %v2153 = vpop.f32.mrf.mxu0
        %v2154 = vpop.f32.mrf.mxu0
        %v2155 = vadd.f32 %v540, %v2154
        %v2156 = vpop.f32.mrf.mxu0
        %2157 = vmatprep.mubr.bf16.mxu0 0
        %2158 = vmatmul.mubr.bf16.gmra.mxu0 %v1149
        %v2159 = vpop.f32.mrf.mxu0
        %v2160 = vadd.f32 %v540, %v2159
        %v2161 = vpop.f32.mrf.mxu0
        %v2162 = vpop.f32.mrf.mxu0
        %v2163 = vadd.f32 %v540, %v2162
        %v2164 = vpop.f32.mrf.mxu0
        %2165 = vmatprep.mubr.bf16.mxu0 0
        %2166 = vmatmul.mubr.bf16.gmra.mxu0 %v1150
        %v2167 = vpop.f32.mrf.mxu0
        %v2168 = vadd.f32 %v540, %v2167
        %v2169 = vpop.f32.mrf.mxu0
        %v2170 = vpop.f32.mrf.mxu0
        %v2171 = vadd.f32 %v540, %v2170
        %v2172 = vpop.f32.mrf.mxu0
        %2173 = vmatprep.mubr.bf16.mxu0 0
        %2174 = vmatmul.mubr.bf16.gmra.mxu0 %v1151
        %v2175 = vpop.f32.mrf.mxu0
        %v2176 = vadd.f32 %v540, %v2175
        %v2177 = vpop.f32.mrf.mxu0
        %v2178 = vpop.f32.mrf.mxu0
        %v2179 = vadd.f32 %v540, %v2178
        %v2180 = vpop.f32.mrf.mxu0
        %2181 = vmatprep.mubr.bf16.mxu0 0
        %2182 = vmatmul.mubr.bf16.gmra.mxu0 %v1152
        %v2183 = vpop.f32.mrf.mxu0
        %v2184 = vadd.f32 %v540, %v2183
        %v2185 = vpop.f32.mrf.mxu0
        %v2186 = vpop.f32.mrf.mxu0
        %v2187 = vadd.f32 %v540, %v2186
        %v2188 = vpop.f32.mrf.mxu0
        %2189 = vmatprep.mubr.bf16.mxu0 0
        %2190 = vmatmul.mubr.bf16.gmra.mxu0 %v1153
        %v2191 = vpop.f32.mrf.mxu0
        %v2192 = vadd.f32 %v540, %v2191
        %v2193 = vpop.f32.mrf.mxu0
        %v2194 = vpop.f32.mrf.mxu0
        %v2195 = vadd.f32 %v540, %v2194
        %v2196 = vpop.f32.mrf.mxu0
        %2197 = vmatprep.mubr.bf16.mxu0 0
        %2198 = vmatmul.mubr.bf16.gmra.mxu0 %v1154
        %v2199 = vpop.f32.mrf.mxu0
        %v2200 = vadd.f32 %v540, %v2199
        %v2201 = vpop.f32.mrf.mxu0
        %v2202 = vpop.f32.mrf.mxu0
        %v2203 = vadd.f32 %v540, %v2202
        %v2204 = vpop.f32.mrf.mxu0
        %2205 = vmatprep.mubr.bf16.mxu0 0
        %2206 = vmatmul.mubr.bf16.gmra.mxu0 %v1155
        %v2207 = vpop.f32.mrf.mxu0
        %v2208 = vadd.f32 %v540, %v2207
        %v2209 = vpop.f32.mrf.mxu0
        %v2210 = vpop.f32.mrf.mxu0
        %v2211 = vadd.f32 %v540, %v2210
        %v2212 = vpop.f32.mrf.mxu0
        %2213 = vmatprep.mubr.bf16.mxu0 0
        %2214 = vmatmul.mubr.bf16.gmra.mxu0 %v1156
        %v2215 = vpop.f32.mrf.mxu0
        %v2216 = vadd.f32 %v540, %v2215
        %v2217 = vpop.f32.mrf.mxu0
        %v2218 = vpop.f32.mrf.mxu0
        %v2219 = vadd.f32 %v540, %v2218
        %v2220 = vpop.f32.mrf.mxu0
        %2221 = vmatprep.mubr.bf16.mxu0 0
        %2222 = vmatmul.mubr.bf16.gmra.mxu0 %v1157
        %v2223 = vpop.f32.mrf.mxu0
        %v2224 = vadd.f32 %v540, %v2223
        %v2225 = vpop.f32.mrf.mxu0
        %v2226 = vpop.f32.mrf.mxu0
        %v2227 = vadd.f32 %v540, %v2226
        %v2228 = vpop.f32.mrf.mxu0
        %2229 = vmatprep.mubr.bf16.mxu0 0
        %2230 = vmatmul.mubr.bf16.gmra.mxu0 %v1158
        %v2231 = vpop.f32.mrf.mxu0
        %v2232 = vadd.f32 %v540, %v2231
        %v2233 = vpop.f32.mrf.mxu0
        %v2234 = vpop.f32.mrf.mxu0
        %v2235 = vadd.f32 %v540, %v2234
        %v2236 = vpop.f32.mrf.mxu0
        %2237 = vmatprep.mubr.bf16.mxu0 0
        %2238 = vmatmul.mubr.bf16.gmra.mxu0 %v1159
        %v2239 = vpop.f32.mrf.mxu0
        %v2240 = vadd.f32 %v540, %v2239
        %v2241 = vpop.f32.mrf.mxu0
        %v2242 = vpop.f32.mrf.mxu0
        %v2243 = vadd.f32 %v540, %v2242
        %v2244 = vpop.f32.mrf.mxu0
        %2245 = vmatprep.mubr.bf16.mxu0 0
        %2246 = vmatmul.mubr.bf16.gmra.mxu0 %v1160
        %v2247 = vpop.f32.mrf.mxu0
        %v2248 = vadd.f32 %v540, %v2247
        %v2249 = vpop.f32.mrf.mxu0
        %v2250 = vpop.f32.mrf.mxu0
        %v2251 = vadd.f32 %v540, %v2250
        %v2252 = vpop.f32.mrf.mxu0
        %2253 = vmatprep.mubr.bf16.mxu0 0
        %2254 = vmatmul.mubr.bf16.gmra.mxu0 %v1161
        %v2255 = vpop.f32.mrf.mxu0
        %v2256 = vadd.f32 %v540, %v2255
        %v2257 = vpop.f32.mrf.mxu0
        %v2258 = vpop.f32.mrf.mxu0
        %v2259 = vadd.f32 %v540, %v2258
        %v2260 = vpop.f32.mrf.mxu0
        %2261 = vmatprep.mubr.bf16.mxu0 0
        %2262 = vmatmul.mubr.bf16.gmra.mxu0 %v1162
        %v2263 = vpop.f32.mrf.mxu0
        %v2264 = vadd.f32 %v540, %v2263
        %v2265 = vpop.f32.mrf.mxu0
        %v2266 = vpop.f32.mrf.mxu0
        %v2267 = vadd.f32 %v540, %v2266
        %v2268 = vpop.f32.mrf.mxu0
        %2269 = vmatprep.mubr.bf16.mxu0 0
        %2270 = vmatmul.mubr.bf16.gmra.mxu0 %v1163
        %v2271 = vpop.f32.mrf.mxu0
        %v2272 = vadd.f32 %v540, %v2271
        %v2273 = vpop.f32.mrf.mxu0
        %v2274 = vpop.f32.mrf.mxu0
        %v2275 = vadd.f32 %v540, %v2274
        %v2276 = vpop.f32.mrf.mxu0
        %2277 = vmatprep.mubr.bf16.mxu0 0
        %2278 = vmatmul.mubr.bf16.gmra.mxu0 %v1164
        %v2279 = vpop.f32.mrf.mxu0
        %v2280 = vadd.f32 %v540, %v2279
        %v2281 = vpop.f32.mrf.mxu0
        %v2282 = vpop.f32.mrf.mxu0
        %v2283 = vadd.f32 %v540, %v2282
        %v2284 = vpop.f32.mrf.mxu0
        %2285 = vmatprep.mubr.bf16.mxu0 0
        %2286 = vmatmul.mubr.bf16.gmra.mxu0 %v1165
        %v2287 = vpop.f32.mrf.mxu0
        %v2288 = vadd.f32 %v540, %v2287
        %v2289 = vpop.f32.mrf.mxu0
        %v2290 = vpop.f32.mrf.mxu0
        %v2291 = vadd.f32 %v540, %v2290
        %v2292 = vpop.f32.mrf.mxu0
        %2293 = vmatprep.mubr.bf16.mxu0 0
        %2294 = vmatmul.mubr.bf16.gmra.mxu0 %v1166
        %v2295 = vpop.f32.mrf.mxu0
        %v2296 = vadd.f32 %v540, %v2295
        %v2297 = vpop.f32.mrf.mxu0
        %v2298 = vpop.f32.mrf.mxu0
        %v2299 = vadd.f32 %v540, %v2298
        %v2300 = vpop.f32.mrf.mxu0
        %2301 = vmatprep.mubr.bf16.mxu0 0
        %2302 = vmatmul.mubr.bf16.gmra.mxu0 %v1167
        %v2303 = vpop.f32.mrf.mxu0
        %v2304 = vadd.f32 %v540, %v2303
        %v2305 = vpop.f32.mrf.mxu0
        %v2306 = vpop.f32.mrf.mxu0
        %v2307 = vadd.f32 %v540, %v2306
        %v2308 = vpop.f32.mrf.mxu0
        %2309 = vmatprep.mubr.bf16.mxu0 0
        %2310 = vmatmul.mubr.bf16.gmra.mxu0 %v1168
        %v2311 = vpop.f32.mrf.mxu0
        %v2312 = vadd.f32 %v540, %v2311
        %v2313 = vpop.f32.mrf.mxu0
        %v2314 = vpop.f32.mrf.mxu0
        %v2315 = vadd.f32 %v540, %v2314
        %v2316 = vpop.f32.mrf.mxu0
        %2317 = vmatprep.mubr.bf16.mxu0 0
        %2318 = vmatmul.mubr.bf16.gmra.mxu0 %v1169
        %v2319 = vpop.f32.mrf.mxu0
        %v2320 = vadd.f32 %v540, %v2319
        %v2321 = vpop.f32.mrf.mxu0
        %v2322 = vpop.f32.mrf.mxu0
        %v2323 = vadd.f32 %v540, %v2322
        %v2324 = vpop.f32.mrf.mxu0
        %2325 = vmatprep.mubr.bf16.mxu0 0
        %2326 = vmatmul.mubr.bf16.gmra.mxu0 %v1170
        %v2327 = vpop.f32.mrf.mxu0
        %v2328 = vadd.f32 %v540, %v2327
        %v2329 = vpop.f32.mrf.mxu0
        %v2330 = vpop.f32.mrf.mxu0
        %v2331 = vadd.f32 %v540, %v2330
        %v2332 = vpop.f32.mrf.mxu0
        %2333 = vmatprep.mubr.bf16.mxu0 0
        %2334 = vmatmul.mubr.bf16.gmra.mxu0 %v1171
        %v2335 = vpop.f32.mrf.mxu0
        %v2336 = vadd.f32 %v540, %v2335
        %v2337 = vpop.f32.mrf.mxu0
        %v2338 = vpop.f32.mrf.mxu0
        %v2339 = vadd.f32 %v540, %v2338
        %v2340 = vpop.f32.mrf.mxu0
        %2341 = vmatprep.mubr.bf16.mxu0 0
        %2342 = vmatmul.mubr.bf16.gmra.mxu0 %v1172
        %v2343 = vpop.f32.mrf.mxu0
        %v2344 = vadd.f32 %v540, %v2343
        %v2345 = vpop.f32.mrf.mxu0
        %v2346 = vpop.f32.mrf.mxu0
        %v2347 = vadd.f32 %v540, %v2346
        %v2348 = vpop.f32.mrf.mxu0
        %2349 = vmatprep.mubr.bf16.mxu0 0
        %2350 = vmatmul.mubr.bf16.gmra.mxu0 %v1173
        %v2351 = vpop.f32.mrf.mxu0
        %v2352 = vadd.f32 %v540, %v2351
        %v2353 = vpop.f32.mrf.mxu0
        %v2354 = vpop.f32.mrf.mxu0
        %v2355 = vadd.f32 %v540, %v2354
        %v2356 = vpop.f32.mrf.mxu0
        %2357 = vmatprep.mubr.bf16.mxu0 0
        %2358 = vmatmul.mubr.bf16.gmra.mxu0 %v1174
        %v2359 = vpop.f32.mrf.mxu0
        %v2360 = vadd.f32 %v540, %v2359
        %v2361 = vpop.f32.mrf.mxu0
        %v2362 = vpop.f32.mrf.mxu0
        %v2363 = vadd.f32 %v540, %v2362
        %v2364 = vpop.f32.mrf.mxu0
        %2365 = vmatprep.mubr.bf16.mxu0 0
        %2366 = vmatmul.mubr.bf16.gmra.mxu0 %v1175
        %v2367 = vpop.f32.mrf.mxu0
        %v2368 = vadd.f32 %v540, %v2367
        %v2369 = vpop.f32.mrf.mxu0
        %v2370 = vpop.f32.mrf.mxu0
        %v2371 = vadd.f32 %v540, %v2370
        %v2372 = vpop.f32.mrf.mxu0
        %2373 = vmatprep.mubr.bf16.mxu0 0
        %2374 = vmatmul.mubr.bf16.gmra.mxu0 %v1176
        %v2375 = vpop.f32.mrf.mxu0
        %v2376 = vadd.f32 %v540, %v2375
        %v2377 = vpop.f32.mrf.mxu0
        %v2378 = vpop.f32.mrf.mxu0
        %v2379 = vadd.f32 %v540, %v2378
        %v2380 = vpop.f32.mrf.mxu0
        %2381 = vmatprep.mubr.bf16.mxu0 0
        %2382 = vmatmul.mubr.bf16.gmra.mxu0 %v1177
        %v2383 = vpop.f32.mrf.mxu0
        %v2384 = vadd.f32 %v540, %v2383
        %v2385 = vpop.f32.mrf.mxu0
        %v2386 = vpop.f32.mrf.mxu0
        %v2387 = vadd.f32 %v540, %v2386
        %v2388 = vpop.f32.mrf.mxu0
        %2389 = vmatprep.mubr.bf16.mxu0 0
        %2390 = vmatmul.mubr.bf16.gmra.mxu0 %v1178
        %v2391 = vpop.f32.mrf.mxu0
        %v2392 = vadd.f32 %v540, %v2391
        %v2393 = vpop.f32.mrf.mxu0
        %v2394 = vpop.f32.mrf.mxu0
        %v2395 = vadd.f32 %v540, %v2394
        %v2396 = vpop.f32.mrf.mxu0
        %2397 = vmatprep.mubr.bf16.mxu0 0
        %2398 = vmatmul.mubr.bf16.gmra.mxu0 %v1179
        %v2399 = vpop.f32.mrf.mxu0
        %v2400 = vadd.f32 %v540, %v2399
        %v2401 = vpop.f32.mrf.mxu0
        %v2402 = vpop.f32.mrf.mxu0
        %v2403 = vadd.f32 %v540, %v2402
        %v2404 = vpop.f32.mrf.mxu0
        %2405 = vmatprep.mubr.bf16.mxu0 0
        %2406 = vmatmul.mubr.bf16.gmra.mxu0 %v1180
        %v2407 = vpop.f32.mrf.mxu0
        %v2408 = vadd.f32 %v540, %v2407
        %v2409 = vpop.f32.mrf.mxu0
        %v2410 = vpop.f32.mrf.mxu0
        %v2411 = vadd.f32 %v540, %v2410
        %v2412 = vpop.f32.mrf.mxu0
        %2413 = vdwg.mxu0
        %v2414 = vtanh.pop %v1392
        %v2415 = vtanh.pop %v1395
        %v2416 = vtanh.pop %v1400
        %v2417 = vtanh.pop %v1403
        %v2418 = vtanh.pop %v1408
        %v2419 = vtanh.pop %v1411
        %v2420 = vtanh.pop %v1416
        %v2421 = vtanh.pop %v1419
        %v2422 = vtanh.pop %v1424
        %v2423 = vtanh.pop %v1427
        %v2424 = vtanh.pop %v1432
        %v2425 = vtanh.pop %v1435
        %v2426 = vtanh.pop %v1440
        %v2427 = vtanh.pop %v1443
        %v2428 = vtanh.pop %v1448
        %v2429 = vtanh.pop %v1451
        %v2430 = vtanh.pop %v1456
        %v2431 = vtanh.pop %v1459
        %v2432 = vtanh.pop %v1464
        %v2433 = vtanh.pop %v1467
        %v2434 = vtanh.pop %v1472
        %v2435 = vtanh.pop %v1475
        %v2436 = vtanh.pop %v1480
        %v2437 = vtanh.pop %v1483
        %v2438 = vtanh.pop %v1488
        %v2439 = vtanh.pop %v1491
        %v2440 = vtanh.pop %v1496
        %v2441 = vtanh.pop %v1499
        %v2442 = vtanh.pop %v1504
        %v2443 = vtanh.pop %v1507
        %v2444 = vtanh.pop %v1512
        %v2445 = vtanh.pop %v1515
        %v2446 = vtanh.pop %v1520
        %v2447 = vtanh.pop %v1523
        %v2448 = vtanh.pop %v1528
        %v2449 = vtanh.pop %v1531
        %v2450 = vtanh.pop %v1536
        %v2451 = vtanh.pop %v1539
        %v2452 = vtanh.pop %v1544
        %v2453 = vtanh.pop %v1547
        %v2454 = vtanh.pop %v1552
        %v2455 = vtanh.pop %v1555
        %v2456 = vtanh.pop %v1560
        %v2457 = vtanh.pop %v1563
        %v2458 = vtanh.pop %v1568
        %v2459 = vtanh.pop %v1571
        %v2460 = vtanh.pop %v1576
        %v2461 = vtanh.pop %v1579
        %v2462 = vtanh.pop %v1584
        %v2463 = vtanh.pop %v1587
        %v2464 = vtanh.pop %v1592
        %v2465 = vtanh.pop %v1595
        %v2466 = vtanh.pop %v1600
        %v2467 = vtanh.pop %v1603
        %v2468 = vtanh.pop %v1608
        %v2469 = vtanh.pop %v1611
        %v2470 = vtanh.pop %v1616
        %v2471 = vtanh.pop %v1619
        %v2472 = vtanh.pop %v1624
        %v2473 = vtanh.pop %v1627
        %v2474 = vtanh.pop %v1632
        %v2475 = vtanh.pop %v1635
        %v2476 = vtanh.pop %v1640
        %v2477 = vtanh.pop %v1643
        %v2478 = vtanh.pop %v1648
        %v2479 = vtanh.pop %v1651
        %v2480 = vtanh.pop %v1656
        %v2481 = vtanh.pop %v1659
        %v2482 = vtanh.pop %v1664
        %v2483 = vtanh.pop %v1667
        %v2484 = vtanh.pop %v1672
        %v2485 = vtanh.pop %v1675
        %v2486 = vtanh.pop %v1680
        %v2487 = vtanh.pop %v1683
        %v2488 = vtanh.pop %v1688
        %v2489 = vtanh.pop %v1691
        %v2490 = vtanh.pop %v1696
        %v2491 = vtanh.pop %v1699
        %v2492 = vtanh.pop %v1704
        %v2493 = vtanh.pop %v1707
        %v2494 = vtanh.pop %v1712
        %v2495 = vtanh.pop %v1715
        %v2496 = vtanh.pop %v1720
        %v2497 = vtanh.pop %v1723
        %v2498 = vtanh.pop %v1728
        %v2499 = vtanh.pop %v1731
        %v2500 = vtanh.pop %v1736
        %v2501 = vtanh.pop %v1739
        %v2502 = vtanh.pop %v1744
        %v2503 = vtanh.pop %v1747
        %v2504 = vtanh.pop %v1752
        %v2505 = vtanh.pop %v1755
        %v2506 = vtanh.pop %v1760
        %v2507 = vtanh.pop %v1763
        %v2508 = vtanh.pop %v1768
        %v2509 = vtanh.pop %v1771
        %v2510 = vtanh.pop %v1776
        %v2511 = vtanh.pop %v1779
        %v2512 = vtanh.pop %v1784
        %v2513 = vtanh.pop %v1787
        %v2514 = vtanh.pop %v1792
        %v2515 = vtanh.pop %v1795
        %v2516 = vtanh.pop %v1800
        %v2517 = vtanh.pop %v1803
        %v2518 = vtanh.pop %v1808
        %v2519 = vtanh.pop %v1811
        %v2520 = vtanh.pop %v1816
        %v2521 = vtanh.pop %v1819
        %v2522 = vtanh.pop %v1824
        %v2523 = vtanh.pop %v1827
        %v2524 = vtanh.pop %v1832
        %v2525 = vtanh.pop %v1835
        %v2526 = vtanh.pop %v1840
        %v2527 = vtanh.pop %v1843
        %v2528 = vtanh.pop %v1848
        %v2529 = vtanh.pop %v1851
        %v2530 = vtanh.pop %v1856
        %v2531 = vtanh.pop %v1859
        %v2532 = vtanh.pop %v1864
        %v2533 = vtanh.pop %v1867
        %v2534 = vtanh.pop %v1872
        %v2535 = vtanh.pop %v1875
        %v2536 = vtanh.pop %v1880
        %v2537 = vtanh.pop %v1883
        %v2538 = vtanh.pop %v1888
        %v2539 = vtanh.pop %v1891
        %v2540 = vtanh.pop %v1896
        %v2541 = vtanh.pop %v1899
        %v2542 = vtanh.pop %v1904
        %v2543 = vtanh.pop %v1907
        %v2544 = vtanh.pop %v1912
        %v2545 = vtanh.pop %v1915
        %v2546 = vtanh.pop %v1920
        %v2547 = vtanh.pop %v1923
        %v2548 = vtanh.pop %v1928
        %v2549 = vtanh.pop %v1931
        %v2550 = vtanh.pop %v1936
        %v2551 = vtanh.pop %v1939
        %v2552 = vtanh.pop %v1944
        %v2553 = vtanh.pop %v1947
        %v2554 = vtanh.pop %v1952
        %v2555 = vtanh.pop %v1955
        %v2556 = vtanh.pop %v1960
        %v2557 = vtanh.pop %v1963
        %v2558 = vtanh.pop %v1968
        %v2559 = vtanh.pop %v1971
        %v2560 = vtanh.pop %v1976
        %v2561 = vtanh.pop %v1979
        %v2562 = vtanh.pop %v1984
        %v2563 = vtanh.pop %v1987
        %v2564 = vtanh.pop %v1992
        %v2565 = vtanh.pop %v1995
        %v2566 = vtanh.pop %v2000
        %v2567 = vtanh.pop %v2003
        %v2568 = vtanh.pop %v2008
        %v2569 = vtanh.pop %v2011
        %v2570 = vtanh.pop %v2016
        %v2571 = vtanh.pop %v2019
        %v2572 = vtanh.pop %v2024
        %v2573 = vtanh.pop %v2027
        %v2574 = vtanh.pop %v2032
        %v2575 = vtanh.pop %v2035
        %v2576 = vtanh.pop %v2040
        %v2577 = vtanh.pop %v2043
        %v2578 = vtanh.pop %v2048
        %v2579 = vtanh.pop %v2051
        %v2580 = vtanh.pop %v2056
        %v2581 = vtanh.pop %v2059
        %v2582 = vtanh.pop %v2064
        %v2583 = vtanh.pop %v2067
        %v2584 = vtanh.pop %v2072
        %v2585 = vtanh.pop %v2075
        %v2586 = vtanh.pop %v2080
        %v2587 = vtanh.pop %v2083
        %v2588 = vtanh.pop %v2088
        %v2589 = vtanh.pop %v2091
        %v2590 = vtanh.pop %v2096
        %v2591 = vtanh.pop %v2099
        %v2592 = vtanh.pop %v2104
        %v2593 = vtanh.pop %v2107
        %v2594 = vtanh.pop %v2112
        %v2595 = vtanh.pop %v2115
        %v2596 = vtanh.pop %v2120
        %v2597 = vtanh.pop %v2123
        %v2598 = vtanh.pop %v2128
        %v2599 = vtanh.pop %v2131
        %v2600 = vtanh.pop %v2136
        %v2601 = vtanh.pop %v2139
        %v2602 = vtanh.pop %v2144
        %v2603 = vtanh.pop %v2147
        %v2604 = vtanh.pop %v2152
        %v2605 = vtanh.pop %v2155
        %v2606 = vtanh.pop %v2160
        %v2607 = vtanh.pop %v2163
        %v2608 = vtanh.pop %v2168
        %v2609 = vtanh.pop %v2171
        %v2610 = vtanh.pop %v2176
        %v2611 = vtanh.pop %v2179
        %v2612 = vtanh.pop %v2184
        %v2613 = vtanh.pop %v2187
        %v2614 = vtanh.pop %v2192
        %v2615 = vtanh.pop %v2195
        %v2616 = vtanh.pop %v2200
        %v2617 = vtanh.pop %v2203
        %v2618 = vtanh.pop %v2208
        %v2619 = vtanh.pop %v2211
        %v2620 = vtanh.pop %v2216
        %v2621 = vtanh.pop %v2219
        %v2622 = vtanh.pop %v2224
        %v2623 = vtanh.pop %v2227
        %v2624 = vtanh.pop %v2232
        %v2625 = vtanh.pop %v2235
        %v2626 = vtanh.pop %v2240
        %v2627 = vtanh.pop %v2243
        %v2628 = vtanh.pop %v2248
        %v2629 = vtanh.pop %v2251
        %v2630 = vtanh.pop %v2256
        %v2631 = vtanh.pop %v2259
        %v2632 = vtanh.pop %v2264
        %v2633 = vtanh.pop %v2267
        %v2634 = vtanh.pop %v2272
        %v2635 = vtanh.pop %v2275
        %v2636 = vtanh.pop %v2280
        %v2637 = vtanh.pop %v2283
        %v2638 = vtanh.pop %v2288
        %v2639 = vtanh.pop %v2291
        %v2640 = vtanh.pop %v2296
        %v2641 = vtanh.pop %v2299
        %v2642 = vtanh.pop %v2304
        %v2643 = vtanh.pop %v2307
        %v2644 = vtanh.pop %v2312
        %v2645 = vtanh.pop %v2315
        %v2646 = vtanh.pop %v2320
        %v2647 = vtanh.pop %v2323
        %v2648 = vtanh.pop %v2328
        %v2649 = vtanh.pop %v2331
        %v2650 = vtanh.pop %v2336
        %v2651 = vtanh.pop %v2339
        %v2652 = vtanh.pop %v2344
        %v2653 = vtanh.pop %v2347
        %v2654 = vtanh.pop %v2352
        %v2655 = vtanh.pop %v2355
        %v2656 = vtanh.pop %v2360
        %v2657 = vtanh.pop %v2363
        %v2658 = vtanh.pop %v2368
        %v2659 = vtanh.pop %v2371
        %v2660 = vtanh.pop %v2376
        %v2661 = vtanh.pop %v2379
        %v2662 = vtanh.pop %v2384
        %v2663 = vtanh.pop %v2387
        %v2664 = vtanh.pop %v2392
        %v2665 = vtanh.pop %v2395
        %v2666 = vtanh.pop %v2400
        %v2667 = vtanh.pop %v2403
        %v2668 = vtanh.pop %v2408
        %v2669 = vtanh.pop %v2411
        %v2670 = vld [vmem:[%s4] sm:$0x1]
        %v2672 = vlaneseq
        %v2673 = vshrl.u32 %v2672, 7
        %v2674 = vsub.s32 0, %v2673
        %v2675 = vrot.slane %v2670, %v2674
        %v2677 = vmul.f32 %v2414, %v2675
        %v2678 = vmul.f32 %v2415, %v2675
        %v2679 = vmul.f32 %v2416, %v2675
        %v2680 = vmul.f32 %v2417, %v2675
        %v2681 = vmul.f32 %v2418, %v2675
        %v2682 = vmul.f32 %v2419, %v2675
        %v2683 = vmul.f32 %v2420, %v2675
        %v2684 = vmul.f32 %v2421, %v2675
        %v2685 = vmul.f32 %v2422, %v2675
        %v2686 = vmul.f32 %v2423, %v2675
        %v2687 = vmul.f32 %v2424, %v2675
        %v2688 = vmul.f32 %v2425, %v2675
        %v2689 = vmul.f32 %v2426, %v2675
        %v2690 = vmul.f32 %v2427, %v2675
        %v2691 = vmul.f32 %v2428, %v2675
        %v2692 = vmul.f32 %v2429, %v2675
        %v2693 = vmul.f32 %v2430, %v2675
        %v2694 = vmul.f32 %v2431, %v2675
        %v2695 = vmul.f32 %v2432, %v2675
        %v2696 = vmul.f32 %v2433, %v2675
        %v2697 = vmul.f32 %v2434, %v2675
        %v2698 = vmul.f32 %v2435, %v2675
        %v2699 = vmul.f32 %v2436, %v2675
        %v2700 = vmul.f32 %v2437, %v2675
        %v2701 = vmul.f32 %v2438, %v2675
        %v2702 = vmul.f32 %v2439, %v2675
        %v2703 = vmul.f32 %v2440, %v2675
        %v2704 = vmul.f32 %v2441, %v2675
        %v2705 = vmul.f32 %v2442, %v2675
        %v2706 = vmul.f32 %v2443, %v2675
        %v2707 = vmul.f32 %v2444, %v2675
        %v2708 = vmul.f32 %v2445, %v2675
        %v2709 = vmul.f32 %v2446, %v2675
        %v2710 = vmul.f32 %v2447, %v2675
        %v2711 = vmul.f32 %v2448, %v2675
        %v2712 = vmul.f32 %v2449, %v2675
        %v2713 = vmul.f32 %v2450, %v2675
        %v2714 = vmul.f32 %v2451, %v2675
        %v2715 = vmul.f32 %v2452, %v2675
        %v2716 = vmul.f32 %v2453, %v2675
        %v2717 = vmul.f32 %v2454, %v2675
        %v2718 = vmul.f32 %v2455, %v2675
        %v2719 = vmul.f32 %v2456, %v2675
        %v2720 = vmul.f32 %v2457, %v2675
        %v2721 = vmul.f32 %v2458, %v2675
        %v2722 = vmul.f32 %v2459, %v2675
        %v2723 = vmul.f32 %v2460, %v2675
        %v2724 = vmul.f32 %v2461, %v2675
        %v2725 = vmul.f32 %v2462, %v2675
        %v2726 = vmul.f32 %v2463, %v2675
        %v2727 = vmul.f32 %v2464, %v2675
        %v2728 = vmul.f32 %v2465, %v2675
        %v2729 = vmul.f32 %v2466, %v2675
        %v2730 = vmul.f32 %v2467, %v2675
        %v2731 = vmul.f32 %v2468, %v2675
        %v2732 = vmul.f32 %v2469, %v2675
        %v2733 = vmul.f32 %v2470, %v2675
        %v2734 = vmul.f32 %v2471, %v2675
        %v2735 = vmul.f32 %v2472, %v2675
        %v2736 = vmul.f32 %v2473, %v2675
        %v2737 = vmul.f32 %v2474, %v2675
        %v2738 = vmul.f32 %v2475, %v2675
        %v2739 = vmul.f32 %v2476, %v2675
        %v2740 = vmul.f32 %v2477, %v2675
        %v2741 = vmul.f32 %v2478, %v2675
        %v2742 = vmul.f32 %v2479, %v2675
        %v2743 = vmul.f32 %v2480, %v2675
        %v2744 = vmul.f32 %v2481, %v2675
        %v2745 = vmul.f32 %v2482, %v2675
        %v2746 = vmul.f32 %v2483, %v2675
        %v2747 = vmul.f32 %v2484, %v2675
        %v2748 = vmul.f32 %v2485, %v2675
        %v2749 = vmul.f32 %v2486, %v2675
        %v2750 = vmul.f32 %v2487, %v2675
        %v2751 = vmul.f32 %v2488, %v2675
        %v2752 = vmul.f32 %v2489, %v2675
        %v2753 = vmul.f32 %v2490, %v2675
        %v2754 = vmul.f32 %v2491, %v2675
        %v2755 = vmul.f32 %v2492, %v2675
        %v2756 = vmul.f32 %v2493, %v2675
        %v2757 = vmul.f32 %v2494, %v2675
        %v2758 = vmul.f32 %v2495, %v2675
        %v2759 = vmul.f32 %v2496, %v2675
        %v2760 = vmul.f32 %v2497, %v2675
        %v2761 = vmul.f32 %v2498, %v2675
        %v2762 = vmul.f32 %v2499, %v2675
        %v2763 = vmul.f32 %v2500, %v2675
        %v2764 = vmul.f32 %v2501, %v2675
        %v2765 = vmul.f32 %v2502, %v2675
        %v2766 = vmul.f32 %v2503, %v2675
        %v2767 = vmul.f32 %v2504, %v2675
        %v2768 = vmul.f32 %v2505, %v2675
        %v2769 = vmul.f32 %v2506, %v2675
        %v2770 = vmul.f32 %v2507, %v2675
        %v2771 = vmul.f32 %v2508, %v2675
        %v2772 = vmul.f32 %v2509, %v2675
        %v2773 = vmul.f32 %v2510, %v2675
        %v2774 = vmul.f32 %v2511, %v2675
        %v2775 = vmul.f32 %v2512, %v2675
        %v2776 = vmul.f32 %v2513, %v2675
        %v2777 = vmul.f32 %v2514, %v2675
        %v2778 = vmul.f32 %v2515, %v2675
        %v2779 = vmul.f32 %v2516, %v2675
        %v2780 = vmul.f32 %v2517, %v2675
        %v2781 = vmul.f32 %v2518, %v2675
        %v2782 = vmul.f32 %v2519, %v2675
        %v2783 = vmul.f32 %v2520, %v2675
        %v2784 = vmul.f32 %v2521, %v2675
        %v2785 = vmul.f32 %v2522, %v2675
        %v2786 = vmul.f32 %v2523, %v2675
        %v2787 = vmul.f32 %v2524, %v2675
        %v2788 = vmul.f32 %v2525, %v2675
        %v2789 = vmul.f32 %v2526, %v2675
        %v2790 = vmul.f32 %v2527, %v2675
        %v2791 = vmul.f32 %v2528, %v2675
        %v2792 = vmul.f32 %v2529, %v2675
        %v2793 = vmul.f32 %v2530, %v2675
        %v2794 = vmul.f32 %v2531, %v2675
        %v2795 = vmul.f32 %v2532, %v2675
        %v2796 = vmul.f32 %v2533, %v2675
        %v2797 = vmul.f32 %v2534, %v2675
        %v2798 = vmul.f32 %v2535, %v2675
        %v2799 = vmul.f32 %v2536, %v2675
        %v2800 = vmul.f32 %v2537, %v2675
        %v2801 = vmul.f32 %v2538, %v2675
        %v2802 = vmul.f32 %v2539, %v2675
        %v2803 = vmul.f32 %v2540, %v2675
        %v2804 = vmul.f32 %v2541, %v2675
        %v2805 = vmul.f32 %v2542, %v2675
        %v2806 = vmul.f32 %v2543, %v2675
        %v2807 = vmul.f32 %v2544, %v2675
        %v2808 = vmul.f32 %v2545, %v2675
        %v2809 = vmul.f32 %v2546, %v2675
        %v2810 = vmul.f32 %v2547, %v2675
        %v2811 = vmul.f32 %v2548, %v2675
        %v2812 = vmul.f32 %v2549, %v2675
        %v2813 = vmul.f32 %v2550, %v2675
        %v2814 = vmul.f32 %v2551, %v2675
        %v2815 = vmul.f32 %v2552, %v2675
        %v2816 = vmul.f32 %v2553, %v2675
        %v2817 = vmul.f32 %v2554, %v2675
        %v2818 = vmul.f32 %v2555, %v2675
        %v2819 = vmul.f32 %v2556, %v2675
        %v2820 = vmul.f32 %v2557, %v2675
        %v2821 = vmul.f32 %v2558, %v2675
        %v2822 = vmul.f32 %v2559, %v2675
        %v2823 = vmul.f32 %v2560, %v2675
        %v2824 = vmul.f32 %v2561, %v2675
        %v2825 = vmul.f32 %v2562, %v2675
        %v2826 = vmul.f32 %v2563, %v2675
        %v2827 = vmul.f32 %v2564, %v2675
        %v2828 = vmul.f32 %v2565, %v2675
        %v2829 = vmul.f32 %v2566, %v2675
        %v2830 = vmul.f32 %v2567, %v2675
        %v2831 = vmul.f32 %v2568, %v2675
        %v2832 = vmul.f32 %v2569, %v2675
        %v2833 = vmul.f32 %v2570, %v2675
        %v2834 = vmul.f32 %v2571, %v2675
        %v2835 = vmul.f32 %v2572, %v2675
        %v2836 = vmul.f32 %v2573, %v2675
        %v2837 = vmul.f32 %v2574, %v2675
        %v2838 = vmul.f32 %v2575, %v2675
        %v2839 = vmul.f32 %v2576, %v2675
        %v2840 = vmul.f32 %v2577, %v2675
        %v2841 = vmul.f32 %v2578, %v2675
        %v2842 = vmul.f32 %v2579, %v2675
        %v2843 = vmul.f32 %v2580, %v2675
        %v2844 = vmul.f32 %v2581, %v2675
        %v2845 = vmul.f32 %v2582, %v2675
        %v2846 = vmul.f32 %v2583, %v2675
        %v2847 = vmul.f32 %v2584, %v2675
        %v2848 = vmul.f32 %v2585, %v2675
        %v2849 = vmul.f32 %v2586, %v2675
        %v2850 = vmul.f32 %v2587, %v2675
        %v2851 = vmul.f32 %v2588, %v2675
        %v2852 = vmul.f32 %v2589, %v2675
        %v2853 = vmul.f32 %v2590, %v2675
        %v2854 = vmul.f32 %v2591, %v2675
        %v2855 = vmul.f32 %v2592, %v2675
        %v2856 = vmul.f32 %v2593, %v2675
        %v2857 = vmul.f32 %v2594, %v2675
        %v2858 = vmul.f32 %v2595, %v2675
        %v2859 = vmul.f32 %v2596, %v2675
        %v2860 = vmul.f32 %v2597, %v2675
        %v2861 = vmul.f32 %v2598, %v2675
        %v2862 = vmul.f32 %v2599, %v2675
        %v2863 = vmul.f32 %v2600, %v2675
        %v2864 = vmul.f32 %v2601, %v2675
        %v2865 = vmul.f32 %v2602, %v2675
        %v2866 = vmul.f32 %v2603, %v2675
        %v2867 = vmul.f32 %v2604, %v2675
        %v2868 = vmul.f32 %v2605, %v2675
        %v2869 = vmul.f32 %v2606, %v2675
        %v2870 = vmul.f32 %v2607, %v2675
        %v2871 = vmul.f32 %v2608, %v2675
        %v2872 = vmul.f32 %v2609, %v2675
        %v2873 = vmul.f32 %v2610, %v2675
        %v2874 = vmul.f32 %v2611, %v2675
        %v2875 = vmul.f32 %v2612, %v2675
        %v2876 = vmul.f32 %v2613, %v2675
        %v2877 = vmul.f32 %v2614, %v2675
        %v2878 = vmul.f32 %v2615, %v2675
        %v2879 = vmul.f32 %v2616, %v2675
        %v2880 = vmul.f32 %v2617, %v2675
        %v2881 = vmul.f32 %v2618, %v2675
        %v2882 = vmul.f32 %v2619, %v2675
        %v2883 = vmul.f32 %v2620, %v2675
        %v2884 = vmul.f32 %v2621, %v2675
        %v2885 = vmul.f32 %v2622, %v2675
        %v2886 = vmul.f32 %v2623, %v2675
        %v2887 = vmul.f32 %v2624, %v2675
        %v2888 = vmul.f32 %v2625, %v2675
        %v2889 = vmul.f32 %v2626, %v2675
        %v2890 = vmul.f32 %v2627, %v2675
        %v2891 = vmul.f32 %v2628, %v2675
        %v2892 = vmul.f32 %v2629, %v2675
        %v2893 = vmul.f32 %v2630, %v2675
        %v2894 = vmul.f32 %v2631, %v2675
        %v2895 = vmul.f32 %v2632, %v2675
        %v2896 = vmul.f32 %v2633, %v2675
        %v2897 = vmul.f32 %v2634, %v2675
        %v2898 = vmul.f32 %v2635, %v2675
        %v2899 = vmul.f32 %v2636, %v2675
        %v2900 = vmul.f32 %v2637, %v2675
        %v2901 = vmul.f32 %v2638, %v2675
        %v2902 = vmul.f32 %v2639, %v2675
        %v2903 = vmul.f32 %v2640, %v2675
        %v2904 = vmul.f32 %v2641, %v2675
        %v2905 = vmul.f32 %v2642, %v2675
        %v2906 = vmul.f32 %v2643, %v2675
        %v2907 = vmul.f32 %v2644, %v2675
        %v2908 = vmul.f32 %v2645, %v2675
        %v2909 = vmul.f32 %v2646, %v2675
        %v2910 = vmul.f32 %v2647, %v2675
        %v2911 = vmul.f32 %v2648, %v2675
        %v2912 = vmul.f32 %v2649, %v2675
        %v2913 = vmul.f32 %v2650, %v2675
        %v2914 = vmul.f32 %v2651, %v2675
        %v2915 = vmul.f32 %v2652, %v2675
        %v2916 = vmul.f32 %v2653, %v2675
        %v2917 = vmul.f32 %v2654, %v2675
        %v2918 = vmul.f32 %v2655, %v2675
        %v2919 = vmul.f32 %v2656, %v2675
        %v2920 = vmul.f32 %v2657, %v2675
        %v2921 = vmul.f32 %v2658, %v2675
        %v2922 = vmul.f32 %v2659, %v2675
        %v2923 = vmul.f32 %v2660, %v2675
        %v2924 = vmul.f32 %v2661, %v2675
        %v2925 = vmul.f32 %v2662, %v2675
        %v2926 = vmul.f32 %v2663, %v2675
        %v2927 = vmul.f32 %v2664, %v2675
        %v2928 = vmul.f32 %v2665, %v2675
        %v2929 = vmul.f32 %v2666, %v2675
        %v2930 = vmul.f32 %v2667, %v2675
        %v2931 = vmul.f32 %v2668, %v2675
        %v2932 = vmul.f32 %v2669, %v2675
        %vm2933 = vcmask 523264
        %v2934 = vsel %vm2933, %v2677, 0.0
        %2935 = vadd.xlane.f32.xlu0 %v2934
        %v2936 = vpop.xlane.xlu0 %2935
        %v2937 = vsel %vm2933, %v2678, 0.0
        %2938 = vadd.xlane.f32.xlu0 %v2937
        %v2939 = vpop.xlane.xlu0 %2938
        %v2940 = vsel %vm2933, %v2679, 0.0
        %2941 = vadd.xlane.f32.xlu0 %v2940
        %v2942 = vpop.xlane.xlu0 %2941
        %v2943 = vsel %vm2933, %v2680, 0.0
        %2944 = vadd.xlane.f32.xlu0 %v2943
        %v2945 = vpop.xlane.xlu0 %2944
        %v2946 = vsel %vm2933, %v2681, 0.0
        %2947 = vadd.xlane.f32.xlu0 %v2946
        %v2948 = vpop.xlane.xlu0 %2947
        %v2949 = vsel %vm2933, %v2682, 0.0
        %2950 = vadd.xlane.f32.xlu0 %v2949
        %v2951 = vpop.xlane.xlu0 %2950
        %v2952 = vsel %vm2933, %v2683, 0.0
        %2953 = vadd.xlane.f32.xlu0 %v2952
        %v2954 = vpop.xlane.xlu0 %2953
        %v2955 = vsel %vm2933, %v2684, 0.0
        %2956 = vadd.xlane.f32.xlu0 %v2955
        %v2957 = vpop.xlane.xlu0 %2956
        %v2958 = vsel %vm2933, %v2685, 0.0
        %2959 = vadd.xlane.f32.xlu0 %v2958
        %v2960 = vpop.xlane.xlu0 %2959
        %v2961 = vsel %vm2933, %v2686, 0.0
        %2962 = vadd.xlane.f32.xlu0 %v2961
        %v2963 = vpop.xlane.xlu0 %2962
        %v2964 = vsel %vm2933, %v2687, 0.0
        %2965 = vadd.xlane.f32.xlu0 %v2964
        %v2966 = vpop.xlane.xlu0 %2965
        %v2967 = vsel %vm2933, %v2688, 0.0
        %2968 = vadd.xlane.f32.xlu0 %v2967
        %v2969 = vpop.xlane.xlu0 %2968
        %v2970 = vsel %vm2933, %v2689, 0.0
        %2971 = vadd.xlane.f32.xlu0 %v2970
        %v2972 = vpop.xlane.xlu0 %2971
        %v2973 = vsel %vm2933, %v2690, 0.0
        %2974 = vadd.xlane.f32.xlu0 %v2973
        %v2975 = vpop.xlane.xlu0 %2974
        %v2976 = vsel %vm2933, %v2691, 0.0
        %2977 = vadd.xlane.f32.xlu0 %v2976
        %v2978 = vpop.xlane.xlu0 %2977
        %v2979 = vsel %vm2933, %v2692, 0.0
        %2980 = vadd.xlane.f32.xlu0 %v2979
        %v2981 = vpop.xlane.xlu0 %2980
        %v2982 = vsel %vm2933, %v2693, 0.0
        %2983 = vadd.xlane.f32.xlu0 %v2982
        %v2984 = vpop.xlane.xlu0 %2983
        %v2985 = vsel %vm2933, %v2694, 0.0
        %2986 = vadd.xlane.f32.xlu0 %v2985
        %v2987 = vpop.xlane.xlu0 %2986
        %v2988 = vsel %vm2933, %v2695, 0.0
        %2989 = vadd.xlane.f32.xlu0 %v2988
        %v2990 = vpop.xlane.xlu0 %2989
        %v2991 = vsel %vm2933, %v2696, 0.0
        %2992 = vadd.xlane.f32.xlu0 %v2991
        %v2993 = vpop.xlane.xlu0 %2992
        %v2994 = vsel %vm2933, %v2697, 0.0
        %2995 = vadd.xlane.f32.xlu0 %v2994
        %v2996 = vpop.xlane.xlu0 %2995
        %v2997 = vsel %vm2933, %v2698, 0.0
        %2998 = vadd.xlane.f32.xlu0 %v2997
        %v2999 = vpop.xlane.xlu0 %2998
        %v3000 = vsel %vm2933, %v2699, 0.0
        %3001 = vadd.xlane.f32.xlu0 %v3000
        %v3002 = vpop.xlane.xlu0 %3001
        %v3003 = vsel %vm2933, %v2700, 0.0
        %3004 = vadd.xlane.f32.xlu0 %v3003
        %v3005 = vpop.xlane.xlu0 %3004
        %v3006 = vsel %vm2933, %v2701, 0.0
        %3007 = vadd.xlane.f32.xlu0 %v3006
        %v3008 = vpop.xlane.xlu0 %3007
        %v3009 = vsel %vm2933, %v2702, 0.0
        %3010 = vadd.xlane.f32.xlu0 %v3009
        %v3011 = vpop.xlane.xlu0 %3010
        %v3012 = vsel %vm2933, %v2703, 0.0
        %3013 = vadd.xlane.f32.xlu0 %v3012
        %v3014 = vpop.xlane.xlu0 %3013
        %v3015 = vsel %vm2933, %v2704, 0.0
        %3016 = vadd.xlane.f32.xlu0 %v3015
        %v3017 = vpop.xlane.xlu0 %3016
        %v3018 = vsel %vm2933, %v2705, 0.0
        %3019 = vadd.xlane.f32.xlu0 %v3018
        %v3020 = vpop.xlane.xlu0 %3019
        %v3021 = vsel %vm2933, %v2706, 0.0
        %3022 = vadd.xlane.f32.xlu0 %v3021
        %v3023 = vpop.xlane.xlu0 %3022
        %v3024 = vsel %vm2933, %v2707, 0.0
        %3025 = vadd.xlane.f32.xlu0 %v3024
        %v3026 = vpop.xlane.xlu0 %3025
        %v3027 = vsel %vm2933, %v2708, 0.0
        %3028 = vadd.xlane.f32.xlu0 %v3027
        %v3029 = vpop.xlane.xlu0 %3028
        %v3030 = vsel %vm2933, %v2709, 0.0
        %3031 = vadd.xlane.f32.xlu0 %v3030
        %v3032 = vpop.xlane.xlu0 %3031
        %v3033 = vsel %vm2933, %v2710, 0.0
        %3034 = vadd.xlane.f32.xlu0 %v3033
        %v3035 = vpop.xlane.xlu0 %3034
        %v3036 = vsel %vm2933, %v2711, 0.0
        %3037 = vadd.xlane.f32.xlu0 %v3036
        %v3038 = vpop.xlane.xlu0 %3037
        %v3039 = vsel %vm2933, %v2712, 0.0
        %3040 = vadd.xlane.f32.xlu0 %v3039
        %v3041 = vpop.xlane.xlu0 %3040
        %v3042 = vsel %vm2933, %v2713, 0.0
        %3043 = vadd.xlane.f32.xlu0 %v3042
        %v3044 = vpop.xlane.xlu0 %3043
        %v3045 = vsel %vm2933, %v2714, 0.0
        %3046 = vadd.xlane.f32.xlu0 %v3045
        %v3047 = vpop.xlane.xlu0 %3046
        %v3048 = vsel %vm2933, %v2715, 0.0
        %3049 = vadd.xlane.f32.xlu0 %v3048
        %v3050 = vpop.xlane.xlu0 %3049
        %v3051 = vsel %vm2933, %v2716, 0.0
        %3052 = vadd.xlane.f32.xlu0 %v3051
        %v3053 = vpop.xlane.xlu0 %3052
        %v3054 = vsel %vm2933, %v2717, 0.0
        %3055 = vadd.xlane.f32.xlu0 %v3054
        %v3056 = vpop.xlane.xlu0 %3055
        %v3057 = vsel %vm2933, %v2718, 0.0
        %3058 = vadd.xlane.f32.xlu0 %v3057
        %v3059 = vpop.xlane.xlu0 %3058
        %v3060 = vsel %vm2933, %v2719, 0.0
        %3061 = vadd.xlane.f32.xlu0 %v3060
        %v3062 = vpop.xlane.xlu0 %3061
        %v3063 = vsel %vm2933, %v2720, 0.0
        %3064 = vadd.xlane.f32.xlu0 %v3063
        %v3065 = vpop.xlane.xlu0 %3064
        %v3066 = vsel %vm2933, %v2721, 0.0
        %3067 = vadd.xlane.f32.xlu0 %v3066
        %v3068 = vpop.xlane.xlu0 %3067
        %v3069 = vsel %vm2933, %v2722, 0.0
        %3070 = vadd.xlane.f32.xlu0 %v3069
        %v3071 = vpop.xlane.xlu0 %3070
        %v3072 = vsel %vm2933, %v2723, 0.0
        %3073 = vadd.xlane.f32.xlu0 %v3072
        %v3074 = vpop.xlane.xlu0 %3073
        %v3075 = vsel %vm2933, %v2724, 0.0
        %3076 = vadd.xlane.f32.xlu0 %v3075
        %v3077 = vpop.xlane.xlu0 %3076
        %v3078 = vsel %vm2933, %v2725, 0.0
        %3079 = vadd.xlane.f32.xlu0 %v3078
        %v3080 = vpop.xlane.xlu0 %3079
        %v3081 = vsel %vm2933, %v2726, 0.0
        %3082 = vadd.xlane.f32.xlu0 %v3081
        %v3083 = vpop.xlane.xlu0 %3082
        %v3084 = vsel %vm2933, %v2727, 0.0
        %3085 = vadd.xlane.f32.xlu0 %v3084
        %v3086 = vpop.xlane.xlu0 %3085
        %v3087 = vsel %vm2933, %v2728, 0.0
        %3088 = vadd.xlane.f32.xlu0 %v3087
        %v3089 = vpop.xlane.xlu0 %3088
        %v3090 = vsel %vm2933, %v2729, 0.0
        %3091 = vadd.xlane.f32.xlu0 %v3090
        %v3092 = vpop.xlane.xlu0 %3091
        %v3093 = vsel %vm2933, %v2730, 0.0
        %3094 = vadd.xlane.f32.xlu0 %v3093
        %v3095 = vpop.xlane.xlu0 %3094
        %v3096 = vsel %vm2933, %v2731, 0.0
        %3097 = vadd.xlane.f32.xlu0 %v3096
        %v3098 = vpop.xlane.xlu0 %3097
        %v3099 = vsel %vm2933, %v2732, 0.0
        %3100 = vadd.xlane.f32.xlu0 %v3099
        %v3101 = vpop.xlane.xlu0 %3100
        %v3102 = vsel %vm2933, %v2733, 0.0
        %3103 = vadd.xlane.f32.xlu0 %v3102
        %v3104 = vpop.xlane.xlu0 %3103
        %v3105 = vsel %vm2933, %v2734, 0.0
        %3106 = vadd.xlane.f32.xlu0 %v3105
        %v3107 = vpop.xlane.xlu0 %3106
        %v3108 = vsel %vm2933, %v2735, 0.0
        %3109 = vadd.xlane.f32.xlu0 %v3108
        %v3110 = vpop.xlane.xlu0 %3109
        %v3111 = vsel %vm2933, %v2736, 0.0
        %3112 = vadd.xlane.f32.xlu0 %v3111
        %v3113 = vpop.xlane.xlu0 %3112
        %v3114 = vsel %vm2933, %v2737, 0.0
        %3115 = vadd.xlane.f32.xlu0 %v3114
        %v3116 = vpop.xlane.xlu0 %3115
        %v3117 = vsel %vm2933, %v2738, 0.0
        %3118 = vadd.xlane.f32.xlu0 %v3117
        %v3119 = vpop.xlane.xlu0 %3118
        %v3120 = vsel %vm2933, %v2739, 0.0
        %3121 = vadd.xlane.f32.xlu0 %v3120
        %v3122 = vpop.xlane.xlu0 %3121
        %v3123 = vsel %vm2933, %v2740, 0.0
        %3124 = vadd.xlane.f32.xlu0 %v3123
        %v3125 = vpop.xlane.xlu0 %3124
        %v3126 = vsel %vm2933, %v2741, 0.0
        %3127 = vadd.xlane.f32.xlu0 %v3126
        %v3128 = vpop.xlane.xlu0 %3127
        %v3129 = vsel %vm2933, %v2742, 0.0
        %3130 = vadd.xlane.f32.xlu0 %v3129
        %v3131 = vpop.xlane.xlu0 %3130
        %v3132 = vsel %vm2933, %v2743, 0.0
        %3133 = vadd.xlane.f32.xlu0 %v3132
        %v3134 = vpop.xlane.xlu0 %3133
        %v3135 = vsel %vm2933, %v2744, 0.0
        %3136 = vadd.xlane.f32.xlu0 %v3135
        %v3137 = vpop.xlane.xlu0 %3136
        %v3138 = vsel %vm2933, %v2745, 0.0
        %3139 = vadd.xlane.f32.xlu0 %v3138
        %v3140 = vpop.xlane.xlu0 %3139
        %v3141 = vsel %vm2933, %v2746, 0.0
        %3142 = vadd.xlane.f32.xlu0 %v3141
        %v3143 = vpop.xlane.xlu0 %3142
        %v3144 = vsel %vm2933, %v2747, 0.0
        %3145 = vadd.xlane.f32.xlu0 %v3144
        %v3146 = vpop.xlane.xlu0 %3145
        %v3147 = vsel %vm2933, %v2748, 0.0
        %3148 = vadd.xlane.f32.xlu0 %v3147
        %v3149 = vpop.xlane.xlu0 %3148
        %v3150 = vsel %vm2933, %v2749, 0.0
        %3151 = vadd.xlane.f32.xlu0 %v3150
        %v3152 = vpop.xlane.xlu0 %3151
        %v3153 = vsel %vm2933, %v2750, 0.0
        %3154 = vadd.xlane.f32.xlu0 %v3153
        %v3155 = vpop.xlane.xlu0 %3154
        %v3156 = vsel %vm2933, %v2751, 0.0
        %3157 = vadd.xlane.f32.xlu0 %v3156
        %v3158 = vpop.xlane.xlu0 %3157
        %v3159 = vsel %vm2933, %v2752, 0.0
        %3160 = vadd.xlane.f32.xlu0 %v3159
        %v3161 = vpop.xlane.xlu0 %3160
        %v3162 = vsel %vm2933, %v2753, 0.0
        %3163 = vadd.xlane.f32.xlu0 %v3162
        %v3164 = vpop.xlane.xlu0 %3163
        %v3165 = vsel %vm2933, %v2754, 0.0
        %3166 = vadd.xlane.f32.xlu0 %v3165
        %v3167 = vpop.xlane.xlu0 %3166
        %v3168 = vsel %vm2933, %v2755, 0.0
        %3169 = vadd.xlane.f32.xlu0 %v3168
        %v3170 = vpop.xlane.xlu0 %3169
        %v3171 = vsel %vm2933, %v2756, 0.0
        %3172 = vadd.xlane.f32.xlu0 %v3171
        %v3173 = vpop.xlane.xlu0 %3172
        %v3174 = vsel %vm2933, %v2757, 0.0
        %3175 = vadd.xlane.f32.xlu0 %v3174
        %v3176 = vpop.xlane.xlu0 %3175
        %v3177 = vsel %vm2933, %v2758, 0.0
        %3178 = vadd.xlane.f32.xlu0 %v3177
        %v3179 = vpop.xlane.xlu0 %3178
        %v3180 = vsel %vm2933, %v2759, 0.0
        %3181 = vadd.xlane.f32.xlu0 %v3180
        %v3182 = vpop.xlane.xlu0 %3181
        %v3183 = vsel %vm2933, %v2760, 0.0
        %3184 = vadd.xlane.f32.xlu0 %v3183
        %v3185 = vpop.xlane.xlu0 %3184
        %v3186 = vsel %vm2933, %v2761, 0.0
        %3187 = vadd.xlane.f32.xlu0 %v3186
        %v3188 = vpop.xlane.xlu0 %3187
        %v3189 = vsel %vm2933, %v2762, 0.0
        %3190 = vadd.xlane.f32.xlu0 %v3189
        %v3191 = vpop.xlane.xlu0 %3190
        %v3192 = vsel %vm2933, %v2763, 0.0
        %3193 = vadd.xlane.f32.xlu0 %v3192
        %v3194 = vpop.xlane.xlu0 %3193
        %v3195 = vsel %vm2933, %v2764, 0.0
        %3196 = vadd.xlane.f32.xlu0 %v3195
        %v3197 = vpop.xlane.xlu0 %3196
        %v3198 = vsel %vm2933, %v2765, 0.0
        %3199 = vadd.xlane.f32.xlu0 %v3198
        %v3200 = vpop.xlane.xlu0 %3199
        %v3201 = vsel %vm2933, %v2766, 0.0
        %3202 = vadd.xlane.f32.xlu0 %v3201
        %v3203 = vpop.xlane.xlu0 %3202
        %v3204 = vsel %vm2933, %v2767, 0.0
        %3205 = vadd.xlane.f32.xlu0 %v3204
        %v3206 = vpop.xlane.xlu0 %3205
        %v3207 = vsel %vm2933, %v2768, 0.0
        %3208 = vadd.xlane.f32.xlu0 %v3207
        %v3209 = vpop.xlane.xlu0 %3208
        %v3210 = vsel %vm2933, %v2769, 0.0
        %3211 = vadd.xlane.f32.xlu0 %v3210
        %v3212 = vpop.xlane.xlu0 %3211
        %v3213 = vsel %vm2933, %v2770, 0.0
        %3214 = vadd.xlane.f32.xlu0 %v3213
        %v3215 = vpop.xlane.xlu0 %3214
        %v3216 = vsel %vm2933, %v2771, 0.0
        %3217 = vadd.xlane.f32.xlu0 %v3216
        %v3218 = vpop.xlane.xlu0 %3217
        %v3219 = vsel %vm2933, %v2772, 0.0
        %3220 = vadd.xlane.f32.xlu0 %v3219
        %v3221 = vpop.xlane.xlu0 %3220
        %v3222 = vsel %vm2933, %v2773, 0.0
        %3223 = vadd.xlane.f32.xlu0 %v3222
        %v3224 = vpop.xlane.xlu0 %3223
        %v3225 = vsel %vm2933, %v2774, 0.0
        %3226 = vadd.xlane.f32.xlu0 %v3225
        %v3227 = vpop.xlane.xlu0 %3226
        %v3228 = vsel %vm2933, %v2775, 0.0
        %3229 = vadd.xlane.f32.xlu0 %v3228
        %v3230 = vpop.xlane.xlu0 %3229
        %v3231 = vsel %vm2933, %v2776, 0.0
        %3232 = vadd.xlane.f32.xlu0 %v3231
        %v3233 = vpop.xlane.xlu0 %3232
        %v3234 = vsel %vm2933, %v2777, 0.0
        %3235 = vadd.xlane.f32.xlu0 %v3234
        %v3236 = vpop.xlane.xlu0 %3235
        %v3237 = vsel %vm2933, %v2778, 0.0
        %3238 = vadd.xlane.f32.xlu0 %v3237
        %v3239 = vpop.xlane.xlu0 %3238
        %v3240 = vsel %vm2933, %v2779, 0.0
        %3241 = vadd.xlane.f32.xlu0 %v3240
        %v3242 = vpop.xlane.xlu0 %3241
        %v3243 = vsel %vm2933, %v2780, 0.0
        %3244 = vadd.xlane.f32.xlu0 %v3243
        %v3245 = vpop.xlane.xlu0 %3244
        %v3246 = vsel %vm2933, %v2781, 0.0
        %3247 = vadd.xlane.f32.xlu0 %v3246
        %v3248 = vpop.xlane.xlu0 %3247
        %v3249 = vsel %vm2933, %v2782, 0.0
        %3250 = vadd.xlane.f32.xlu0 %v3249
        %v3251 = vpop.xlane.xlu0 %3250
        %v3252 = vsel %vm2933, %v2783, 0.0
        %3253 = vadd.xlane.f32.xlu0 %v3252
        %v3254 = vpop.xlane.xlu0 %3253
        %v3255 = vsel %vm2933, %v2784, 0.0
        %3256 = vadd.xlane.f32.xlu0 %v3255
        %v3257 = vpop.xlane.xlu0 %3256
        %v3258 = vsel %vm2933, %v2785, 0.0
        %3259 = vadd.xlane.f32.xlu0 %v3258
        %v3260 = vpop.xlane.xlu0 %3259
        %v3261 = vsel %vm2933, %v2786, 0.0
        %3262 = vadd.xlane.f32.xlu0 %v3261
        %v3263 = vpop.xlane.xlu0 %3262
        %v3264 = vsel %vm2933, %v2787, 0.0
        %3265 = vadd.xlane.f32.xlu0 %v3264
        %v3266 = vpop.xlane.xlu0 %3265
        %v3267 = vsel %vm2933, %v2788, 0.0
        %3268 = vadd.xlane.f32.xlu0 %v3267
        %v3269 = vpop.xlane.xlu0 %3268
        %v3270 = vsel %vm2933, %v2789, 0.0
        %3271 = vadd.xlane.f32.xlu0 %v3270
        %v3272 = vpop.xlane.xlu0 %3271
        %v3273 = vsel %vm2933, %v2790, 0.0
        %3274 = vadd.xlane.f32.xlu0 %v3273
        %v3275 = vpop.xlane.xlu0 %3274
        %v3276 = vsel %vm2933, %v2791, 0.0
        %3277 = vadd.xlane.f32.xlu0 %v3276
        %v3278 = vpop.xlane.xlu0 %3277
        %v3279 = vsel %vm2933, %v2792, 0.0
        %3280 = vadd.xlane.f32.xlu0 %v3279
        %v3281 = vpop.xlane.xlu0 %3280
        %v3282 = vsel %vm2933, %v2793, 0.0
        %3283 = vadd.xlane.f32.xlu0 %v3282
        %v3284 = vpop.xlane.xlu0 %3283
        %v3285 = vsel %vm2933, %v2794, 0.0
        %3286 = vadd.xlane.f32.xlu0 %v3285
        %v3287 = vpop.xlane.xlu0 %3286
        %v3288 = vsel %vm2933, %v2795, 0.0
        %3289 = vadd.xlane.f32.xlu0 %v3288
        %v3290 = vpop.xlane.xlu0 %3289
        %v3291 = vsel %vm2933, %v2796, 0.0
        %3292 = vadd.xlane.f32.xlu0 %v3291
        %v3293 = vpop.xlane.xlu0 %3292
        %v3294 = vsel %vm2933, %v2797, 0.0
        %3295 = vadd.xlane.f32.xlu0 %v3294
        %v3296 = vpop.xlane.xlu0 %3295
        %v3297 = vsel %vm2933, %v2798, 0.0
        %3298 = vadd.xlane.f32.xlu0 %v3297
        %v3299 = vpop.xlane.xlu0 %3298
        %v3300 = vsel %vm2933, %v2799, 0.0
        %3301 = vadd.xlane.f32.xlu0 %v3300
        %v3302 = vpop.xlane.xlu0 %3301
        %v3303 = vsel %vm2933, %v2800, 0.0
        %3304 = vadd.xlane.f32.xlu0 %v3303
        %v3305 = vpop.xlane.xlu0 %3304
        %v3306 = vsel %vm2933, %v2801, 0.0
        %3307 = vadd.xlane.f32.xlu0 %v3306
        %v3308 = vpop.xlane.xlu0 %3307
        %v3309 = vsel %vm2933, %v2802, 0.0
        %3310 = vadd.xlane.f32.xlu0 %v3309
        %v3311 = vpop.xlane.xlu0 %3310
        %v3312 = vsel %vm2933, %v2803, 0.0
        %3313 = vadd.xlane.f32.xlu0 %v3312
        %v3314 = vpop.xlane.xlu0 %3313
        %v3315 = vsel %vm2933, %v2804, 0.0
        %3316 = vadd.xlane.f32.xlu0 %v3315
        %v3317 = vpop.xlane.xlu0 %3316
        %v3318 = vsel %vm2933, %v2805, 0.0
        %3319 = vadd.xlane.f32.xlu0 %v3318
        %v3320 = vpop.xlane.xlu0 %3319
        %v3321 = vsel %vm2933, %v2806, 0.0
        %3322 = vadd.xlane.f32.xlu0 %v3321
        %v3323 = vpop.xlane.xlu0 %3322
        %v3324 = vsel %vm2933, %v2807, 0.0
        %3325 = vadd.xlane.f32.xlu0 %v3324
        %v3326 = vpop.xlane.xlu0 %3325
        %v3327 = vsel %vm2933, %v2808, 0.0
        %3328 = vadd.xlane.f32.xlu0 %v3327
        %v3329 = vpop.xlane.xlu0 %3328
        %v3330 = vsel %vm2933, %v2809, 0.0
        %3331 = vadd.xlane.f32.xlu0 %v3330
        %v3332 = vpop.xlane.xlu0 %3331
        %v3333 = vsel %vm2933, %v2810, 0.0
        %3334 = vadd.xlane.f32.xlu0 %v3333
        %v3335 = vpop.xlane.xlu0 %3334
        %v3336 = vsel %vm2933, %v2811, 0.0
        %3337 = vadd.xlane.f32.xlu0 %v3336
        %v3338 = vpop.xlane.xlu0 %3337
        %v3339 = vsel %vm2933, %v2812, 0.0
        %3340 = vadd.xlane.f32.xlu0 %v3339
        %v3341 = vpop.xlane.xlu0 %3340
        %v3342 = vsel %vm2933, %v2813, 0.0
        %3343 = vadd.xlane.f32.xlu0 %v3342
        %v3344 = vpop.xlane.xlu0 %3343
        %v3345 = vsel %vm2933, %v2814, 0.0
        %3346 = vadd.xlane.f32.xlu0 %v3345
        %v3347 = vpop.xlane.xlu0 %3346
        %v3348 = vsel %vm2933, %v2815, 0.0
        %3349 = vadd.xlane.f32.xlu0 %v3348
        %v3350 = vpop.xlane.xlu0 %3349
        %v3351 = vsel %vm2933, %v2816, 0.0
        %3352 = vadd.xlane.f32.xlu0 %v3351
        %v3353 = vpop.xlane.xlu0 %3352
        %v3354 = vsel %vm2933, %v2817, 0.0
        %3355 = vadd.xlane.f32.xlu0 %v3354
        %v3356 = vpop.xlane.xlu0 %3355
        %v3357 = vsel %vm2933, %v2818, 0.0
        %3358 = vadd.xlane.f32.xlu0 %v3357
        %v3359 = vpop.xlane.xlu0 %3358
        %v3360 = vsel %vm2933, %v2819, 0.0
        %3361 = vadd.xlane.f32.xlu0 %v3360
        %v3362 = vpop.xlane.xlu0 %3361
        %v3363 = vsel %vm2933, %v2820, 0.0
        %3364 = vadd.xlane.f32.xlu0 %v3363
        %v3365 = vpop.xlane.xlu0 %3364
        %v3366 = vsel %vm2933, %v2821, 0.0
        %3367 = vadd.xlane.f32.xlu0 %v3366
        %v3368 = vpop.xlane.xlu0 %3367
        %v3369 = vsel %vm2933, %v2822, 0.0
        %3370 = vadd.xlane.f32.xlu0 %v3369
        %v3371 = vpop.xlane.xlu0 %3370
        %v3372 = vsel %vm2933, %v2823, 0.0
        %3373 = vadd.xlane.f32.xlu0 %v3372
        %v3374 = vpop.xlane.xlu0 %3373
        %v3375 = vsel %vm2933, %v2824, 0.0
        %3376 = vadd.xlane.f32.xlu0 %v3375
        %v3377 = vpop.xlane.xlu0 %3376
        %v3378 = vsel %vm2933, %v2825, 0.0
        %3379 = vadd.xlane.f32.xlu0 %v3378
        %v3380 = vpop.xlane.xlu0 %3379
        %v3381 = vsel %vm2933, %v2826, 0.0
        %3382 = vadd.xlane.f32.xlu0 %v3381
        %v3383 = vpop.xlane.xlu0 %3382
        %v3384 = vsel %vm2933, %v2827, 0.0
        %3385 = vadd.xlane.f32.xlu0 %v3384
        %v3386 = vpop.xlane.xlu0 %3385
        %v3387 = vsel %vm2933, %v2828, 0.0
        %3388 = vadd.xlane.f32.xlu0 %v3387
        %v3389 = vpop.xlane.xlu0 %3388
        %v3390 = vsel %vm2933, %v2829, 0.0
        %3391 = vadd.xlane.f32.xlu0 %v3390
        %v3392 = vpop.xlane.xlu0 %3391
        %v3393 = vsel %vm2933, %v2830, 0.0
        %3394 = vadd.xlane.f32.xlu0 %v3393
        %v3395 = vpop.xlane.xlu0 %3394
        %v3396 = vsel %vm2933, %v2831, 0.0
        %3397 = vadd.xlane.f32.xlu0 %v3396
        %v3398 = vpop.xlane.xlu0 %3397
        %v3399 = vsel %vm2933, %v2832, 0.0
        %3400 = vadd.xlane.f32.xlu0 %v3399
        %v3401 = vpop.xlane.xlu0 %3400
        %v3402 = vsel %vm2933, %v2833, 0.0
        %3403 = vadd.xlane.f32.xlu0 %v3402
        %v3404 = vpop.xlane.xlu0 %3403
        %v3405 = vsel %vm2933, %v2834, 0.0
        %3406 = vadd.xlane.f32.xlu0 %v3405
        %v3407 = vpop.xlane.xlu0 %3406
        %v3408 = vsel %vm2933, %v2835, 0.0
        %3409 = vadd.xlane.f32.xlu0 %v3408
        %v3410 = vpop.xlane.xlu0 %3409
        %v3411 = vsel %vm2933, %v2836, 0.0
        %3412 = vadd.xlane.f32.xlu0 %v3411
        %v3413 = vpop.xlane.xlu0 %3412
        %v3414 = vsel %vm2933, %v2837, 0.0
        %3415 = vadd.xlane.f32.xlu0 %v3414
        %v3416 = vpop.xlane.xlu0 %3415
        %v3417 = vsel %vm2933, %v2838, 0.0
        %3418 = vadd.xlane.f32.xlu0 %v3417
        %v3419 = vpop.xlane.xlu0 %3418
        %v3420 = vsel %vm2933, %v2839, 0.0
        %3421 = vadd.xlane.f32.xlu0 %v3420
        %v3422 = vpop.xlane.xlu0 %3421
        %v3423 = vsel %vm2933, %v2840, 0.0
        %3424 = vadd.xlane.f32.xlu0 %v3423
        %v3425 = vpop.xlane.xlu0 %3424
        %v3426 = vsel %vm2933, %v2841, 0.0
        %3427 = vadd.xlane.f32.xlu0 %v3426
        %v3428 = vpop.xlane.xlu0 %3427
        %v3429 = vsel %vm2933, %v2842, 0.0
        %3430 = vadd.xlane.f32.xlu0 %v3429
        %v3431 = vpop.xlane.xlu0 %3430
        %v3432 = vsel %vm2933, %v2843, 0.0
        %3433 = vadd.xlane.f32.xlu0 %v3432
        %v3434 = vpop.xlane.xlu0 %3433
        %v3435 = vsel %vm2933, %v2844, 0.0
        %3436 = vadd.xlane.f32.xlu0 %v3435
        %v3437 = vpop.xlane.xlu0 %3436
        %v3438 = vsel %vm2933, %v2845, 0.0
        %3439 = vadd.xlane.f32.xlu0 %v3438
        %v3440 = vpop.xlane.xlu0 %3439
        %v3441 = vsel %vm2933, %v2846, 0.0
        %3442 = vadd.xlane.f32.xlu0 %v3441
        %v3443 = vpop.xlane.xlu0 %3442
        %v3444 = vsel %vm2933, %v2847, 0.0
        %3445 = vadd.xlane.f32.xlu0 %v3444
        %v3446 = vpop.xlane.xlu0 %3445
        %v3447 = vsel %vm2933, %v2848, 0.0
        %3448 = vadd.xlane.f32.xlu0 %v3447
        %v3449 = vpop.xlane.xlu0 %3448
        %v3450 = vsel %vm2933, %v2849, 0.0
        %3451 = vadd.xlane.f32.xlu0 %v3450
        %v3452 = vpop.xlane.xlu0 %3451
        %v3453 = vsel %vm2933, %v2850, 0.0
        %3454 = vadd.xlane.f32.xlu0 %v3453
        %v3455 = vpop.xlane.xlu0 %3454
        %v3456 = vsel %vm2933, %v2851, 0.0
        %3457 = vadd.xlane.f32.xlu0 %v3456
        %v3458 = vpop.xlane.xlu0 %3457
        %v3459 = vsel %vm2933, %v2852, 0.0
        %3460 = vadd.xlane.f32.xlu0 %v3459
        %v3461 = vpop.xlane.xlu0 %3460
        %v3462 = vsel %vm2933, %v2853, 0.0
        %3463 = vadd.xlane.f32.xlu0 %v3462
        %v3464 = vpop.xlane.xlu0 %3463
        %v3465 = vsel %vm2933, %v2854, 0.0
        %3466 = vadd.xlane.f32.xlu0 %v3465
        %v3467 = vpop.xlane.xlu0 %3466
        %v3468 = vsel %vm2933, %v2855, 0.0
        %3469 = vadd.xlane.f32.xlu0 %v3468
        %v3470 = vpop.xlane.xlu0 %3469
        %v3471 = vsel %vm2933, %v2856, 0.0
        %3472 = vadd.xlane.f32.xlu0 %v3471
        %v3473 = vpop.xlane.xlu0 %3472
        %v3474 = vsel %vm2933, %v2857, 0.0
        %3475 = vadd.xlane.f32.xlu0 %v3474
        %v3476 = vpop.xlane.xlu0 %3475
        %v3477 = vsel %vm2933, %v2858, 0.0
        %3478 = vadd.xlane.f32.xlu0 %v3477
        %v3479 = vpop.xlane.xlu0 %3478
        %v3480 = vsel %vm2933, %v2859, 0.0
        %3481 = vadd.xlane.f32.xlu0 %v3480
        %v3482 = vpop.xlane.xlu0 %3481
        %v3483 = vsel %vm2933, %v2860, 0.0
        %3484 = vadd.xlane.f32.xlu0 %v3483
        %v3485 = vpop.xlane.xlu0 %3484
        %v3486 = vsel %vm2933, %v2861, 0.0
        %3487 = vadd.xlane.f32.xlu0 %v3486
        %v3488 = vpop.xlane.xlu0 %3487
        %v3489 = vsel %vm2933, %v2862, 0.0
        %3490 = vadd.xlane.f32.xlu0 %v3489
        %v3491 = vpop.xlane.xlu0 %3490
        %v3492 = vsel %vm2933, %v2863, 0.0
        %3493 = vadd.xlane.f32.xlu0 %v3492
        %v3494 = vpop.xlane.xlu0 %3493
        %v3495 = vsel %vm2933, %v2864, 0.0
        %3496 = vadd.xlane.f32.xlu0 %v3495
        %v3497 = vpop.xlane.xlu0 %3496
        %v3498 = vsel %vm2933, %v2865, 0.0
        %3499 = vadd.xlane.f32.xlu0 %v3498
        %v3500 = vpop.xlane.xlu0 %3499
        %v3501 = vsel %vm2933, %v2866, 0.0
        %3502 = vadd.xlane.f32.xlu0 %v3501
        %v3503 = vpop.xlane.xlu0 %3502
        %v3504 = vsel %vm2933, %v2867, 0.0
        %3505 = vadd.xlane.f32.xlu0 %v3504
        %v3506 = vpop.xlane.xlu0 %3505
        %v3507 = vsel %vm2933, %v2868, 0.0
        %3508 = vadd.xlane.f32.xlu0 %v3507
        %v3509 = vpop.xlane.xlu0 %3508
        %v3510 = vsel %vm2933, %v2869, 0.0
        %3511 = vadd.xlane.f32.xlu0 %v3510
        %v3512 = vpop.xlane.xlu0 %3511
        %v3513 = vsel %vm2933, %v2870, 0.0
        %3514 = vadd.xlane.f32.xlu0 %v3513
        %v3515 = vpop.xlane.xlu0 %3514
        %v3516 = vsel %vm2933, %v2871, 0.0
        %3517 = vadd.xlane.f32.xlu0 %v3516
        %v3518 = vpop.xlane.xlu0 %3517
        %v3519 = vsel %vm2933, %v2872, 0.0
        %3520 = vadd.xlane.f32.xlu0 %v3519
        %v3521 = vpop.xlane.xlu0 %3520
        %v3522 = vsel %vm2933, %v2873, 0.0
        %3523 = vadd.xlane.f32.xlu0 %v3522
        %v3524 = vpop.xlane.xlu0 %3523
        %v3525 = vsel %vm2933, %v2874, 0.0
        %3526 = vadd.xlane.f32.xlu0 %v3525
        %v3527 = vpop.xlane.xlu0 %3526
        %v3528 = vsel %vm2933, %v2875, 0.0
        %3529 = vadd.xlane.f32.xlu0 %v3528
        %v3530 = vpop.xlane.xlu0 %3529
        %v3531 = vsel %vm2933, %v2876, 0.0
        %3532 = vadd.xlane.f32.xlu0 %v3531
        %v3533 = vpop.xlane.xlu0 %3532
        %v3534 = vsel %vm2933, %v2877, 0.0
        %3535 = vadd.xlane.f32.xlu0 %v3534
        %v3536 = vpop.xlane.xlu0 %3535
        %v3537 = vsel %vm2933, %v2878, 0.0
        %3538 = vadd.xlane.f32.xlu0 %v3537
        %v3539 = vpop.xlane.xlu0 %3538
        %v3540 = vsel %vm2933, %v2879, 0.0
        %3541 = vadd.xlane.f32.xlu0 %v3540
        %v3542 = vpop.xlane.xlu0 %3541
        %v3543 = vsel %vm2933, %v2880, 0.0
        %3544 = vadd.xlane.f32.xlu0 %v3543
        %v3545 = vpop.xlane.xlu0 %3544
        %v3546 = vsel %vm2933, %v2881, 0.0
        %3547 = vadd.xlane.f32.xlu0 %v3546
        %v3548 = vpop.xlane.xlu0 %3547
        %v3549 = vsel %vm2933, %v2882, 0.0
        %3550 = vadd.xlane.f32.xlu0 %v3549
        %v3551 = vpop.xlane.xlu0 %3550
        %v3552 = vsel %vm2933, %v2883, 0.0
        %3553 = vadd.xlane.f32.xlu0 %v3552
        %v3554 = vpop.xlane.xlu0 %3553
        %v3555 = vsel %vm2933, %v2884, 0.0
        %3556 = vadd.xlane.f32.xlu0 %v3555
        %v3557 = vpop.xlane.xlu0 %3556
        %v3558 = vsel %vm2933, %v2885, 0.0
        %3559 = vadd.xlane.f32.xlu0 %v3558
        %v3560 = vpop.xlane.xlu0 %3559
        %v3561 = vsel %vm2933, %v2886, 0.0
        %3562 = vadd.xlane.f32.xlu0 %v3561
        %v3563 = vpop.xlane.xlu0 %3562
        %v3564 = vsel %vm2933, %v2887, 0.0
        %3565 = vadd.xlane.f32.xlu0 %v3564
        %v3566 = vpop.xlane.xlu0 %3565
        %v3567 = vsel %vm2933, %v2888, 0.0
        %3568 = vadd.xlane.f32.xlu0 %v3567
        %v3569 = vpop.xlane.xlu0 %3568
        %v3570 = vsel %vm2933, %v2889, 0.0
        %3571 = vadd.xlane.f32.xlu0 %v3570
        %v3572 = vpop.xlane.xlu0 %3571
        %v3573 = vsel %vm2933, %v2890, 0.0
        %3574 = vadd.xlane.f32.xlu0 %v3573
        %v3575 = vpop.xlane.xlu0 %3574
        %v3576 = vsel %vm2933, %v2891, 0.0
        %3577 = vadd.xlane.f32.xlu0 %v3576
        %v3578 = vpop.xlane.xlu0 %3577
        %v3579 = vsel %vm2933, %v2892, 0.0
        %3580 = vadd.xlane.f32.xlu0 %v3579
        %v3581 = vpop.xlane.xlu0 %3580
        %v3582 = vsel %vm2933, %v2893, 0.0
        %3583 = vadd.xlane.f32.xlu0 %v3582
        %v3584 = vpop.xlane.xlu0 %3583
        %v3585 = vsel %vm2933, %v2894, 0.0
        %3586 = vadd.xlane.f32.xlu0 %v3585
        %v3587 = vpop.xlane.xlu0 %3586
        %v3588 = vsel %vm2933, %v2895, 0.0
        %3589 = vadd.xlane.f32.xlu0 %v3588
        %v3590 = vpop.xlane.xlu0 %3589
        %v3591 = vsel %vm2933, %v2896, 0.0
        %3592 = vadd.xlane.f32.xlu0 %v3591
        %v3593 = vpop.xlane.xlu0 %3592
        %v3594 = vsel %vm2933, %v2897, 0.0
        %3595 = vadd.xlane.f32.xlu0 %v3594
        %v3596 = vpop.xlane.xlu0 %3595
        %v3597 = vsel %vm2933, %v2898, 0.0
        %3598 = vadd.xlane.f32.xlu0 %v3597
        %v3599 = vpop.xlane.xlu0 %3598
        %v3600 = vsel %vm2933, %v2899, 0.0
        %3601 = vadd.xlane.f32.xlu0 %v3600
        %v3602 = vpop.xlane.xlu0 %3601
        %v3603 = vsel %vm2933, %v2900, 0.0
        %3604 = vadd.xlane.f32.xlu0 %v3603
        %v3605 = vpop.xlane.xlu0 %3604
        %v3606 = vsel %vm2933, %v2901, 0.0
        %3607 = vadd.xlane.f32.xlu0 %v3606
        %v3608 = vpop.xlane.xlu0 %3607
        %v3609 = vsel %vm2933, %v2902, 0.0
        %3610 = vadd.xlane.f32.xlu0 %v3609
        %v3611 = vpop.xlane.xlu0 %3610
        %v3612 = vsel %vm2933, %v2903, 0.0
        %3613 = vadd.xlane.f32.xlu0 %v3612
        %v3614 = vpop.xlane.xlu0 %3613
        %v3615 = vsel %vm2933, %v2904, 0.0
        %3616 = vadd.xlane.f32.xlu0 %v3615
        %v3617 = vpop.xlane.xlu0 %3616
        %v3618 = vsel %vm2933, %v2905, 0.0
        %3619 = vadd.xlane.f32.xlu0 %v3618
        %v3620 = vpop.xlane.xlu0 %3619
        %v3621 = vsel %vm2933, %v2906, 0.0
        %3622 = vadd.xlane.f32.xlu0 %v3621
        %v3623 = vpop.xlane.xlu0 %3622
        %v3624 = vsel %vm2933, %v2907, 0.0
        %3625 = vadd.xlane.f32.xlu0 %v3624
        %v3626 = vpop.xlane.xlu0 %3625
        %v3627 = vsel %vm2933, %v2908, 0.0
        %3628 = vadd.xlane.f32.xlu0 %v3627
        %v3629 = vpop.xlane.xlu0 %3628
        %v3630 = vsel %vm2933, %v2909, 0.0
        %3631 = vadd.xlane.f32.xlu0 %v3630
        %v3632 = vpop.xlane.xlu0 %3631
        %v3633 = vsel %vm2933, %v2910, 0.0
        %3634 = vadd.xlane.f32.xlu0 %v3633
        %v3635 = vpop.xlane.xlu0 %3634
        %v3636 = vsel %vm2933, %v2911, 0.0
        %3637 = vadd.xlane.f32.xlu0 %v3636
        %v3638 = vpop.xlane.xlu0 %3637
        %v3639 = vsel %vm2933, %v2912, 0.0
        %3640 = vadd.xlane.f32.xlu0 %v3639
        %v3641 = vpop.xlane.xlu0 %3640
        %v3642 = vsel %vm2933, %v2913, 0.0
        %3643 = vadd.xlane.f32.xlu0 %v3642
        %v3644 = vpop.xlane.xlu0 %3643
        %v3645 = vsel %vm2933, %v2914, 0.0
        %3646 = vadd.xlane.f32.xlu0 %v3645
        %v3647 = vpop.xlane.xlu0 %3646
        %v3648 = vsel %vm2933, %v2915, 0.0
        %3649 = vadd.xlane.f32.xlu0 %v3648
        %v3650 = vpop.xlane.xlu0 %3649
        %v3651 = vsel %vm2933, %v2916, 0.0
        %3652 = vadd.xlane.f32.xlu0 %v3651
        %v3653 = vpop.xlane.xlu0 %3652
        %v3654 = vsel %vm2933, %v2917, 0.0
        %3655 = vadd.xlane.f32.xlu0 %v3654
        %v3656 = vpop.xlane.xlu0 %3655
        %v3657 = vsel %vm2933, %v2918, 0.0
        %3658 = vadd.xlane.f32.xlu0 %v3657
        %v3659 = vpop.xlane.xlu0 %3658
        %v3660 = vsel %vm2933, %v2919, 0.0
        %3661 = vadd.xlane.f32.xlu0 %v3660
        %v3662 = vpop.xlane.xlu0 %3661
        %v3663 = vsel %vm2933, %v2920, 0.0
        %3664 = vadd.xlane.f32.xlu0 %v3663
        %v3665 = vpop.xlane.xlu0 %3664
        %v3666 = vsel %vm2933, %v2921, 0.0
        %3667 = vadd.xlane.f32.xlu0 %v3666
        %v3668 = vpop.xlane.xlu0 %3667
        %v3669 = vsel %vm2933, %v2922, 0.0
        %3670 = vadd.xlane.f32.xlu0 %v3669
        %v3671 = vpop.xlane.xlu0 %3670
        %v3672 = vsel %vm2933, %v2923, 0.0
        %3673 = vadd.xlane.f32.xlu0 %v3672
        %v3674 = vpop.xlane.xlu0 %3673
        %v3675 = vsel %vm2933, %v2924, 0.0
        %3676 = vadd.xlane.f32.xlu0 %v3675
        %v3677 = vpop.xlane.xlu0 %3676
        %v3678 = vsel %vm2933, %v2925, 0.0
        %3679 = vadd.xlane.f32.xlu0 %v3678
        %v3680 = vpop.xlane.xlu0 %3679
        %v3681 = vsel %vm2933, %v2926, 0.0
        %3682 = vadd.xlane.f32.xlu0 %v3681
        %v3683 = vpop.xlane.xlu0 %3682
        %v3684 = vsel %vm2933, %v2927, 0.0
        %3685 = vadd.xlane.f32.xlu0 %v3684
        %v3686 = vpop.xlane.xlu0 %3685
        %v3687 = vsel %vm2933, %v2928, 0.0
        %3688 = vadd.xlane.f32.xlu0 %v3687
        %v3689 = vpop.xlane.xlu0 %3688
        %v3690 = vsel %vm2933, %v2929, 0.0
        %3691 = vadd.xlane.f32.xlu0 %v3690
        %v3692 = vpop.xlane.xlu0 %3691
        %v3693 = vsel %vm2933, %v2930, 0.0
        %3694 = vadd.xlane.f32.xlu0 %v3693
        %v3695 = vpop.xlane.xlu0 %3694
        %v3696 = vsel %vm2933, %v2931, 0.0
        %3697 = vadd.xlane.f32.xlu0 %v3696
        %v3698 = vpop.xlane.xlu0 %3697
        %v3699 = vsel %vm2933, %v2932, 0.0
        %3700 = vadd.xlane.f32.xlu0 %v3699
        %v3701 = vpop.xlane.xlu0 %3700
        %v3702 = vlaneseq
        %v3703 = vshrl.u32 %v3702, 7
        %v3704 = vlaneseq
        %v3705 = vand.u32 %v3704, 127
        %vm3706 = vcmp.eq.s32.totalorder %v3703, %v3705
        %v3707 = vsel %vm3706, 1, 0
        %v3708 = vcvt.s32.f32 %v3707
        %v3965 = vlaneseq
        %v3966 = vshrl.u32 %v3965, 7
        %v3967 = vsub.s32 %v3705, %v3966
        %v3968 = vrot.slane %v2936, %v3967
        %v3969 = vlaneseq
        %v3970 = vshrl.u32 %v3969, 7
        %v3971 = vsub.s32 %v3705, %v3970
        %v3972 = vrot.slane %v2939, %v3971
        %v3973 = vlaneseq
        %v3974 = vshrl.u32 %v3973, 7
        %v3975 = vsub.s32 %v3705, %v3974
        %v3976 = vrot.slane %v2942, %v3975
        %v3977 = vlaneseq
        %v3978 = vshrl.u32 %v3977, 7
        %v3979 = vsub.s32 %v3705, %v3978
        %v3980 = vrot.slane %v2945, %v3979
        %v3981 = vlaneseq
        %v3982 = vshrl.u32 %v3981, 7
        %v3983 = vsub.s32 %v3705, %v3982
        %v3984 = vrot.slane %v2948, %v3983
        %v3985 = vlaneseq
        %v3986 = vshrl.u32 %v3985, 7
        %v3987 = vsub.s32 %v3705, %v3986
        %v3988 = vrot.slane %v2951, %v3987
        %v3989 = vlaneseq
        %v3990 = vshrl.u32 %v3989, 7
        %v3991 = vsub.s32 %v3705, %v3990
        %v3992 = vrot.slane %v2954, %v3991
        %v3993 = vlaneseq
        %v3994 = vshrl.u32 %v3993, 7
        %v3995 = vsub.s32 %v3705, %v3994
        %v3996 = vrot.slane %v2957, %v3995
        %v3997 = vlaneseq
        %v3998 = vshrl.u32 %v3997, 7
        %v3999 = vsub.s32 %v3705, %v3998
        %v4000 = vrot.slane %v2960, %v3999
        %v4001 = vlaneseq
        %v4002 = vshrl.u32 %v4001, 7
        %v4003 = vsub.s32 %v3705, %v4002
        %v4004 = vrot.slane %v2963, %v4003
        %v4005 = vlaneseq
        %v4006 = vshrl.u32 %v4005, 7
        %v4007 = vsub.s32 %v3705, %v4006
        %v4008 = vrot.slane %v2966, %v4007
        %v4009 = vlaneseq
        %v4010 = vshrl.u32 %v4009, 7
        %v4011 = vsub.s32 %v3705, %v4010
        %v4012 = vrot.slane %v2969, %v4011
        %v4013 = vlaneseq
        %v4014 = vshrl.u32 %v4013, 7
        %v4015 = vsub.s32 %v3705, %v4014
        %v4016 = vrot.slane %v2972, %v4015
        %v4017 = vlaneseq
        %v4018 = vshrl.u32 %v4017, 7
        %v4019 = vsub.s32 %v3705, %v4018
        %v4020 = vrot.slane %v2975, %v4019
        %v4021 = vlaneseq
        %v4022 = vshrl.u32 %v4021, 7
        %v4023 = vsub.s32 %v3705, %v4022
        %v4024 = vrot.slane %v2978, %v4023
        %v4025 = vlaneseq
        %v4026 = vshrl.u32 %v4025, 7
        %v4027 = vsub.s32 %v3705, %v4026
        %v4028 = vrot.slane %v2981, %v4027
        %v4029 = vlaneseq
        %v4030 = vshrl.u32 %v4029, 7
        %v4031 = vsub.s32 %v3705, %v4030
        %v4032 = vrot.slane %v2984, %v4031
        %v4033 = vlaneseq
        %v4034 = vshrl.u32 %v4033, 7
        %v4035 = vsub.s32 %v3705, %v4034
        %v4036 = vrot.slane %v2987, %v4035
        %v4037 = vlaneseq
        %v4038 = vshrl.u32 %v4037, 7
        %v4039 = vsub.s32 %v3705, %v4038
        %v4040 = vrot.slane %v2990, %v4039
        %v4041 = vlaneseq
        %v4042 = vshrl.u32 %v4041, 7
        %v4043 = vsub.s32 %v3705, %v4042
        %v4044 = vrot.slane %v2993, %v4043
        %v4045 = vlaneseq
        %v4046 = vshrl.u32 %v4045, 7
        %v4047 = vsub.s32 %v3705, %v4046
        %v4048 = vrot.slane %v2996, %v4047
        %v4049 = vlaneseq
        %v4050 = vshrl.u32 %v4049, 7
        %v4051 = vsub.s32 %v3705, %v4050
        %v4052 = vrot.slane %v2999, %v4051
        %v4053 = vlaneseq
        %v4054 = vshrl.u32 %v4053, 7
        %v4055 = vsub.s32 %v3705, %v4054
        %v4056 = vrot.slane %v3002, %v4055
        %v4057 = vlaneseq
        %v4058 = vshrl.u32 %v4057, 7
        %v4059 = vsub.s32 %v3705, %v4058
        %v4060 = vrot.slane %v3005, %v4059
        %v4061 = vlaneseq
        %v4062 = vshrl.u32 %v4061, 7
        %v4063 = vsub.s32 %v3705, %v4062
        %v4064 = vrot.slane %v3008, %v4063
        %v4065 = vlaneseq
        %v4066 = vshrl.u32 %v4065, 7
        %v4067 = vsub.s32 %v3705, %v4066
        %v4068 = vrot.slane %v3011, %v4067
        %v4069 = vlaneseq
        %v4070 = vshrl.u32 %v4069, 7
        %v4071 = vsub.s32 %v3705, %v4070
        %v4072 = vrot.slane %v3014, %v4071
        %v4073 = vlaneseq
        %v4074 = vshrl.u32 %v4073, 7
        %v4075 = vsub.s32 %v3705, %v4074
        %v4076 = vrot.slane %v3017, %v4075
        %v4077 = vlaneseq
        %v4078 = vshrl.u32 %v4077, 7
        %v4079 = vsub.s32 %v3705, %v4078
        %v4080 = vrot.slane %v3020, %v4079
        %v4081 = vlaneseq
        %v4082 = vshrl.u32 %v4081, 7
        %v4083 = vsub.s32 %v3705, %v4082
        %v4084 = vrot.slane %v3023, %v4083
        %v4085 = vlaneseq
        %v4086 = vshrl.u32 %v4085, 7
        %v4087 = vsub.s32 %v3705, %v4086
        %v4088 = vrot.slane %v3026, %v4087
        %v4089 = vlaneseq
        %v4090 = vshrl.u32 %v4089, 7
        %v4091 = vsub.s32 %v3705, %v4090
        %v4092 = vrot.slane %v3029, %v4091
        %v4093 = vlaneseq
        %v4094 = vshrl.u32 %v4093, 7
        %v4095 = vsub.s32 %v3705, %v4094
        %v4096 = vrot.slane %v3032, %v4095
        %v4097 = vlaneseq
        %v4098 = vshrl.u32 %v4097, 7
        %v4099 = vsub.s32 %v3705, %v4098
        %v4100 = vrot.slane %v3035, %v4099
        %v4101 = vlaneseq
        %v4102 = vshrl.u32 %v4101, 7
        %v4103 = vsub.s32 %v3705, %v4102
        %v4104 = vrot.slane %v3038, %v4103
        %v4105 = vlaneseq
        %v4106 = vshrl.u32 %v4105, 7
        %v4107 = vsub.s32 %v3705, %v4106
        %v4108 = vrot.slane %v3041, %v4107
        %v4109 = vlaneseq
        %v4110 = vshrl.u32 %v4109, 7
        %v4111 = vsub.s32 %v3705, %v4110
        %v4112 = vrot.slane %v3044, %v4111
        %v4113 = vlaneseq
        %v4114 = vshrl.u32 %v4113, 7
        %v4115 = vsub.s32 %v3705, %v4114
        %v4116 = vrot.slane %v3047, %v4115
        %v4117 = vlaneseq
        %v4118 = vshrl.u32 %v4117, 7
        %v4119 = vsub.s32 %v3705, %v4118
        %v4120 = vrot.slane %v3050, %v4119
        %v4121 = vlaneseq
        %v4122 = vshrl.u32 %v4121, 7
        %v4123 = vsub.s32 %v3705, %v4122
        %v4124 = vrot.slane %v3053, %v4123
        %v4125 = vlaneseq
        %v4126 = vshrl.u32 %v4125, 7
        %v4127 = vsub.s32 %v3705, %v4126
        %v4128 = vrot.slane %v3056, %v4127
        %v4129 = vlaneseq
        %v4130 = vshrl.u32 %v4129, 7
        %v4131 = vsub.s32 %v3705, %v4130
        %v4132 = vrot.slane %v3059, %v4131
        %v4133 = vlaneseq
        %v4134 = vshrl.u32 %v4133, 7
        %v4135 = vsub.s32 %v3705, %v4134
        %v4136 = vrot.slane %v3062, %v4135
        %v4137 = vlaneseq
        %v4138 = vshrl.u32 %v4137, 7
        %v4139 = vsub.s32 %v3705, %v4138
        %v4140 = vrot.slane %v3065, %v4139
        %v4141 = vlaneseq
        %v4142 = vshrl.u32 %v4141, 7
        %v4143 = vsub.s32 %v3705, %v4142
        %v4144 = vrot.slane %v3068, %v4143
        %v4145 = vlaneseq
        %v4146 = vshrl.u32 %v4145, 7
        %v4147 = vsub.s32 %v3705, %v4146
        %v4148 = vrot.slane %v3071, %v4147
        %v4149 = vlaneseq
        %v4150 = vshrl.u32 %v4149, 7
        %v4151 = vsub.s32 %v3705, %v4150
        %v4152 = vrot.slane %v3074, %v4151
        %v4153 = vlaneseq
        %v4154 = vshrl.u32 %v4153, 7
        %v4155 = vsub.s32 %v3705, %v4154
        %v4156 = vrot.slane %v3077, %v4155
        %v4157 = vlaneseq
        %v4158 = vshrl.u32 %v4157, 7
        %v4159 = vsub.s32 %v3705, %v4158
        %v4160 = vrot.slane %v3080, %v4159
        %v4161 = vlaneseq
        %v4162 = vshrl.u32 %v4161, 7
        %v4163 = vsub.s32 %v3705, %v4162
        %v4164 = vrot.slane %v3083, %v4163
        %v4165 = vlaneseq
        %v4166 = vshrl.u32 %v4165, 7
        %v4167 = vsub.s32 %v3705, %v4166
        %v4168 = vrot.slane %v3086, %v4167
        %v4169 = vlaneseq
        %v4170 = vshrl.u32 %v4169, 7
        %v4171 = vsub.s32 %v3705, %v4170
        %v4172 = vrot.slane %v3089, %v4171
        %v4173 = vlaneseq
        %v4174 = vshrl.u32 %v4173, 7
        %v4175 = vsub.s32 %v3705, %v4174
        %v4176 = vrot.slane %v3092, %v4175
        %v4177 = vlaneseq
        %v4178 = vshrl.u32 %v4177, 7
        %v4179 = vsub.s32 %v3705, %v4178
        %v4180 = vrot.slane %v3095, %v4179
        %v4181 = vlaneseq
        %v4182 = vshrl.u32 %v4181, 7
        %v4183 = vsub.s32 %v3705, %v4182
        %v4184 = vrot.slane %v3098, %v4183
        %v4185 = vlaneseq
        %v4186 = vshrl.u32 %v4185, 7
        %v4187 = vsub.s32 %v3705, %v4186
        %v4188 = vrot.slane %v3101, %v4187
        %v4189 = vlaneseq
        %v4190 = vshrl.u32 %v4189, 7
        %v4191 = vsub.s32 %v3705, %v4190
        %v4192 = vrot.slane %v3104, %v4191
        %v4193 = vlaneseq
        %v4194 = vshrl.u32 %v4193, 7
        %v4195 = vsub.s32 %v3705, %v4194
        %v4196 = vrot.slane %v3107, %v4195
        %v4197 = vlaneseq
        %v4198 = vshrl.u32 %v4197, 7
        %v4199 = vsub.s32 %v3705, %v4198
        %v4200 = vrot.slane %v3110, %v4199
        %v4201 = vlaneseq
        %v4202 = vshrl.u32 %v4201, 7
        %v4203 = vsub.s32 %v3705, %v4202
        %v4204 = vrot.slane %v3113, %v4203
        %v4205 = vlaneseq
        %v4206 = vshrl.u32 %v4205, 7
        %v4207 = vsub.s32 %v3705, %v4206
        %v4208 = vrot.slane %v3116, %v4207
        %v4209 = vlaneseq
        %v4210 = vshrl.u32 %v4209, 7
        %v4211 = vsub.s32 %v3705, %v4210
        %v4212 = vrot.slane %v3119, %v4211
        %v4213 = vlaneseq
        %v4214 = vshrl.u32 %v4213, 7
        %v4215 = vsub.s32 %v3705, %v4214
        %v4216 = vrot.slane %v3122, %v4215
        %v4217 = vlaneseq
        %v4218 = vshrl.u32 %v4217, 7
        %v4219 = vsub.s32 %v3705, %v4218
        %v4220 = vrot.slane %v3125, %v4219
        %v4221 = vlaneseq
        %v4222 = vshrl.u32 %v4221, 7
        %v4223 = vsub.s32 %v3705, %v4222
        %v4224 = vrot.slane %v3128, %v4223
        %v4225 = vlaneseq
        %v4226 = vshrl.u32 %v4225, 7
        %v4227 = vsub.s32 %v3705, %v4226
        %v4228 = vrot.slane %v3131, %v4227
        %v4229 = vlaneseq
        %v4230 = vshrl.u32 %v4229, 7
        %v4231 = vsub.s32 %v3705, %v4230
        %v4232 = vrot.slane %v3134, %v4231
        %v4233 = vlaneseq
        %v4234 = vshrl.u32 %v4233, 7
        %v4235 = vsub.s32 %v3705, %v4234
        %v4236 = vrot.slane %v3137, %v4235
        %v4237 = vlaneseq
        %v4238 = vshrl.u32 %v4237, 7
        %v4239 = vsub.s32 %v3705, %v4238
        %v4240 = vrot.slane %v3140, %v4239
        %v4241 = vlaneseq
        %v4242 = vshrl.u32 %v4241, 7
        %v4243 = vsub.s32 %v3705, %v4242
        %v4244 = vrot.slane %v3143, %v4243
        %v4245 = vlaneseq
        %v4246 = vshrl.u32 %v4245, 7
        %v4247 = vsub.s32 %v3705, %v4246
        %v4248 = vrot.slane %v3146, %v4247
        %v4249 = vlaneseq
        %v4250 = vshrl.u32 %v4249, 7
        %v4251 = vsub.s32 %v3705, %v4250
        %v4252 = vrot.slane %v3149, %v4251
        %v4253 = vlaneseq
        %v4254 = vshrl.u32 %v4253, 7
        %v4255 = vsub.s32 %v3705, %v4254
        %v4256 = vrot.slane %v3152, %v4255
        %v4257 = vlaneseq
        %v4258 = vshrl.u32 %v4257, 7
        %v4259 = vsub.s32 %v3705, %v4258
        %v4260 = vrot.slane %v3155, %v4259
        %v4261 = vlaneseq
        %v4262 = vshrl.u32 %v4261, 7
        %v4263 = vsub.s32 %v3705, %v4262
        %v4264 = vrot.slane %v3158, %v4263
        %v4265 = vlaneseq
        %v4266 = vshrl.u32 %v4265, 7
        %v4267 = vsub.s32 %v3705, %v4266
        %v4268 = vrot.slane %v3161, %v4267
        %v4269 = vlaneseq
        %v4270 = vshrl.u32 %v4269, 7
        %v4271 = vsub.s32 %v3705, %v4270
        %v4272 = vrot.slane %v3164, %v4271
        %v4273 = vlaneseq
        %v4274 = vshrl.u32 %v4273, 7
        %v4275 = vsub.s32 %v3705, %v4274
        %v4276 = vrot.slane %v3167, %v4275
        %v4277 = vlaneseq
        %v4278 = vshrl.u32 %v4277, 7
        %v4279 = vsub.s32 %v3705, %v4278
        %v4280 = vrot.slane %v3170, %v4279
        %v4281 = vlaneseq
        %v4282 = vshrl.u32 %v4281, 7
        %v4283 = vsub.s32 %v3705, %v4282
        %v4284 = vrot.slane %v3173, %v4283
        %v4285 = vlaneseq
        %v4286 = vshrl.u32 %v4285, 7
        %v4287 = vsub.s32 %v3705, %v4286
        %v4288 = vrot.slane %v3176, %v4287
        %v4289 = vlaneseq
        %v4290 = vshrl.u32 %v4289, 7
        %v4291 = vsub.s32 %v3705, %v4290
        %v4292 = vrot.slane %v3179, %v4291
        %v4293 = vlaneseq
        %v4294 = vshrl.u32 %v4293, 7
        %v4295 = vsub.s32 %v3705, %v4294
        %v4296 = vrot.slane %v3182, %v4295
        %v4297 = vlaneseq
        %v4298 = vshrl.u32 %v4297, 7
        %v4299 = vsub.s32 %v3705, %v4298
        %v4300 = vrot.slane %v3185, %v4299
        %v4301 = vlaneseq
        %v4302 = vshrl.u32 %v4301, 7
        %v4303 = vsub.s32 %v3705, %v4302
        %v4304 = vrot.slane %v3188, %v4303
        %v4305 = vlaneseq
        %v4306 = vshrl.u32 %v4305, 7
        %v4307 = vsub.s32 %v3705, %v4306
        %v4308 = vrot.slane %v3191, %v4307
        %v4309 = vlaneseq
        %v4310 = vshrl.u32 %v4309, 7
        %v4311 = vsub.s32 %v3705, %v4310
        %v4312 = vrot.slane %v3194, %v4311
        %v4313 = vlaneseq
        %v4314 = vshrl.u32 %v4313, 7
        %v4315 = vsub.s32 %v3705, %v4314
        %v4316 = vrot.slane %v3197, %v4315
        %v4317 = vlaneseq
        %v4318 = vshrl.u32 %v4317, 7
        %v4319 = vsub.s32 %v3705, %v4318
        %v4320 = vrot.slane %v3200, %v4319
        %v4321 = vlaneseq
        %v4322 = vshrl.u32 %v4321, 7
        %v4323 = vsub.s32 %v3705, %v4322
        %v4324 = vrot.slane %v3203, %v4323
        %v4325 = vlaneseq
        %v4326 = vshrl.u32 %v4325, 7
        %v4327 = vsub.s32 %v3705, %v4326
        %v4328 = vrot.slane %v3206, %v4327
        %v4329 = vlaneseq
        %v4330 = vshrl.u32 %v4329, 7
        %v4331 = vsub.s32 %v3705, %v4330
        %v4332 = vrot.slane %v3209, %v4331
        %v4333 = vlaneseq
        %v4334 = vshrl.u32 %v4333, 7
        %v4335 = vsub.s32 %v3705, %v4334
        %v4336 = vrot.slane %v3212, %v4335
        %v4337 = vlaneseq
        %v4338 = vshrl.u32 %v4337, 7
        %v4339 = vsub.s32 %v3705, %v4338
        %v4340 = vrot.slane %v3215, %v4339
        %v4341 = vlaneseq
        %v4342 = vshrl.u32 %v4341, 7
        %v4343 = vsub.s32 %v3705, %v4342
        %v4344 = vrot.slane %v3218, %v4343
        %v4345 = vlaneseq
        %v4346 = vshrl.u32 %v4345, 7
        %v4347 = vsub.s32 %v3705, %v4346
        %v4348 = vrot.slane %v3221, %v4347
        %v4349 = vlaneseq
        %v4350 = vshrl.u32 %v4349, 7
        %v4351 = vsub.s32 %v3705, %v4350
        %v4352 = vrot.slane %v3224, %v4351
        %v4353 = vlaneseq
        %v4354 = vshrl.u32 %v4353, 7
        %v4355 = vsub.s32 %v3705, %v4354
        %v4356 = vrot.slane %v3227, %v4355
        %v4357 = vlaneseq
        %v4358 = vshrl.u32 %v4357, 7
        %v4359 = vsub.s32 %v3705, %v4358
        %v4360 = vrot.slane %v3230, %v4359
        %v4361 = vlaneseq
        %v4362 = vshrl.u32 %v4361, 7
        %v4363 = vsub.s32 %v3705, %v4362
        %v4364 = vrot.slane %v3233, %v4363
        %v4365 = vlaneseq
        %v4366 = vshrl.u32 %v4365, 7
        %v4367 = vsub.s32 %v3705, %v4366
        %v4368 = vrot.slane %v3236, %v4367
        %v4369 = vlaneseq
        %v4370 = vshrl.u32 %v4369, 7
        %v4371 = vsub.s32 %v3705, %v4370
        %v4372 = vrot.slane %v3239, %v4371
        %v4373 = vlaneseq
        %v4374 = vshrl.u32 %v4373, 7
        %v4375 = vsub.s32 %v3705, %v4374
        %v4376 = vrot.slane %v3242, %v4375
        %v4377 = vlaneseq
        %v4378 = vshrl.u32 %v4377, 7
        %v4379 = vsub.s32 %v3705, %v4378
        %v4380 = vrot.slane %v3245, %v4379
        %v4381 = vlaneseq
        %v4382 = vshrl.u32 %v4381, 7
        %v4383 = vsub.s32 %v3705, %v4382
        %v4384 = vrot.slane %v3248, %v4383
        %v4385 = vlaneseq
        %v4386 = vshrl.u32 %v4385, 7
        %v4387 = vsub.s32 %v3705, %v4386
        %v4388 = vrot.slane %v3251, %v4387
        %v4389 = vlaneseq
        %v4390 = vshrl.u32 %v4389, 7
        %v4391 = vsub.s32 %v3705, %v4390
        %v4392 = vrot.slane %v3254, %v4391
        %v4393 = vlaneseq
        %v4394 = vshrl.u32 %v4393, 7
        %v4395 = vsub.s32 %v3705, %v4394
        %v4396 = vrot.slane %v3257, %v4395
        %v4397 = vlaneseq
        %v4398 = vshrl.u32 %v4397, 7
        %v4399 = vsub.s32 %v3705, %v4398
        %v4400 = vrot.slane %v3260, %v4399
        %v4401 = vlaneseq
        %v4402 = vshrl.u32 %v4401, 7
        %v4403 = vsub.s32 %v3705, %v4402
        %v4404 = vrot.slane %v3263, %v4403
        %v4405 = vlaneseq
        %v4406 = vshrl.u32 %v4405, 7
        %v4407 = vsub.s32 %v3705, %v4406
        %v4408 = vrot.slane %v3266, %v4407
        %v4409 = vlaneseq
        %v4410 = vshrl.u32 %v4409, 7
        %v4411 = vsub.s32 %v3705, %v4410
        %v4412 = vrot.slane %v3269, %v4411
        %v4413 = vlaneseq
        %v4414 = vshrl.u32 %v4413, 7
        %v4415 = vsub.s32 %v3705, %v4414
        %v4416 = vrot.slane %v3272, %v4415
        %v4417 = vlaneseq
        %v4418 = vshrl.u32 %v4417, 7
        %v4419 = vsub.s32 %v3705, %v4418
        %v4420 = vrot.slane %v3275, %v4419
        %v4421 = vlaneseq
        %v4422 = vshrl.u32 %v4421, 7
        %v4423 = vsub.s32 %v3705, %v4422
        %v4424 = vrot.slane %v3278, %v4423
        %v4425 = vlaneseq
        %v4426 = vshrl.u32 %v4425, 7
        %v4427 = vsub.s32 %v3705, %v4426
        %v4428 = vrot.slane %v3281, %v4427
        %v4429 = vlaneseq
        %v4430 = vshrl.u32 %v4429, 7
        %v4431 = vsub.s32 %v3705, %v4430
        %v4432 = vrot.slane %v3284, %v4431
        %v4433 = vlaneseq
        %v4434 = vshrl.u32 %v4433, 7
        %v4435 = vsub.s32 %v3705, %v4434
        %v4436 = vrot.slane %v3287, %v4435
        %v4437 = vlaneseq
        %v4438 = vshrl.u32 %v4437, 7
        %v4439 = vsub.s32 %v3705, %v4438
        %v4440 = vrot.slane %v3290, %v4439
        %v4441 = vlaneseq
        %v4442 = vshrl.u32 %v4441, 7
        %v4443 = vsub.s32 %v3705, %v4442
        %v4444 = vrot.slane %v3293, %v4443
        %v4445 = vlaneseq
        %v4446 = vshrl.u32 %v4445, 7
        %v4447 = vsub.s32 %v3705, %v4446
        %v4448 = vrot.slane %v3296, %v4447
        %v4449 = vlaneseq
        %v4450 = vshrl.u32 %v4449, 7
        %v4451 = vsub.s32 %v3705, %v4450
        %v4452 = vrot.slane %v3299, %v4451
        %v4453 = vlaneseq
        %v4454 = vshrl.u32 %v4453, 7
        %v4455 = vsub.s32 %v3705, %v4454
        %v4456 = vrot.slane %v3302, %v4455
        %v4457 = vlaneseq
        %v4458 = vshrl.u32 %v4457, 7
        %v4459 = vsub.s32 %v3705, %v4458
        %v4460 = vrot.slane %v3305, %v4459
        %v4461 = vlaneseq
        %v4462 = vshrl.u32 %v4461, 7
        %v4463 = vsub.s32 %v3705, %v4462
        %v4464 = vrot.slane %v3308, %v4463
        %v4465 = vlaneseq
        %v4466 = vshrl.u32 %v4465, 7
        %v4467 = vsub.s32 %v3705, %v4466
        %v4468 = vrot.slane %v3311, %v4467
        %v4469 = vlaneseq
        %v4470 = vshrl.u32 %v4469, 7
        %v4471 = vsub.s32 %v3705, %v4470
        %v4472 = vrot.slane %v3314, %v4471
        %v4473 = vlaneseq
        %v4474 = vshrl.u32 %v4473, 7
        %v4475 = vsub.s32 %v3705, %v4474
        %v4476 = vrot.slane %v3317, %v4475
        %v4477 = vlaneseq
        %v4478 = vshrl.u32 %v4477, 7
        %v4479 = vsub.s32 %v3705, %v4478
        %v4480 = vrot.slane %v3320, %v4479
        %v4481 = vlaneseq
        %v4482 = vshrl.u32 %v4481, 7
        %v4483 = vsub.s32 %v3705, %v4482
        %v4484 = vrot.slane %v3323, %v4483
        %v4485 = vlaneseq
        %v4486 = vshrl.u32 %v4485, 7
        %v4487 = vsub.s32 %v3705, %v4486
        %v4488 = vrot.slane %v3326, %v4487
        %v4489 = vlaneseq
        %v4490 = vshrl.u32 %v4489, 7
        %v4491 = vsub.s32 %v3705, %v4490
        %v4492 = vrot.slane %v3329, %v4491
        %v4493 = vlaneseq
        %v4494 = vshrl.u32 %v4493, 7
        %v4495 = vsub.s32 %v3705, %v4494
        %v4496 = vrot.slane %v3332, %v4495
        %v4497 = vlaneseq
        %v4498 = vshrl.u32 %v4497, 7
        %v4499 = vsub.s32 %v3705, %v4498
        %v4500 = vrot.slane %v3335, %v4499
        %v4501 = vlaneseq
        %v4502 = vshrl.u32 %v4501, 7
        %v4503 = vsub.s32 %v3705, %v4502
        %v4504 = vrot.slane %v3338, %v4503
        %v4505 = vlaneseq
        %v4506 = vshrl.u32 %v4505, 7
        %v4507 = vsub.s32 %v3705, %v4506
        %v4508 = vrot.slane %v3341, %v4507
        %v4509 = vlaneseq
        %v4510 = vshrl.u32 %v4509, 7
        %v4511 = vsub.s32 %v3705, %v4510
        %v4512 = vrot.slane %v3344, %v4511
        %v4513 = vlaneseq
        %v4514 = vshrl.u32 %v4513, 7
        %v4515 = vsub.s32 %v3705, %v4514
        %v4516 = vrot.slane %v3347, %v4515
        %v4517 = vlaneseq
        %v4518 = vshrl.u32 %v4517, 7
        %v4519 = vsub.s32 %v3705, %v4518
        %v4520 = vrot.slane %v3350, %v4519
        %v4521 = vlaneseq
        %v4522 = vshrl.u32 %v4521, 7
        %v4523 = vsub.s32 %v3705, %v4522
        %v4524 = vrot.slane %v3353, %v4523
        %v4525 = vlaneseq
        %v4526 = vshrl.u32 %v4525, 7
        %v4527 = vsub.s32 %v3705, %v4526
        %v4528 = vrot.slane %v3356, %v4527
        %v4529 = vlaneseq
        %v4530 = vshrl.u32 %v4529, 7
        %v4531 = vsub.s32 %v3705, %v4530
        %v4532 = vrot.slane %v3359, %v4531
        %v4533 = vlaneseq
        %v4534 = vshrl.u32 %v4533, 7
        %v4535 = vsub.s32 %v3705, %v4534
        %v4536 = vrot.slane %v3362, %v4535
        %v4537 = vlaneseq
        %v4538 = vshrl.u32 %v4537, 7
        %v4539 = vsub.s32 %v3705, %v4538
        %v4540 = vrot.slane %v3365, %v4539
        %v4541 = vlaneseq
        %v4542 = vshrl.u32 %v4541, 7
        %v4543 = vsub.s32 %v3705, %v4542
        %v4544 = vrot.slane %v3368, %v4543
        %v4545 = vlaneseq
        %v4546 = vshrl.u32 %v4545, 7
        %v4547 = vsub.s32 %v3705, %v4546
        %v4548 = vrot.slane %v3371, %v4547
        %v4549 = vlaneseq
        %v4550 = vshrl.u32 %v4549, 7
        %v4551 = vsub.s32 %v3705, %v4550
        %v4552 = vrot.slane %v3374, %v4551
        %v4553 = vlaneseq
        %v4554 = vshrl.u32 %v4553, 7
        %v4555 = vsub.s32 %v3705, %v4554
        %v4556 = vrot.slane %v3377, %v4555
        %v4557 = vlaneseq
        %v4558 = vshrl.u32 %v4557, 7
        %v4559 = vsub.s32 %v3705, %v4558
        %v4560 = vrot.slane %v3380, %v4559
        %v4561 = vlaneseq
        %v4562 = vshrl.u32 %v4561, 7
        %v4563 = vsub.s32 %v3705, %v4562
        %v4564 = vrot.slane %v3383, %v4563
        %v4565 = vlaneseq
        %v4566 = vshrl.u32 %v4565, 7
        %v4567 = vsub.s32 %v3705, %v4566
        %v4568 = vrot.slane %v3386, %v4567
        %v4569 = vlaneseq
        %v4570 = vshrl.u32 %v4569, 7
        %v4571 = vsub.s32 %v3705, %v4570
        %v4572 = vrot.slane %v3389, %v4571
        %v4573 = vlaneseq
        %v4574 = vshrl.u32 %v4573, 7
        %v4575 = vsub.s32 %v3705, %v4574
        %v4576 = vrot.slane %v3392, %v4575
        %v4577 = vlaneseq
        %v4578 = vshrl.u32 %v4577, 7
        %v4579 = vsub.s32 %v3705, %v4578
        %v4580 = vrot.slane %v3395, %v4579
        %v4581 = vlaneseq
        %v4582 = vshrl.u32 %v4581, 7
        %v4583 = vsub.s32 %v3705, %v4582
        %v4584 = vrot.slane %v3398, %v4583
        %v4585 = vlaneseq
        %v4586 = vshrl.u32 %v4585, 7
        %v4587 = vsub.s32 %v3705, %v4586
        %v4588 = vrot.slane %v3401, %v4587
        %v4589 = vlaneseq
        %v4590 = vshrl.u32 %v4589, 7
        %v4591 = vsub.s32 %v3705, %v4590
        %v4592 = vrot.slane %v3404, %v4591
        %v4593 = vlaneseq
        %v4594 = vshrl.u32 %v4593, 7
        %v4595 = vsub.s32 %v3705, %v4594
        %v4596 = vrot.slane %v3407, %v4595
        %v4597 = vlaneseq
        %v4598 = vshrl.u32 %v4597, 7
        %v4599 = vsub.s32 %v3705, %v4598
        %v4600 = vrot.slane %v3410, %v4599
        %v4601 = vlaneseq
        %v4602 = vshrl.u32 %v4601, 7
        %v4603 = vsub.s32 %v3705, %v4602
        %v4604 = vrot.slane %v3413, %v4603
        %v4605 = vlaneseq
        %v4606 = vshrl.u32 %v4605, 7
        %v4607 = vsub.s32 %v3705, %v4606
        %v4608 = vrot.slane %v3416, %v4607
        %v4609 = vlaneseq
        %v4610 = vshrl.u32 %v4609, 7
        %v4611 = vsub.s32 %v3705, %v4610
        %v4612 = vrot.slane %v3419, %v4611
        %v4613 = vlaneseq
        %v4614 = vshrl.u32 %v4613, 7
        %v4615 = vsub.s32 %v3705, %v4614
        %v4616 = vrot.slane %v3422, %v4615
        %v4617 = vlaneseq
        %v4618 = vshrl.u32 %v4617, 7
        %v4619 = vsub.s32 %v3705, %v4618
        %v4620 = vrot.slane %v3425, %v4619
        %v4621 = vlaneseq
        %v4622 = vshrl.u32 %v4621, 7
        %v4623 = vsub.s32 %v3705, %v4622
        %v4624 = vrot.slane %v3428, %v4623
        %v4625 = vlaneseq
        %v4626 = vshrl.u32 %v4625, 7
        %v4627 = vsub.s32 %v3705, %v4626
        %v4628 = vrot.slane %v3431, %v4627
        %v4629 = vlaneseq
        %v4630 = vshrl.u32 %v4629, 7
        %v4631 = vsub.s32 %v3705, %v4630
        %v4632 = vrot.slane %v3434, %v4631
        %v4633 = vlaneseq
        %v4634 = vshrl.u32 %v4633, 7
        %v4635 = vsub.s32 %v3705, %v4634
        %v4636 = vrot.slane %v3437, %v4635
        %v4637 = vlaneseq
        %v4638 = vshrl.u32 %v4637, 7
        %v4639 = vsub.s32 %v3705, %v4638
        %v4640 = vrot.slane %v3440, %v4639
        %v4641 = vlaneseq
        %v4642 = vshrl.u32 %v4641, 7
        %v4643 = vsub.s32 %v3705, %v4642
        %v4644 = vrot.slane %v3443, %v4643
        %v4645 = vlaneseq
        %v4646 = vshrl.u32 %v4645, 7
        %v4647 = vsub.s32 %v3705, %v4646
        %v4648 = vrot.slane %v3446, %v4647
        %v4649 = vlaneseq
        %v4650 = vshrl.u32 %v4649, 7
        %v4651 = vsub.s32 %v3705, %v4650
        %v4652 = vrot.slane %v3449, %v4651
        %v4653 = vlaneseq
        %v4654 = vshrl.u32 %v4653, 7
        %v4655 = vsub.s32 %v3705, %v4654
        %v4656 = vrot.slane %v3452, %v4655
        %v4657 = vlaneseq
        %v4658 = vshrl.u32 %v4657, 7
        %v4659 = vsub.s32 %v3705, %v4658
        %v4660 = vrot.slane %v3455, %v4659
        %v4661 = vlaneseq
        %v4662 = vshrl.u32 %v4661, 7
        %v4663 = vsub.s32 %v3705, %v4662
        %v4664 = vrot.slane %v3458, %v4663
        %v4665 = vlaneseq
        %v4666 = vshrl.u32 %v4665, 7
        %v4667 = vsub.s32 %v3705, %v4666
        %v4668 = vrot.slane %v3461, %v4667
        %v4669 = vlaneseq
        %v4670 = vshrl.u32 %v4669, 7
        %v4671 = vsub.s32 %v3705, %v4670
        %v4672 = vrot.slane %v3464, %v4671
        %v4673 = vlaneseq
        %v4674 = vshrl.u32 %v4673, 7
        %v4675 = vsub.s32 %v3705, %v4674
        %v4676 = vrot.slane %v3467, %v4675
        %v4677 = vlaneseq
        %v4678 = vshrl.u32 %v4677, 7
        %v4679 = vsub.s32 %v3705, %v4678
        %v4680 = vrot.slane %v3470, %v4679
        %v4681 = vlaneseq
        %v4682 = vshrl.u32 %v4681, 7
        %v4683 = vsub.s32 %v3705, %v4682
        %v4684 = vrot.slane %v3473, %v4683
        %v4685 = vlaneseq
        %v4686 = vshrl.u32 %v4685, 7
        %v4687 = vsub.s32 %v3705, %v4686
        %v4688 = vrot.slane %v3476, %v4687
        %v4689 = vlaneseq
        %v4690 = vshrl.u32 %v4689, 7
        %v4691 = vsub.s32 %v3705, %v4690
        %v4692 = vrot.slane %v3479, %v4691
        %v4693 = vlaneseq
        %v4694 = vshrl.u32 %v4693, 7
        %v4695 = vsub.s32 %v3705, %v4694
        %v4696 = vrot.slane %v3482, %v4695
        %v4697 = vlaneseq
        %v4698 = vshrl.u32 %v4697, 7
        %v4699 = vsub.s32 %v3705, %v4698
        %v4700 = vrot.slane %v3485, %v4699
        %v4701 = vlaneseq
        %v4702 = vshrl.u32 %v4701, 7
        %v4703 = vsub.s32 %v3705, %v4702
        %v4704 = vrot.slane %v3488, %v4703
        %v4705 = vlaneseq
        %v4706 = vshrl.u32 %v4705, 7
        %v4707 = vsub.s32 %v3705, %v4706
        %v4708 = vrot.slane %v3491, %v4707
        %v4709 = vlaneseq
        %v4710 = vshrl.u32 %v4709, 7
        %v4711 = vsub.s32 %v3705, %v4710
        %v4712 = vrot.slane %v3494, %v4711
        %v4713 = vlaneseq
        %v4714 = vshrl.u32 %v4713, 7
        %v4715 = vsub.s32 %v3705, %v4714
        %v4716 = vrot.slane %v3497, %v4715
        %v4717 = vlaneseq
        %v4718 = vshrl.u32 %v4717, 7
        %v4719 = vsub.s32 %v3705, %v4718
        %v4720 = vrot.slane %v3500, %v4719
        %v4721 = vlaneseq
        %v4722 = vshrl.u32 %v4721, 7
        %v4723 = vsub.s32 %v3705, %v4722
        %v4724 = vrot.slane %v3503, %v4723
        %v4725 = vlaneseq
        %v4726 = vshrl.u32 %v4725, 7
        %v4727 = vsub.s32 %v3705, %v4726
        %v4728 = vrot.slane %v3506, %v4727
        %v4729 = vlaneseq
        %v4730 = vshrl.u32 %v4729, 7
        %v4731 = vsub.s32 %v3705, %v4730
        %v4732 = vrot.slane %v3509, %v4731
        %v4733 = vlaneseq
        %v4734 = vshrl.u32 %v4733, 7
        %v4735 = vsub.s32 %v3705, %v4734
        %v4736 = vrot.slane %v3512, %v4735
        %v4737 = vlaneseq
        %v4738 = vshrl.u32 %v4737, 7
        %v4739 = vsub.s32 %v3705, %v4738
        %v4740 = vrot.slane %v3515, %v4739
        %v4741 = vlaneseq
        %v4742 = vshrl.u32 %v4741, 7
        %v4743 = vsub.s32 %v3705, %v4742
        %v4744 = vrot.slane %v3518, %v4743
        %v4745 = vlaneseq
        %v4746 = vshrl.u32 %v4745, 7
        %v4747 = vsub.s32 %v3705, %v4746
        %v4748 = vrot.slane %v3521, %v4747
        %v4749 = vlaneseq
        %v4750 = vshrl.u32 %v4749, 7
        %v4751 = vsub.s32 %v3705, %v4750
        %v4752 = vrot.slane %v3524, %v4751
        %v4753 = vlaneseq
        %v4754 = vshrl.u32 %v4753, 7
        %v4755 = vsub.s32 %v3705, %v4754
        %v4756 = vrot.slane %v3527, %v4755
        %v4757 = vlaneseq
        %v4758 = vshrl.u32 %v4757, 7
        %v4759 = vsub.s32 %v3705, %v4758
        %v4760 = vrot.slane %v3530, %v4759
        %v4761 = vlaneseq
        %v4762 = vshrl.u32 %v4761, 7
        %v4763 = vsub.s32 %v3705, %v4762
        %v4764 = vrot.slane %v3533, %v4763
        %v4765 = vlaneseq
        %v4766 = vshrl.u32 %v4765, 7
        %v4767 = vsub.s32 %v3705, %v4766
        %v4768 = vrot.slane %v3536, %v4767
        %v4769 = vlaneseq
        %v4770 = vshrl.u32 %v4769, 7
        %v4771 = vsub.s32 %v3705, %v4770
        %v4772 = vrot.slane %v3539, %v4771
        %v4773 = vlaneseq
        %v4774 = vshrl.u32 %v4773, 7
        %v4775 = vsub.s32 %v3705, %v4774
        %v4776 = vrot.slane %v3542, %v4775
        %v4777 = vlaneseq
        %v4778 = vshrl.u32 %v4777, 7
        %v4779 = vsub.s32 %v3705, %v4778
        %v4780 = vrot.slane %v3545, %v4779
        %v4781 = vlaneseq
        %v4782 = vshrl.u32 %v4781, 7
        %v4783 = vsub.s32 %v3705, %v4782
        %v4784 = vrot.slane %v3548, %v4783
        %v4785 = vlaneseq
        %v4786 = vshrl.u32 %v4785, 7
        %v4787 = vsub.s32 %v3705, %v4786
        %v4788 = vrot.slane %v3551, %v4787
        %v4789 = vlaneseq
        %v4790 = vshrl.u32 %v4789, 7
        %v4791 = vsub.s32 %v3705, %v4790
        %v4792 = vrot.slane %v3554, %v4791
        %v4793 = vlaneseq
        %v4794 = vshrl.u32 %v4793, 7
        %v4795 = vsub.s32 %v3705, %v4794
        %v4796 = vrot.slane %v3557, %v4795
        %v4797 = vlaneseq
        %v4798 = vshrl.u32 %v4797, 7
        %v4799 = vsub.s32 %v3705, %v4798
        %v4800 = vrot.slane %v3560, %v4799
        %v4801 = vlaneseq
        %v4802 = vshrl.u32 %v4801, 7
        %v4803 = vsub.s32 %v3705, %v4802
        %v4804 = vrot.slane %v3563, %v4803
        %v4805 = vlaneseq
        %v4806 = vshrl.u32 %v4805, 7
        %v4807 = vsub.s32 %v3705, %v4806
        %v4808 = vrot.slane %v3566, %v4807
        %v4809 = vlaneseq
        %v4810 = vshrl.u32 %v4809, 7
        %v4811 = vsub.s32 %v3705, %v4810
        %v4812 = vrot.slane %v3569, %v4811
        %v4813 = vlaneseq
        %v4814 = vshrl.u32 %v4813, 7
        %v4815 = vsub.s32 %v3705, %v4814
        %v4816 = vrot.slane %v3572, %v4815
        %v4817 = vlaneseq
        %v4818 = vshrl.u32 %v4817, 7
        %v4819 = vsub.s32 %v3705, %v4818
        %v4820 = vrot.slane %v3575, %v4819
        %v4821 = vlaneseq
        %v4822 = vshrl.u32 %v4821, 7
        %v4823 = vsub.s32 %v3705, %v4822
        %v4824 = vrot.slane %v3578, %v4823
        %v4825 = vlaneseq
        %v4826 = vshrl.u32 %v4825, 7
        %v4827 = vsub.s32 %v3705, %v4826
        %v4828 = vrot.slane %v3581, %v4827
        %v4829 = vlaneseq
        %v4830 = vshrl.u32 %v4829, 7
        %v4831 = vsub.s32 %v3705, %v4830
        %v4832 = vrot.slane %v3584, %v4831
        %v4833 = vlaneseq
        %v4834 = vshrl.u32 %v4833, 7
        %v4835 = vsub.s32 %v3705, %v4834
        %v4836 = vrot.slane %v3587, %v4835
        %v4837 = vlaneseq
        %v4838 = vshrl.u32 %v4837, 7
        %v4839 = vsub.s32 %v3705, %v4838
        %v4840 = vrot.slane %v3590, %v4839
        %v4841 = vlaneseq
        %v4842 = vshrl.u32 %v4841, 7
        %v4843 = vsub.s32 %v3705, %v4842
        %v4844 = vrot.slane %v3593, %v4843
        %v4845 = vlaneseq
        %v4846 = vshrl.u32 %v4845, 7
        %v4847 = vsub.s32 %v3705, %v4846
        %v4848 = vrot.slane %v3596, %v4847
        %v4849 = vlaneseq
        %v4850 = vshrl.u32 %v4849, 7
        %v4851 = vsub.s32 %v3705, %v4850
        %v4852 = vrot.slane %v3599, %v4851
        %v4853 = vlaneseq
        %v4854 = vshrl.u32 %v4853, 7
        %v4855 = vsub.s32 %v3705, %v4854
        %v4856 = vrot.slane %v3602, %v4855
        %v4857 = vlaneseq
        %v4858 = vshrl.u32 %v4857, 7
        %v4859 = vsub.s32 %v3705, %v4858
        %v4860 = vrot.slane %v3605, %v4859
        %v4861 = vlaneseq
        %v4862 = vshrl.u32 %v4861, 7
        %v4863 = vsub.s32 %v3705, %v4862
        %v4864 = vrot.slane %v3608, %v4863
        %v4865 = vlaneseq
        %v4866 = vshrl.u32 %v4865, 7
        %v4867 = vsub.s32 %v3705, %v4866
        %v4868 = vrot.slane %v3611, %v4867
        %v4869 = vlaneseq
        %v4870 = vshrl.u32 %v4869, 7
        %v4871 = vsub.s32 %v3705, %v4870
        %v4872 = vrot.slane %v3614, %v4871
        %v4873 = vlaneseq
        %v4874 = vshrl.u32 %v4873, 7
        %v4875 = vsub.s32 %v3705, %v4874
        %v4876 = vrot.slane %v3617, %v4875
        %v4877 = vlaneseq
        %v4878 = vshrl.u32 %v4877, 7
        %v4879 = vsub.s32 %v3705, %v4878
        %v4880 = vrot.slane %v3620, %v4879
        %v4881 = vlaneseq
        %v4882 = vshrl.u32 %v4881, 7
        %v4883 = vsub.s32 %v3705, %v4882
        %v4884 = vrot.slane %v3623, %v4883
        %v4885 = vlaneseq
        %v4886 = vshrl.u32 %v4885, 7
        %v4887 = vsub.s32 %v3705, %v4886
        %v4888 = vrot.slane %v3626, %v4887
        %v4889 = vlaneseq
        %v4890 = vshrl.u32 %v4889, 7
        %v4891 = vsub.s32 %v3705, %v4890
        %v4892 = vrot.slane %v3629, %v4891
        %v4893 = vlaneseq
        %v4894 = vshrl.u32 %v4893, 7
        %v4895 = vsub.s32 %v3705, %v4894
        %v4896 = vrot.slane %v3632, %v4895
        %v4897 = vlaneseq
        %v4898 = vshrl.u32 %v4897, 7
        %v4899 = vsub.s32 %v3705, %v4898
        %v4900 = vrot.slane %v3635, %v4899
        %v4901 = vlaneseq
        %v4902 = vshrl.u32 %v4901, 7
        %v4903 = vsub.s32 %v3705, %v4902
        %v4904 = vrot.slane %v3638, %v4903
        %v4905 = vlaneseq
        %v4906 = vshrl.u32 %v4905, 7
        %v4907 = vsub.s32 %v3705, %v4906
        %v4908 = vrot.slane %v3641, %v4907
        %v4909 = vlaneseq
        %v4910 = vshrl.u32 %v4909, 7
        %v4911 = vsub.s32 %v3705, %v4910
        %v4912 = vrot.slane %v3644, %v4911
        %v4913 = vlaneseq
        %v4914 = vshrl.u32 %v4913, 7
        %v4915 = vsub.s32 %v3705, %v4914
        %v4916 = vrot.slane %v3647, %v4915
        %v4917 = vlaneseq
        %v4918 = vshrl.u32 %v4917, 7
        %v4919 = vsub.s32 %v3705, %v4918
        %v4920 = vrot.slane %v3650, %v4919
        %v4921 = vlaneseq
        %v4922 = vshrl.u32 %v4921, 7
        %v4923 = vsub.s32 %v3705, %v4922
        %v4924 = vrot.slane %v3653, %v4923
        %v4925 = vlaneseq
        %v4926 = vshrl.u32 %v4925, 7
        %v4927 = vsub.s32 %v3705, %v4926
        %v4928 = vrot.slane %v3656, %v4927
        %v4929 = vlaneseq
        %v4930 = vshrl.u32 %v4929, 7
        %v4931 = vsub.s32 %v3705, %v4930
        %v4932 = vrot.slane %v3659, %v4931
        %v4933 = vlaneseq
        %v4934 = vshrl.u32 %v4933, 7
        %v4935 = vsub.s32 %v3705, %v4934
        %v4936 = vrot.slane %v3662, %v4935
        %v4937 = vlaneseq
        %v4938 = vshrl.u32 %v4937, 7
        %v4939 = vsub.s32 %v3705, %v4938
        %v4940 = vrot.slane %v3665, %v4939
        %v4941 = vlaneseq
        %v4942 = vshrl.u32 %v4941, 7
        %v4943 = vsub.s32 %v3705, %v4942
        %v4944 = vrot.slane %v3668, %v4943
        %v4945 = vlaneseq
        %v4946 = vshrl.u32 %v4945, 7
        %v4947 = vsub.s32 %v3705, %v4946
        %v4948 = vrot.slane %v3671, %v4947
        %v4949 = vlaneseq
        %v4950 = vshrl.u32 %v4949, 7
        %v4951 = vsub.s32 %v3705, %v4950
        %v4952 = vrot.slane %v3674, %v4951
        %v4953 = vlaneseq
        %v4954 = vshrl.u32 %v4953, 7
        %v4955 = vsub.s32 %v3705, %v4954
        %v4956 = vrot.slane %v3677, %v4955
        %v4957 = vlaneseq
        %v4958 = vshrl.u32 %v4957, 7
        %v4959 = vsub.s32 %v3705, %v4958
        %v4960 = vrot.slane %v3680, %v4959
        %v4961 = vlaneseq
        %v4962 = vshrl.u32 %v4961, 7
        %v4963 = vsub.s32 %v3705, %v4962
        %v4964 = vrot.slane %v3683, %v4963
        %v4965 = vlaneseq
        %v4966 = vshrl.u32 %v4965, 7
        %v4967 = vsub.s32 %v3705, %v4966
        %v4968 = vrot.slane %v3686, %v4967
        %v4969 = vlaneseq
        %v4970 = vshrl.u32 %v4969, 7
        %v4971 = vsub.s32 %v3705, %v4970
        %v4972 = vrot.slane %v3689, %v4971
        %v4973 = vlaneseq
        %v4974 = vshrl.u32 %v4973, 7
        %v4975 = vsub.s32 %v3705, %v4974
        %v4976 = vrot.slane %v3692, %v4975
        %v4977 = vlaneseq
        %v4978 = vshrl.u32 %v4977, 7
        %v4979 = vsub.s32 %v3705, %v4978
        %v4980 = vrot.slane %v3695, %v4979
        %v4981 = vlaneseq
        %v4982 = vshrl.u32 %v4981, 7
        %v4983 = vsub.s32 %v3705, %v4982
        %v4984 = vrot.slane %v3698, %v4983
        %v4985 = vlaneseq
        %v4986 = vshrl.u32 %v4985, 7
        %v4987 = vsub.s32 %v3705, %v4986
        %v4988 = vrot.slane %v3701, %v4987
        %vm4989 = vcmask 1041409
        %v4990 = vsel %vm4989, %v3972, %v3968
        %vm4991 = vcmask 1042434
        %v4992 = vsel %vm4991, %v3976, %v4990
        %vm4993 = vcmask 1043459
        %v4994 = vsel %vm4993, %v3980, %v4992
        %vm4995 = vcmask 1044484
        %v4996 = vsel %vm4995, %v3984, %v4994
        %vm4997 = vcmask 1045509
        %v4998 = vsel %vm4997, %v3988, %v4996
        %vm4999 = vcmask 1046534
        %v5000 = vsel %vm4999, %v3992, %v4998
        %vm5001 = vcmask 1047559
        %v5002 = vsel %vm5001, %v3996, %v5000
        %v5003 = vsel %vm4989, %v4004, %v4000
        %v5004 = vsel %vm4991, %v4008, %v5003
        %v5005 = vsel %vm4993, %v4012, %v5004
        %v5006 = vsel %vm4995, %v4016, %v5005
        %v5007 = vsel %vm4997, %v4020, %v5006
        %v5008 = vsel %vm4999, %v4024, %v5007
        %v5009 = vsel %vm5001, %v4028, %v5008
        %v5010 = vsel %vm4989, %v4036, %v4032
        %v5011 = vsel %vm4991, %v4040, %v5010
        %v5012 = vsel %vm4993, %v4044, %v5011
        %v5013 = vsel %vm4995, %v4048, %v5012
        %v5014 = vsel %vm4997, %v4052, %v5013
        %v5015 = vsel %vm4999, %v4056, %v5014
        %v5016 = vsel %vm5001, %v4060, %v5015
        %v5017 = vsel %vm4989, %v4068, %v4064
        %v5018 = vsel %vm4991, %v4072, %v5017
        %v5019 = vsel %vm4993, %v4076, %v5018
        %v5020 = vsel %vm4995, %v4080, %v5019
        %v5021 = vsel %vm4997, %v4084, %v5020
        %v5022 = vsel %vm4999, %v4088, %v5021
        %v5023 = vsel %vm5001, %v4092, %v5022
        %v5024 = vsel %vm4989, %v4100, %v4096
        %v5025 = vsel %vm4991, %v4104, %v5024
        %v5026 = vsel %vm4993, %v4108, %v5025
        %v5027 = vsel %vm4995, %v4112, %v5026
        %v5028 = vsel %vm4997, %v4116, %v5027
        %v5029 = vsel %vm4999, %v4120, %v5028
        %v5030 = vsel %vm5001, %v4124, %v5029
        %v5031 = vsel %vm4989, %v4132, %v4128
        %v5032 = vsel %vm4991, %v4136, %v5031
        %v5033 = vsel %vm4993, %v4140, %v5032
        %v5034 = vsel %vm4995, %v4144, %v5033
        %v5035 = vsel %vm4997, %v4148, %v5034
        %v5036 = vsel %vm4999, %v4152, %v5035
        %v5037 = vsel %vm5001, %v4156, %v5036
        %v5038 = vsel %vm4989, %v4164, %v4160
        %v5039 = vsel %vm4991, %v4168, %v5038
        %v5040 = vsel %vm4993, %v4172, %v5039
        %v5041 = vsel %vm4995, %v4176, %v5040
        %v5042 = vsel %vm4997, %v4180, %v5041
        %v5043 = vsel %vm4999, %v4184, %v5042
        %v5044 = vsel %vm5001, %v4188, %v5043
        %v5045 = vsel %vm4989, %v4196, %v4192
        %v5046 = vsel %vm4991, %v4200, %v5045
        %v5047 = vsel %vm4993, %v4204, %v5046
        %v5048 = vsel %vm4995, %v4208, %v5047
        %v5049 = vsel %vm4997, %v4212, %v5048
        %v5050 = vsel %vm4999, %v4216, %v5049
        %v5051 = vsel %vm5001, %v4220, %v5050
        %v5052 = vsel %vm4989, %v4228, %v4224
        %v5053 = vsel %vm4991, %v4232, %v5052
        %v5054 = vsel %vm4993, %v4236, %v5053
        %v5055 = vsel %vm4995, %v4240, %v5054
        %v5056 = vsel %vm4997, %v4244, %v5055
        %v5057 = vsel %vm4999, %v4248, %v5056
        %v5058 = vsel %vm5001, %v4252, %v5057
        %v5059 = vsel %vm4989, %v4260, %v4256
        %v5060 = vsel %vm4991, %v4264, %v5059
        %v5061 = vsel %vm4993, %v4268, %v5060
        %v5062 = vsel %vm4995, %v4272, %v5061
        %v5063 = vsel %vm4997, %v4276, %v5062
        %v5064 = vsel %vm4999, %v4280, %v5063
        %v5065 = vsel %vm5001, %v4284, %v5064
        %v5066 = vsel %vm4989, %v4292, %v4288
        %v5067 = vsel %vm4991, %v4296, %v5066
        %v5068 = vsel %vm4993, %v4300, %v5067
        %v5069 = vsel %vm4995, %v4304, %v5068
        %v5070 = vsel %vm4997, %v4308, %v5069
        %v5071 = vsel %vm4999, %v4312, %v5070
        %v5072 = vsel %vm5001, %v4316, %v5071
        %v5073 = vsel %vm4989, %v4324, %v4320
        %v5074 = vsel %vm4991, %v4328, %v5073
        %v5075 = vsel %vm4993, %v4332, %v5074
        %v5076 = vsel %vm4995, %v4336, %v5075
        %v5077 = vsel %vm4997, %v4340, %v5076
        %v5078 = vsel %vm4999, %v4344, %v5077
        %v5079 = vsel %vm5001, %v4348, %v5078
        %v5080 = vsel %vm4989, %v4356, %v4352
        %v5081 = vsel %vm4991, %v4360, %v5080
        %v5082 = vsel %vm4993, %v4364, %v5081
        %v5083 = vsel %vm4995, %v4368, %v5082
        %v5084 = vsel %vm4997, %v4372, %v5083
        %v5085 = vsel %vm4999, %v4376, %v5084
        %v5086 = vsel %vm5001, %v4380, %v5085
        %v5087 = vsel %vm4989, %v4388, %v4384
        %v5088 = vsel %vm4991, %v4392, %v5087
        %v5089 = vsel %vm4993, %v4396, %v5088
        %v5090 = vsel %vm4995, %v4400, %v5089
        %v5091 = vsel %vm4997, %v4404, %v5090
        %v5092 = vsel %vm4999, %v4408, %v5091
        %v5093 = vsel %vm5001, %v4412, %v5092
        %v5094 = vsel %vm4989, %v4420, %v4416
        %v5095 = vsel %vm4991, %v4424, %v5094
        %v5096 = vsel %vm4993, %v4428, %v5095
        %v5097 = vsel %vm4995, %v4432, %v5096
        %v5098 = vsel %vm4997, %v4436, %v5097
        %v5099 = vsel %vm4999, %v4440, %v5098
        %v5100 = vsel %vm5001, %v4444, %v5099
        %v5101 = vsel %vm4989, %v4452, %v4448
        %v5102 = vsel %vm4991, %v4456, %v5101
        %v5103 = vsel %vm4993, %v4460, %v5102
        %v5104 = vsel %vm4995, %v4464, %v5103
        %v5105 = vsel %vm4997, %v4468, %v5104
        %v5106 = vsel %vm4999, %v4472, %v5105
        %v5107 = vsel %vm5001, %v4476, %v5106
        %v5108 = vsel %vm4989, %v4484, %v4480
        %v5109 = vsel %vm4991, %v4488, %v5108
        %v5110 = vsel %vm4993, %v4492, %v5109
        %v5111 = vsel %vm4995, %v4496, %v5110
        %v5112 = vsel %vm4997, %v4500, %v5111
        %v5113 = vsel %vm4999, %v4504, %v5112
        %v5114 = vsel %vm5001, %v4508, %v5113
        %v5115 = vsel %vm4989, %v4516, %v4512
        %v5116 = vsel %vm4991, %v4520, %v5115
        %v5117 = vsel %vm4993, %v4524, %v5116
        %v5118 = vsel %vm4995, %v4528, %v5117
        %v5119 = vsel %vm4997, %v4532, %v5118
        %v5120 = vsel %vm4999, %v4536, %v5119
        %v5121 = vsel %vm5001, %v4540, %v5120
        %v5122 = vsel %vm4989, %v4548, %v4544
        %v5123 = vsel %vm4991, %v4552, %v5122
        %v5124 = vsel %vm4993, %v4556, %v5123
        %v5125 = vsel %vm4995, %v4560, %v5124
        %v5126 = vsel %vm4997, %v4564, %v5125
        %v5127 = vsel %vm4999, %v4568, %v5126
        %v5128 = vsel %vm5001, %v4572, %v5127
        %v5129 = vsel %vm4989, %v4580, %v4576
        %v5130 = vsel %vm4991, %v4584, %v5129
        %v5131 = vsel %vm4993, %v4588, %v5130
        %v5132 = vsel %vm4995, %v4592, %v5131
        %v5133 = vsel %vm4997, %v4596, %v5132
        %v5134 = vsel %vm4999, %v4600, %v5133
        %v5135 = vsel %vm5001, %v4604, %v5134
        %v5136 = vsel %vm4989, %v4612, %v4608
        %v5137 = vsel %vm4991, %v4616, %v5136
        %v5138 = vsel %vm4993, %v4620, %v5137
        %v5139 = vsel %vm4995, %v4624, %v5138
        %v5140 = vsel %vm4997, %v4628, %v5139
        %v5141 = vsel %vm4999, %v4632, %v5140
        %v5142 = vsel %vm5001, %v4636, %v5141
        %v5143 = vsel %vm4989, %v4644, %v4640
        %v5144 = vsel %vm4991, %v4648, %v5143
        %v5145 = vsel %vm4993, %v4652, %v5144
        %v5146 = vsel %vm4995, %v4656, %v5145
        %v5147 = vsel %vm4997, %v4660, %v5146
        %v5148 = vsel %vm4999, %v4664, %v5147
        %v5149 = vsel %vm5001, %v4668, %v5148
        %v5150 = vsel %vm4989, %v4676, %v4672
        %v5151 = vsel %vm4991, %v4680, %v5150
        %v5152 = vsel %vm4993, %v4684, %v5151
        %v5153 = vsel %vm4995, %v4688, %v5152
        %v5154 = vsel %vm4997, %v4692, %v5153
        %v5155 = vsel %vm4999, %v4696, %v5154
        %v5156 = vsel %vm5001, %v4700, %v5155
        %v5157 = vsel %vm4989, %v4708, %v4704
        %v5158 = vsel %vm4991, %v4712, %v5157
        %v5159 = vsel %vm4993, %v4716, %v5158
        %v5160 = vsel %vm4995, %v4720, %v5159
        %v5161 = vsel %vm4997, %v4724, %v5160
        %v5162 = vsel %vm4999, %v4728, %v5161
        %v5163 = vsel %vm5001, %v4732, %v5162
        %v5164 = vsel %vm4989, %v4740, %v4736
        %v5165 = vsel %vm4991, %v4744, %v5164
        %v5166 = vsel %vm4993, %v4748, %v5165
        %v5167 = vsel %vm4995, %v4752, %v5166
        %v5168 = vsel %vm4997, %v4756, %v5167
        %v5169 = vsel %vm4999, %v4760, %v5168
        %v5170 = vsel %vm5001, %v4764, %v5169
        %v5171 = vsel %vm4989, %v4772, %v4768
        %v5172 = vsel %vm4991, %v4776, %v5171
        %v5173 = vsel %vm4993, %v4780, %v5172
        %v5174 = vsel %vm4995, %v4784, %v5173
        %v5175 = vsel %vm4997, %v4788, %v5174
        %v5176 = vsel %vm4999, %v4792, %v5175
        %v5177 = vsel %vm5001, %v4796, %v5176
        %v5178 = vsel %vm4989, %v4804, %v4800
        %v5179 = vsel %vm4991, %v4808, %v5178
        %v5180 = vsel %vm4993, %v4812, %v5179
        %v5181 = vsel %vm4995, %v4816, %v5180
        %v5182 = vsel %vm4997, %v4820, %v5181
        %v5183 = vsel %vm4999, %v4824, %v5182
        %v5184 = vsel %vm5001, %v4828, %v5183
        %v5185 = vsel %vm4989, %v4836, %v4832
        %v5186 = vsel %vm4991, %v4840, %v5185
        %v5187 = vsel %vm4993, %v4844, %v5186
        %v5188 = vsel %vm4995, %v4848, %v5187
        %v5189 = vsel %vm4997, %v4852, %v5188
        %v5190 = vsel %vm4999, %v4856, %v5189
        %v5191 = vsel %vm5001, %v4860, %v5190
        %v5192 = vsel %vm4989, %v4868, %v4864
        %v5193 = vsel %vm4991, %v4872, %v5192
        %v5194 = vsel %vm4993, %v4876, %v5193
        %v5195 = vsel %vm4995, %v4880, %v5194
        %v5196 = vsel %vm4997, %v4884, %v5195
        %v5197 = vsel %vm4999, %v4888, %v5196
        %v5198 = vsel %vm5001, %v4892, %v5197
        %v5199 = vsel %vm4989, %v4900, %v4896
        %v5200 = vsel %vm4991, %v4904, %v5199
        %v5201 = vsel %vm4993, %v4908, %v5200
        %v5202 = vsel %vm4995, %v4912, %v5201
        %v5203 = vsel %vm4997, %v4916, %v5202
        %v5204 = vsel %vm4999, %v4920, %v5203
        %v5205 = vsel %vm5001, %v4924, %v5204
        %v5206 = vsel %vm4989, %v4932, %v4928
        %v5207 = vsel %vm4991, %v4936, %v5206
        %v5208 = vsel %vm4993, %v4940, %v5207
        %v5209 = vsel %vm4995, %v4944, %v5208
        %v5210 = vsel %vm4997, %v4948, %v5209
        %v5211 = vsel %vm4999, %v4952, %v5210
        %v5212 = vsel %vm5001, %v4956, %v5211
        %v5213 = vsel %vm4989, %v4964, %v4960
        %v5214 = vsel %vm4991, %v4968, %v5213
        %v5215 = vsel %vm4993, %v4972, %v5214
        %v5216 = vsel %vm4995, %v4976, %v5215
        %v5217 = vsel %vm4997, %v4980, %v5216
        %v5218 = vsel %vm4999, %v4984, %v5217
        %v5219 = vsel %vm5001, %v4988, %v5218
        %vm5220 = vcmask 64512
        %v5222 = vsel %vm5220, %v3708, 0
        %v5224 = vsel %vm5220, %v5002, 0
        %v5226 = vsel %vm5220, %v5009, 0
        %v5228 = vsel %vm5220, %v5016, 0
        %v5230 = vsel %vm5220, %v5023, 0
        %v5232 = vsel %vm5220, %v5030, 0
        %v5234 = vsel %vm5220, %v5037, 0
        %v5236 = vsel %vm5220, %v5044, 0
        %v5238 = vsel %vm5220, %v5051, 0
        %v5240 = vsel %vm5220, %v5058, 0
        %v5242 = vsel %vm5220, %v5065, 0
        %v5244 = vsel %vm5220, %v5072, 0
        %v5246 = vsel %vm5220, %v5079, 0
        %v5248 = vsel %vm5220, %v5086, 0
        %v5250 = vsel %vm5220, %v5093, 0
        %v5252 = vsel %vm5220, %v5100, 0
        %v5254 = vsel %vm5220, %v5107, 0
        %v5256 = vsel %vm5220, %v5114, 0
        %v5258 = vsel %vm5220, %v5121, 0
        %v5260 = vsel %vm5220, %v5128, 0
        %v5262 = vsel %vm5220, %v5135, 0
        %v5264 = vsel %vm5220, %v5142, 0
        %v5266 = vsel %vm5220, %v5149, 0
        %v5268 = vsel %vm5220, %v5156, 0
        %v5270 = vsel %vm5220, %v5163, 0
        %v5272 = vsel %vm5220, %v5170, 0
        %v5274 = vsel %vm5220, %v5177, 0
        %v5276 = vsel %vm5220, %v5184, 0
        %v5278 = vsel %vm5220, %v5191, 0
        %v5280 = vsel %vm5220, %v5198, 0
        %v5282 = vsel %vm5220, %v5205, 0
        %v5284 = vsel %vm5220, %v5212, 0
        %v5286 = vsel %vm5220, %v5219, 0
        %5288 = vmatprep.subr.mxu0 0.0
        %5289 = vmatpush1.xpose.msra.mxu0 %v5254
        %5290 = vmatprep.subr.mxu0 0.0
        %5291 = vmatpush1.xpose.msra.mxu0 %v5252
        %5292 = vmatprep.subr.mxu0 0.0
        %5293 = vmatpush1.xpose.msra.mxu0 %v5250
        %5294 = vmatprep.subr.mxu0 0.0
        %5295 = vmatpush1.xpose.msra.mxu0 %v5248
        %5296 = vmatprep.subr.mxu0 0.0
        %5297 = vmatpush1.xpose.msra.mxu0 %v5246
        %5298 = vmatprep.subr.mxu0 0.0
        %5299 = vmatpush1.xpose.msra.mxu0 %v5244
        %5300 = vmatprep.subr.mxu0 0.0
        %5301 = vmatpush1.xpose.msra.mxu0 %v5242
        %5302 = vmatprep.subr.mxu0 0.0
        %5303 = vmatpush1.xpose.msra.mxu0 %v5240
        %5304 = vmatprep.subr.mxu0 0.0
        %5305 = vmatpush1.xpose.msra.mxu0 %v5238
        %5306 = vmatprep.subr.mxu0 0.0
        %5307 = vmatpush1.xpose.msra.mxu0 %v5236
        %5308 = vmatprep.subr.mxu0 0.0
        %5309 = vmatpush1.xpose.msra.mxu0 %v5234
        %5310 = vmatprep.subr.mxu0 0.0
        %5311 = vmatpush1.xpose.msra.mxu0 %v5232
        %5312 = vmatprep.subr.mxu0 0.0
        %5313 = vmatpush1.xpose.msra.mxu0 %v5230
        %5314 = vmatprep.subr.mxu0 0.0
        %5315 = vmatpush1.xpose.msra.mxu0 %v5228
        %5316 = vmatprep.subr.mxu0 0.0
        %5317 = vmatpush1.xpose.msra.mxu0 %v5226
        %5318 = vmatprep.subr.mxu0 0.0
        %5319 = vmatpush1.xpose.msra.mxu0 %v5224
        %5320 = vmatprep.subr.mxu0 0.0
        %5321 = vmatpush2.xpose.msra.mxu0 %v5286
        %5322 = vmatprep.subr.mxu0 0.0
        %5323 = vmatpush2.xpose.msra.mxu0 %v5284
        %5324 = vmatprep.subr.mxu0 0.0
        %5325 = vmatpush2.xpose.msra.mxu0 %v5282
        %5326 = vmatprep.subr.mxu0 0.0
        %5327 = vmatpush2.xpose.msra.mxu0 %v5280
        %5328 = vmatprep.subr.mxu0 0.0
        %5329 = vmatpush2.xpose.msra.mxu0 %v5278
        %5330 = vmatprep.subr.mxu0 0.0
        %5331 = vmatpush2.xpose.msra.mxu0 %v5276
        %5332 = vmatprep.subr.mxu0 0.0
        %5333 = vmatpush2.xpose.msra.mxu0 %v5274
        %5334 = vmatprep.subr.mxu0 0.0
        %5335 = vmatpush2.xpose.msra.mxu0 %v5272
        %5336 = vmatprep.subr.mxu0 0.0
        %5337 = vmatpush2.xpose.msra.mxu0 %v5270
        %5338 = vmatprep.subr.mxu0 0.0
        %5339 = vmatpush2.xpose.msra.mxu0 %v5268
        %5340 = vmatprep.subr.mxu0 0.0
        %5341 = vmatpush2.xpose.msra.mxu0 %v5266
        %5342 = vmatprep.subr.mxu0 0.0
        %5343 = vmatpush2.xpose.msra.mxu0 %v5264
        %5344 = vmatprep.subr.mxu0 0.0
        %5345 = vmatpush2.xpose.msra.mxu0 %v5262
        %5346 = vmatprep.subr.mxu0 0.0
        %5347 = vmatpush2.xpose.msra.mxu0 %v5260
        %5348 = vmatprep.subr.mxu0 0.0
        %5349 = vmatpush2.xpose.msra.mxu0 %v5258
        %5350 = vmatprep.subr.mxu0 0.0
        %5351 = vmatpush2.xpose.msra.mxu0 %v5256
        %5352 = vmatprep.mubr.f32.mxu0 0.0
        %5353 = vmatmul.mubr.f32.gmra.mxu0 %v5222
        %v5354 = vpop.f32.mrf.mxu0
        %v5355 = vadd.f32 0.0, %v5354
        %v5356 = vpop.f32.mrf.mxu0
        %v5357 = vadd.f32 0.0, %v5356
        %5358 = vdwg.mxu0
        %v5359 = vld [vmem:[%s264] sm:$0xff]
        %v5360 = vld [vmem:[%s264 + $0x8] sm:$0xff]
        %vm5361 = vcmp.ne.s32.totalorder %v5359, 0
        %vm5362 = vcmp.ne.s32.totalorder %v5360, 0
        %v5363 = vsel %vm5361, -inf, %v5355
        %v5364 = vsel %vm5362, -inf, %v5357
        %v5365 = vrot.slane %v5363, 4
        %v5366 = vmax.f32 %v5363, %v5365
        %v5367 = vrot.slane %v5366, 2
        %v5368 = vmax.f32 %v5366, %v5367
        %v5369 = vrot.slane %v5368, 1
        %v5370 = vmax.f32 %v5368, %v5369
        %v5371 = vrot.slane %v5364, 4
        %v5372 = vmax.f32 %v5364, %v5371
        %v5373 = vrot.slane %v5372, 2
        %v5374 = vmax.f32 %v5372, %v5373
        %v5375 = vrot.slane %v5374, 1
        %v5376 = vmax.f32 %v5374, %v5375
        %v5377 = vsub.f32 %v5363, %v5370
        %v5378 = vsub.f32 %v5364, %v5376
        %v5379 = vmul.f32 %v5377, 1.442695
        %v5380 = vpow.pop %v5379
        %v5381 = vmul.f32 %v5378, 1.442695
        %v5382 = vpow.pop %v5381
        %v5383 = vrot.slane %v5380, 4
        %v5384 = vadd.f32 %v5380, %v5383
        %v5385 = vrot.slane %v5384, 2
        %v5386 = vadd.f32 %v5384, %v5385
        %v5387 = vrot.slane %v5386, 1
        %v5388 = vadd.f32 %v5386, %v5387
        %v5389 = vrot.slane %v5382, 4
        %v5390 = vadd.f32 %v5382, %v5389
        %v5391 = vrot.slane %v5390, 2
        %v5392 = vadd.f32 %v5390, %v5391
        %v5393 = vrot.slane %v5392, 1
        %v5394 = vadd.f32 %v5392, %v5393
        %v5395 = vrcp.pop %v5388
        %v5396 = vmul.f32 %v5380, %v5395
        %v5397 = vrcp.pop %v5394
        %v5398 = vmul.f32 %v5382, %v5397
        %5399 = vst [vmem:[%s258] sm:$0xff] %v5396
        %5400 = vst [vmem:[%s258 + $0x8] sm:$0xff] %v5398
        %s5401 = sand.u32 %s145, 1
        %s5402 = scalar_lea.sflag [#allocation4], %s5401
        %s5403 = sand.u32 %s145, 1
        %s5404 = smul.addr %s5403, 16
        %s5405 = scalar_lea.vmem [#allocation5], %s5404
        // Predicated region
        $region45: #{attention_forward.1} parent=39 // pred_check
          %p5406 = pneg %p155
        $region46: #{attention_forward.1} parent=39 // pred_check_branch
          %5408 = sbr.rel (%p5406) target = $region48
        $region47: #{attention_forward.1} parent=39 // pred_region
          %s5409 = smul.u32 2, %s22
          %s5411 = ssub.s32 256, 256
          %5412 = vsyncadd %s5402, %s5411
          %s5413 = smul.addr %s5409, 128
          %s5414 = scalar_lea.hbm %s5, %s5413
          %s5416 = sshll.u32 %s5405, 4
          %s5417 = int_to_ptr.vmem [resolvable:$true] %s5416
          %5419 = dma.vmem_to_hbm [thread:$0]  %s5417, 256, %s5414, %s5402
        $region48: #{attention_forward.1} parent=39 // pred_fallthru
          _
      $region40: #{attention_forward.1} parent=5 // pred_fallthru
        _
      %p5420 = scmp.le.s32.totalorder 2, %s17
      // Predicated region
      $region49: #{attention_forward.1} parent=5 // pred_check
        %p5421 = pneg %p5420
      $region50: #{attention_forward.1} parent=5 // pred_check_branch
        %5423 = sbr.rel (%p5421) target = $region52
      $region51: #{attention_forward.1} parent=5 // pred_region
        %s5424 = ssub.s32 %s17, 2
        // Predicated region
        $region53: #{attention_forward.1} parent=51 // pred_check
          %p5425 = pneg %p161
        $region54: #{attention_forward.1} parent=51 // pred_check_branch
          %5427 = sbr.rel (%p5425) target = $region56
        $region55: #{attention_forward.1} parent=51 // pred_region
          %s5428 = sand.u32 %s146, 1
          %s5429 = scalar_lea.sflag [#allocation4], %s5428
          %s5430 = sand.u32 %s146, 1
          %s5431 = smul.addr %s5430, 16
          %s5432 = scalar_lea.vmem [#allocation5], %s5431
          %5433 = dma.done %s5429, 256
        $region56: #{attention_forward.1} parent=51 // pred_fallthru
          _
      $region52: #{attention_forward.1} parent=5 // pred_fallthru
        _
    $region6: #{attention_forward.1} parent=1 // loop_footer
      %s21 = sadd.s32 1, %s17
    $region7: #{attention_forward.1} parent=1 // loop_footer_branch
      %16 = sbr.rel target = $region3
    $region8: #{attention_forward.1} parent=1 // loop_exit
      _
    %5434 = vsyncpa [#allocation3], 1
    %s5435 = scalar_lea.sflag [#allocation3], 1
    %5436 = vsyncpa %s5435, 1
    %5437 = vsyncpa [#allocation4], 1
    %s5438 = scalar_lea.sflag [#allocation4], 1
    %5439 = vsyncpa %s5438, 1

</llo_original>
